<compile_context>
chip_gen: v5e
topology: v5e:2x2
jax: 0.10.0
libtpu: 0.0.40
codegen_flags: <defaults>
</compile_context>

<pallas_src>
import functools

import jax
import jax.numpy as jnp
from jax import lax
from jax.experimental import pallas as pl
from jax.experimental.pallas import tpu as pltpu


def _ceil_to(a, b):
    return -(-a // b) * b


def _basic_conv_kernel(w_ref, sc_ref, sh_ref, x_ref, o_ref, patch_ref, *,
                       NB, CINP, K, Wp, Lp, relu):
    """One batch chunk: im2col into VMEM scratch, then one MXU matmul per image.

    w_ref    : (COUT, K*K*CINP)    VMEM  conv weights, k = (dy*K+dx)*CINP + ci
    sc_ref   : (COUT, 1)           VMEM  folded BatchNorm scale
    sh_ref   : (COUT, 1)           VMEM  folded BatchNorm shift (+ conv bias)
    x_ref    : (NB, CINP, Lflat)   VMEM  zero-padded input, spatial flattened
    o_ref    : (NB, COUT, Lp)      VMEM  output in padded-row coordinates
    patch_ref: (NB, K*K*CINP, Lp)  VMEM  im2col patch matrix (transposed)
    """
    # im2col: one lane-shifted, lane-dense copy per conv tap.  The destination
    # row blocks are 8-sublane aligned (CINP % 8 == 0), so these are plain
    # wide stores; every element is rewritten each grid step (no stale state,
    # safe under "parallel" sharding, no memset needed).
    for dy in range(K):
        for dx in range(K):
            t = dy * K + dx
            off = dy * Wp + dx
            patch_ref[:, t * CINP:(t + 1) * CINP, :] = x_ref[:, :, off:off + Lp]

    w = w_ref[...]            # (COUT, K*K*CINP)  hoisted once per grid step
    sc = sc_ref[...]          # (COUT, 1)
    sh = sh_ref[...]          # (COUT, 1)
    for n in range(NB):       # NB is a small static chunk size
        # MXU contraction over CINP*K*K with f32 accumulation.
        # TODO(synk): for strict f32-vs-f32 fidelity on non-bf16-representable
        # weights, request a higher matmul pass count (precision=HIGHEST).
        acc = jnp.dot(w, patch_ref[n],
                      preferred_element_type=jnp.float32)      # (COUT, Lp)
        y = acc * sc + sh     # folded eval-mode BatchNorm
        if relu:
            y = jnp.maximum(y, 0.0)
        o_ref[n] = y.astype(o_ref.dtype)   # one lane-dense slab store per image


def _pick_batch_block(N, *, io_bytes_per_image, scratch_bytes_per_image,
                      const_bytes, num_cores, budget_bytes):
    """Largest batch chunk NB (divisor of N) whose VMEM working set fits the
    budget; on multi-TensorCore parts keep >= num_cores grid steps when the
    batch allows, so every core gets work."""
    best = 1
    for nb in range(1, N + 1):
        if N % nb:
            continue
        working = (2 * nb * io_bytes_per_image          # double-buffered I/O
                   + nb * scratch_bytes_per_image       # patches scratch
                   + const_bytes)                       # weights / BN params
        if working > budget_bytes:
            continue
        if num_cores > 1 and N >= num_cores and (N // nb) < num_cores:
            continue
        best = nb
    return best


def basic_conv(x, conv_w, scale, shift, *, padding, relu=True):
    """BasicConv forward: ReLU(BN(Conv2d(x))).

    x: (N, Cin, H, W) f32; conv_w: (Cout, Cin, K, K) OIHW.  BatchNorm (eval
    mode) is folded into per-output-channel (scale, shift); a conv bias, if
    any, should also be folded into `shift`.  If bn=False pass scale=1,
    shift=0 (or the bias).
    TODO(synk): stride=1, dilation=1, groups=1 only; training-mode BatchNorm
    (batch statistics) needs a cross-batch reduction and is not implemented.
    """
    N, CIN, H, W = x.shape
    COUT, CIN_w, K, K2 = conv_w.shape
    assert CIN_w == CIN and K2 == K
    P = int(padding)
    Hp, Wp = H + 2 * P, W + 2 * P
    HO, WO = Hp - K + 1, Wp - K + 1
    assert HO >= 1 and WO >= 1

    # ---- layout plumbing (tiny XLA ops on the wrapper side) ----------------
    CINP = _ceil_to(CIN, 8)                 # sublane-aligned im2col row blocks
    Lp = HO * Wp                            # output length in padded-row coords
    max_off = (K - 1) * Wp + (K - 1)        # largest tap lane offset
    Lflat = _ceil_to(max(Hp * Wp, max_off + Lp), 128)
    KKC = K * K * CINP

    xf = jnp.pad(x.astype(jnp.float32), ((0, 0), (0, 0), (P, P), (P, P)))
    xf = xf.reshape(N, CIN, Hp * Wp)        # free reshape of contiguous NCHW
    xf = jnp.pad(xf, ((0, 0), (0, CINP - CIN), (0, Lflat - Hp * Wp)))

    # Weights reordered to k = (dy*K + dx)*CINP + ci to match the patch matrix.
    w_mat = jnp.transpose(conv_w.astype(jnp.float32), (0, 2, 3, 1))
    w_mat = jnp.pad(w_mat, ((0, 0), (0, 0), (0, 0), (0, CINP - CIN)))
    w_mat = w_mat.reshape(COUT, KKC)
    sc_mat = jnp.asarray(scale, jnp.float32).reshape(COUT, 1)
    sh_mat = jnp.asarray(shift, jnp.float32).reshape(COUT, 1)

    # ---- generation-aware grid / VMEM sizing --------------------------------
    kind = ""
    try:
        kind = jax.devices()[0].device_kind.lower()
    except Exception:
        pass
    is_v7x = ("v7" in kind) or ("tpu7" in kind)
    num_cores = 2 if is_v7x else 1                    # TensorCores per chip
    budget = (24 << 20) if is_v7x else (48 << 20)     # v7x: 64 MiB physical
    vmem_limit = (32 << 20) if is_v7x else (64 << 20)

    lp_pad = _ceil_to(Lp, 128)
    io_bytes = 4 * (CINP * Lflat + _ceil_to(COUT, 8) * lp_pad)   # x + out / img
    scratch_bytes = 4 * KKC * lp_pad                             # patches / img
    const_bytes = 2 * 4 * _ceil_to(COUT, 8) * (_ceil_to(KKC, 128) + 256)
    NB = _pick_batch_block(N, io_bytes_per_image=io_bytes,
                           scratch_bytes_per_image=scratch_bytes,
                           const_bytes=const_bytes, num_cores=num_cores,
                           budget_bytes=budget)
    grid = (N // NB,)

    kernel = functools.partial(_basic_conv_kernel, NB=NB, CINP=CINP, K=K,
                               Wp=Wp, Lp=Lp, relu=relu)

    out_flat = pl.pallas_call(
        kernel,
        out_shape=jax.ShapeDtypeStruct((N, COUT, Lp), x.dtype),
        grid=grid,
        in_specs=[
            pl.BlockSpec((COUT, KKC), lambda n: (0, 0)),           # conv weights
            pl.BlockSpec((COUT, 1), lambda n: (0, 0)),             # bn scale
            pl.BlockSpec((COUT, 1), lambda n: (0, 0)),             # bn shift
            pl.BlockSpec((NB, CINP, Lflat), lambda n: (n, 0, 0)),  # x, lane-dense
        ],
        out_specs=pl.BlockSpec((NB, COUT, Lp), lambda n: (n, 0, 0)),
        scratch_shapes=[pltpu.VMEM((NB, KKC, Lp), jnp.float32)],
        compiler_params=pltpu.CompilerParams(
            dimension_semantics=("parallel",),
            vmem_limit_bytes=vmem_limit,
        ),
    )(w_mat, sc_mat, sh_mat, xf)

    # Padded-row coordinates -> (N, COUT, HO, WO): free reshape + tiny slice.
    return out_flat.reshape(N, COUT, HO, Wp)[:, :, :, :WO]


if __name__ == "__main__":
    key = jax.random.PRNGKey(0)
    kx, kw, kg, kb, km, kv = jax.random.split(key, 6)

    # BasicConv(in_planes=4, out_planes=4, kernel_size=7, stride=1, padding=3,
    #           relu=True, bn=True, bias=False)
    N, CIN, H, W = 2, 4, 16, 16
    COUT, K, P = 4, 7, 3

    # bf16-representable test values make the check independent of the MXU's
    # f32 matmul pass count (all products are exact; accumulation is f32).
    x = jax.random.normal(kx, (N, CIN, H, W), jnp.float32)
    x = x.astype(jnp.bfloat16).astype(jnp.float32)
    conv_w = 0.1 * jax.random.normal(kw, (COUT, CIN, K, K), jnp.float32)
    conv_w = conv_w.astype(jnp.bfloat16).astype(jnp.float32)

    # BatchNorm2d eval-mode parameters/statistics, folded to per-channel affine.
    eps = 1e-5
    gamma = 1.0 + 0.1 * jax.random.normal(kg, (COUT,), jnp.float32)
    beta = 0.1 * jax.random.normal(kb, (COUT,), jnp.float32)
    r_mean = 0.1 * jax.random.normal(km, (COUT,), jnp.float32)
    r_var = 1.0 + 0.5 * jnp.abs(jax.random.normal(kv, (COUT,), jnp.float32))
    scale = gamma / jnp.sqrt(r_var + eps)
    shift = beta - r_mean * scale

    out = basic_conv(x, conv_w, scale, shift, padding=P, relu=True)
    out = jax.block_until_ready(out)

    # Pure-JAX reference.
    conv = lax.conv_general_dilated(
        x, conv_w, window_strides=(1, 1), padding=[(P, P), (P, P)],
        dimension_numbers=("NCHW", "OIHW", "NCHW"),
        precision=lax.Precision.HIGHEST)
    ref = jnp.maximum(
        conv * scale[None, :, None, None] + shift[None, :, None, None], 0.0)

    err = float(jnp.max(jnp.abs(out - ref)))
    assert jnp.allclose(out, ref, atol=1e-3, rtol=1e-3), f"max abs err {err}"
    print("KERNEL_OK")
</pallas_src>

<mosaic_0001>
module attributes {stable_mosaic.version = 11 : i64} {
  func.func @_basic_conv_kernel(%arg0: i32, %arg1: memref<4x392xf32, #tpu.memory_space<vmem>>, %arg2: memref<4x1xf32, #tpu.memory_space<vmem>>, %arg3: memref<4x1xf32, #tpu.memory_space<vmem>>, %arg4: memref<2x8x512xf32, #tpu.memory_space<vmem>>, %arg5: memref<2x4x352xf32, #tpu.memory_space<vmem>>, %arg6: memref<2x392x352xf32, #tpu.memory_space<vmem>>) attributes {dimension_semantics = [#tpu.dimension_semantics<parallel>], iteration_bounds = array<i64: 1>, scalar_prefetch = 0 : i64, scratch_operands = 1 : i64, tpu.core_type = #tpu.core_type<tc>, window_params = [{pipeline_mode = #tpu.pipeline_mode<synchronous>, transform_indices = @transform_0, window_bounds = array<i64: 4, 392>}, {pipeline_mode = #tpu.pipeline_mode<synchronous>, transform_indices = @transform_1, window_bounds = array<i64: 4, 1>}, {pipeline_mode = #tpu.pipeline_mode<synchronous>, transform_indices = @transform_2, window_bounds = array<i64: 4, 1>}, {transform_indices = @transform_3, window_bounds = array<i64: 2, 8, 512>}, {transform_indices = @transform_4, window_bounds = array<i64: 2, 4, 352>}]} {
    %c0 = arith.constant 0 : index
    %c0_0 = arith.constant 0 : index
    %c0_1 = arith.constant 0 : index
    %0 = vector.load %arg4[%c0, %c0_0, %c0_1] : memref<2x8x512xf32, #tpu.memory_space<vmem>>, vector<2x8x352xf32>
    %c0_2 = arith.constant 0 : index
    %c0_3 = arith.constant 0 : index
    %c0_4 = arith.constant 0 : index
    %1 = vector.load %arg6[%c0_2, %c0_3, %c0_4] : memref<2x392x352xf32, #tpu.memory_space<vmem>>, vector<2x8x352xf32>
    tpu.vector_store %arg6[%c0_2, %c0_3, %c0_4], %0 {strides = array<i32>} : memref<2x392x352xf32, #tpu.memory_space<vmem>>, vector<2x8x352xf32>,
    %c0_5 = arith.constant 0 : index
    %c0_6 = arith.constant 0 : index
    %c1 = arith.constant 1 : index
    %2 = vector.load %arg4[%c0_5, %c0_6, %c1] : memref<2x8x512xf32, #tpu.memory_space<vmem>>, vector<2x8x352xf32>
    %c0_7 = arith.constant 0 : index
    %c8 = arith.constant 8 : index
    %c0_8 = arith.constant 0 : index
    %3 = vector.load %arg6[%c0_7, %c8, %c0_8] : memref<2x392x352xf32, #tpu.memory_space<vmem>>, vector<2x8x352xf32>
    tpu.vector_store %arg6[%c0_7, %c8, %c0_8], %2 {strides = array<i32>} : memref<2x392x352xf32, #tpu.memory_space<vmem>>, vector<2x8x352xf32>,
    %c0_9 = arith.constant 0 : index
    %c0_10 = arith.constant 0 : index
    %c2 = arith.constant 2 : index
    %4 = vector.load %arg4[%c0_9, %c0_10, %c2] : memref<2x8x512xf32, #tpu.memory_space<vmem>>, vector<2x8x352xf32>
    %c0_11 = arith.constant 0 : index
    %c16 = arith.constant 16 : index
    %c0_12 = arith.constant 0 : index
    %5 = vector.load %arg6[%c0_11, %c16, %c0_12] : memref<2x392x352xf32, #tpu.memory_space<vmem>>, vector<2x8x352xf32>
    tpu.vector_store %arg6[%c0_11, %c16, %c0_12], %4 {strides = array<i32>} : memref<2x392x352xf32, #tpu.memory_space<vmem>>, vector<2x8x352xf32>,
    %c0_13 = arith.constant 0 : index
    %c0_14 = arith.constant 0 : index
    %c3 = arith.constant 3 : index
    %6 = vector.load %arg4[%c0_13, %c0_14, %c3] : memref<2x8x512xf32, #tpu.memory_space<vmem>>, vector<2x8x352xf32>
    %c0_15 = arith.constant 0 : index
    %c24 = arith.constant 24 : index
    %c0_16 = arith.constant 0 : index
    %7 = vector.load %arg6[%c0_15, %c24, %c0_16] : memref<2x392x352xf32, #tpu.memory_space<vmem>>, vector<2x8x352xf32>
    tpu.vector_store %arg6[%c0_15, %c24, %c0_16], %6 {strides = array<i32>} : memref<2x392x352xf32, #tpu.memory_space<vmem>>, vector<2x8x352xf32>,
    %c0_17 = arith.constant 0 : index
    %c0_18 = arith.constant 0 : index
    %c4 = arith.constant 4 : index
    %8 = vector.load %arg4[%c0_17, %c0_18, %c4] : memref<2x8x512xf32, #tpu.memory_space<vmem>>, vector<2x8x352xf32>
    %c0_19 = arith.constant 0 : index
    %c32 = arith.constant 32 : index
    %c0_20 = arith.constant 0 : index
    %9 = vector.load %arg6[%c0_19, %c32, %c0_20] : memref<2x392x352xf32, #tpu.memory_space<vmem>>, vector<2x8x352xf32>
    tpu.vector_store %arg6[%c0_19, %c32, %c0_20], %8 {strides = array<i32>} : memref<2x392x352xf32, #tpu.memory_space<vmem>>, vector<2x8x352xf32>,
    %c0_21 = arith.constant 0 : index
    %c0_22 = arith.constant 0 : index
    %c5 = arith.constant 5 : index
    %10 = vector.load %arg4[%c0_21, %c0_22, %c5] : memref<2x8x512xf32, #tpu.memory_space<vmem>>, vector<2x8x352xf32>
    %c0_23 = arith.constant 0 : index
    %c40 = arith.constant 40 : index
    %c0_24 = arith.constant 0 : index
    %11 = vector.load %arg6[%c0_23, %c40, %c0_24] : memref<2x392x352xf32, #tpu.memory_space<vmem>>, vector<2x8x352xf32>
    tpu.vector_store %arg6[%c0_23, %c40, %c0_24], %10 {strides = array<i32>} : memref<2x392x352xf32, #tpu.memory_space<vmem>>, vector<2x8x352xf32>,
    %c0_25 = arith.constant 0 : index
    %c0_26 = arith.constant 0 : index
    %c6 = arith.constant 6 : index
    %12 = vector.load %arg4[%c0_25, %c0_26, %c6] : memref<2x8x512xf32, #tpu.memory_space<vmem>>, vector<2x8x352xf32>
    %c0_27 = arith.constant 0 : index
    %c48 = arith.constant 48 : index
    %c0_28 = arith.constant 0 : index
    %13 = vector.load %arg6[%c0_27, %c48, %c0_28] : memref<2x392x352xf32, #tpu.memory_space<vmem>>, vector<2x8x352xf32>
    tpu.vector_store %arg6[%c0_27, %c48, %c0_28], %12 {strides = array<i32>} : memref<2x392x352xf32, #tpu.memory_space<vmem>>, vector<2x8x352xf32>,
    %c0_29 = arith.constant 0 : index
    %c0_30 = arith.constant 0 : index
    %c22 = arith.constant 22 : index
    %14 = vector.load %arg4[%c0_29, %c0_30, %c22] : memref<2x8x512xf32, #tpu.memory_space<vmem>>, vector<2x8x352xf32>
    %c0_31 = arith.constant 0 : index
    %c56 = arith.constant 56 : index
    %c0_32 = arith.constant 0 : index
    %15 = vector.load %arg6[%c0_31, %c56, %c0_32] : memref<2x392x352xf32, #tpu.memory_space<vmem>>, vector<2x8x352xf32>
    tpu.vector_store %arg6[%c0_31, %c56, %c0_32], %14 {strides = array<i32>} : memref<2x392x352xf32, #tpu.memory_space<vmem>>, vector<2x8x352xf32>,
    %c0_33 = arith.constant 0 : index
    %c0_34 = arith.constant 0 : index
    %c23 = arith.constant 23 : index
    %16 = vector.load %arg4[%c0_33, %c0_34, %c23] : memref<2x8x512xf32, #tpu.memory_space<vmem>>, vector<2x8x352xf32>
    %c0_35 = arith.constant 0 : index
    %c64 = arith.constant 64 : index
    %c0_36 = arith.constant 0 : index
    %17 = vector.load %arg6[%c0_35, %c64, %c0_36] : memref<2x392x352xf32, #tpu.memory_space<vmem>>, vector<2x8x352xf32>
    tpu.vector_store %arg6[%c0_35, %c64, %c0_36], %16 {strides = array<i32>} : memref<2x392x352xf32, #tpu.memory_space<vmem>>, vector<2x8x352xf32>,
    %c0_37 = arith.constant 0 : index
    %c0_38 = arith.constant 0 : index
    %c24_39 = arith.constant 24 : index
    %18 = vector.load %arg4[%c0_37, %c0_38, %c24_39] : memref<2x8x512xf32, #tpu.memory_space<vmem>>, vector<2x8x352xf32>
    %c0_40 = arith.constant 0 : index
    %c72 = arith.constant 72 : index
    %c0_41 = arith.constant 0 : index
    %19 = vector.load %arg6[%c0_40, %c72, %c0_41] : memref<2x392x352xf32, #tpu.memory_space<vmem>>, vector<2x8x352xf32>
    tpu.vector_store %arg6[%c0_40, %c72, %c0_41], %18 {strides = array<i32>} : memref<2x392x352xf32, #tpu.memory_space<vmem>>, vector<2x8x352xf32>,
    %c0_42 = arith.constant 0 : index
    %c0_43 = arith.constant 0 : index
    %c25 = arith.constant 25 : index
    %20 = vector.load %arg4[%c0_42, %c0_43, %c25] : memref<2x8x512xf32, #tpu.memory_space<vmem>>, vector<2x8x352xf32>
    %c0_44 = arith.constant 0 : index
    %c80 = arith.constant 80 : index
    %c0_45 = arith.constant 0 : index
    %21 = vector.load %arg6[%c0_44, %c80, %c0_45] : memref<2x392x352xf32, #tpu.memory_space<vmem>>, vector<2x8x352xf32>
    tpu.vector_store %arg6[%c0_44, %c80, %c0_45], %20 {strides = array<i32>} : memref<2x392x352xf32, #tpu.memory_space<vmem>>, vector<2x8x352xf32>,
    %c0_46 = arith.constant 0 : index
    %c0_47 = arith.constant 0 : index
    %c26 = arith.constant 26 : index
    %22 = vector.load %arg4[%c0_46, %c0_47, %c26] : memref<2x8x512xf32, #tpu.memory_space<vmem>>, vector<2x8x352xf32>
    %c0_48 = arith.constant 0 : index
    %c88 = arith.constant 88 : index
    %c0_49 = arith.constant 0 : index
    %23 = vector.load %arg6[%c0_48, %c88, %c0_49] : memref<2x392x352xf32, #tpu.memory_space<vmem>>, vector<2x8x352xf32>
    tpu.vector_store %arg6[%c0_48, %c88, %c0_49], %22 {strides = array<i32>} : memref<2x392x352xf32, #tpu.memory_space<vmem>>, vector<2x8x352xf32>,
    %c0_50 = arith.constant 0 : index
    %c0_51 = arith.constant 0 : index
    %c27 = arith.constant 27 : index
    %24 = vector.load %arg4[%c0_50, %c0_51, %c27] : memref<2x8x512xf32, #tpu.memory_space<vmem>>, vector<2x8x352xf32>
    %c0_52 = arith.constant 0 : index
    %c96 = arith.constant 96 : index
    %c0_53 = arith.constant 0 : index
    %25 = vector.load %arg6[%c0_52, %c96, %c0_53] : memref<2x392x352xf32, #tpu.memory_space<vmem>>, vector<2x8x352xf32>
    tpu.vector_store %arg6[%c0_52, %c96, %c0_53], %24 {strides = array<i32>} : memref<2x392x352xf32, #tpu.memory_space<vmem>>, vector<2x8x352xf32>,
    %c0_54 = arith.constant 0 : index
    %c0_55 = arith.constant 0 : index
    %c28 = arith.constant 28 : index
    %26 = vector.load %arg4[%c0_54, %c0_55, %c28] : memref<2x8x512xf32, #tpu.memory_space<vmem>>, vector<2x8x352xf32>
    %c0_56 = arith.constant 0 : index
    %c104 = arith.constant 104 : index
    %c0_57 = arith.constant 0 : index
    %27 = vector.load %arg6[%c0_56, %c104, %c0_57] : memref<2x392x352xf32, #tpu.memory_space<vmem>>, vector<2x8x352xf32>
    tpu.vector_store %arg6[%c0_56, %c104, %c0_57], %26 {strides = array<i32>} : memref<2x392x352xf32, #tpu.memory_space<vmem>>, vector<2x8x352xf32>,
    %c0_58 = arith.constant 0 : index
    %c0_59 = arith.constant 0 : index
    %c44 = arith.constant 44 : index
    %28 = vector.load %arg4[%c0_58, %c0_59, %c44] : memref<2x8x512xf32, #tpu.memory_space<vmem>>, vector<2x8x352xf32>
    %c0_60 = arith.constant 0 : index
    %c112 = arith.constant 112 : index
    %c0_61 = arith.constant 0 : index
    %29 = vector.load %arg6[%c0_60, %c112, %c0_61] : memref<2x392x352xf32, #tpu.memory_space<vmem>>, vector<2x8x352xf32>
    tpu.vector_store %arg6[%c0_60, %c112, %c0_61], %28 {strides = array<i32>} : memref<2x392x352xf32, #tpu.memory_space<vmem>>, vector<2x8x352xf32>,
    %c0_62 = arith.constant 0 : index
    %c0_63 = arith.constant 0 : index
    %c45 = arith.constant 45 : index
    %30 = vector.load %arg4[%c0_62, %c0_63, %c45] : memref<2x8x512xf32, #tpu.memory_space<vmem>>, vector<2x8x352xf32>
    %c0_64 = arith.constant 0 : index
    %c120 = arith.constant 120 : index
    %c0_65 = arith.constant 0 : index
    %31 = vector.load %arg6[%c0_64, %c120, %c0_65] : memref<2x392x352xf32, #tpu.memory_space<vmem>>, vector<2x8x352xf32>
    tpu.vector_store %arg6[%c0_64, %c120, %c0_65], %30 {strides = array<i32>} : memref<2x392x352xf32, #tpu.memory_space<vmem>>, vector<2x8x352xf32>,
    %c0_66 = arith.constant 0 : index
    %c0_67 = arith.constant 0 : index
    %c46 = arith.constant 46 : index
    %32 = vector.load %arg4[%c0_66, %c0_67, %c46] : memref<2x8x512xf32, #tpu.memory_space<vmem>>, vector<2x8x352xf32>
    %c0_68 = arith.constant 0 : index
    %c128 = arith.constant 128 : index
    %c0_69 = arith.constant 0 : index
    %33 = vector.load %arg6[%c0_68, %c128, %c0_69] : memref<2x392x352xf32, #tpu.memory_space<vmem>>, vector<2x8x352xf32>
    tpu.vector_store %arg6[%c0_68, %c128, %c0_69], %32 {strides = array<i32>} : memref<2x392x352xf32, #tpu.memory_space<vmem>>, vector<2x8x352xf32>,
    %c0_70 = arith.constant 0 : index
    %c0_71 = arith.constant 0 : index
    %c47 = arith.constant 47 : index
    %34 = vector.load %arg4[%c0_70, %c0_71, %c47] : memref<2x8x512xf32, #tpu.memory_space<vmem>>, vector<2x8x352xf32>
    %c0_72 = arith.constant 0 : index
    %c136 = arith.constant 136 : index
    %c0_73 = arith.constant 0 : index
    %35 = vector.load %arg6[%c0_72, %c136, %c0_73] : memref<2x392x352xf32, #tpu.memory_space<vmem>>, vector<2x8x352xf32>
    tpu.vector_store %arg6[%c0_72, %c136, %c0_73], %34 {strides = array<i32>} : memref<2x392x352xf32, #tpu.memory_space<vmem>>, vector<2x8x352xf32>,
    %c0_74 = arith.constant 0 : index
    %c0_75 = arith.constant 0 : index
    %c48_76 = arith.constant 48 : index
    %36 = vector.load %arg4[%c0_74, %c0_75, %c48_76] : memref<2x8x512xf32, #tpu.memory_space<vmem>>, vector<2x8x352xf32>
    %c0_77 = arith.constant 0 : index
    %c144 = arith.constant 144 : index
    %c0_78 = arith.constant 0 : index
    %37 = vector.load %arg6[%c0_77, %c144, %c0_78] : memref<2x392x352xf32, #tpu.memory_space<vmem>>, vector<2x8x352xf32>
    tpu.vector_store %arg6[%c0_77, %c144, %c0_78], %36 {strides = array<i32>} : memref<2x392x352xf32, #tpu.memory_space<vmem>>, vector<2x8x352xf32>,
    %c0_79 = arith.constant 0 : index
    %c0_80 = arith.constant 0 : index
    %c49 = arith.constant 49 : index
    %38 = vector.load %arg4[%c0_79, %c0_80, %c49] : memref<2x8x512xf32, #tpu.memory_space<vmem>>, vector<2x8x352xf32>
    %c0_81 = arith.constant 0 : index
    %c152 = arith.constant 152 : index
    %c0_82 = arith.constant 0 : index
    %39 = vector.load %arg6[%c0_81, %c152, %c0_82] : memref<2x392x352xf32, #tpu.memory_space<vmem>>, vector<2x8x352xf32>
    tpu.vector_store %arg6[%c0_81, %c152, %c0_82], %38 {strides = array<i32>} : memref<2x392x352xf32, #tpu.memory_space<vmem>>, vector<2x8x352xf32>,
    %c0_83 = arith.constant 0 : index
    %c0_84 = arith.constant 0 : index
    %c50 = arith.constant 50 : index
    %40 = vector.load %arg4[%c0_83, %c0_84, %c50] : memref<2x8x512xf32, #tpu.memory_space<vmem>>, vector<2x8x352xf32>
    %c0_85 = arith.constant 0 : index
    %c160 = arith.constant 160 : index
    %c0_86 = arith.constant 0 : index
    %41 = vector.load %arg6[%c0_85, %c160, %c0_86] : memref<2x392x352xf32, #tpu.memory_space<vmem>>, vector<2x8x352xf32>
    tpu.vector_store %arg6[%c0_85, %c160, %c0_86], %40 {strides = array<i32>} : memref<2x392x352xf32, #tpu.memory_space<vmem>>, vector<2x8x352xf32>,
    %c0_87 = arith.constant 0 : index
    %c0_88 = arith.constant 0 : index
    %c66 = arith.constant 66 : index
    %42 = vector.load %arg4[%c0_87, %c0_88, %c66] : memref<2x8x512xf32, #tpu.memory_space<vmem>>, vector<2x8x352xf32>
    %c0_89 = arith.constant 0 : index
    %c168 = arith.constant 168 : index
    %c0_90 = arith.constant 0 : index
    %43 = vector.load %arg6[%c0_89, %c168, %c0_90] : memref<2x392x352xf32, #tpu.memory_space<vmem>>, vector<2x8x352xf32>
    tpu.vector_store %arg6[%c0_89, %c168, %c0_90], %42 {strides = array<i32>} : memref<2x392x352xf32, #tpu.memory_space<vmem>>, vector<2x8x352xf32>,
    %c0_91 = arith.constant 0 : index
    %c0_92 = arith.constant 0 : index
    %c67 = arith.constant 67 : index
    %44 = vector.load %arg4[%c0_91, %c0_92, %c67] : memref<2x8x512xf32, #tpu.memory_space<vmem>>, vector<2x8x352xf32>
    %c0_93 = arith.constant 0 : index
    %c176 = arith.constant 176 : index
    %c0_94 = arith.constant 0 : index
    %45 = vector.load %arg6[%c0_93, %c176, %c0_94] : memref<2x392x352xf32, #tpu.memory_space<vmem>>, vector<2x8x352xf32>
    tpu.vector_store %arg6[%c0_93, %c176, %c0_94], %44 {strides = array<i32>} : memref<2x392x352xf32, #tpu.memory_space<vmem>>, vector<2x8x352xf32>,
    %c0_95 = arith.constant 0 : index
    %c0_96 = arith.constant 0 : index
    %c68 = arith.constant 68 : index
    %46 = vector.load %arg4[%c0_95, %c0_96, %c68] : memref<2x8x512xf32, #tpu.memory_space<vmem>>, vector<2x8x352xf32>
    %c0_97 = arith.constant 0 : index
    %c184 = arith.constant 184 : index
    %c0_98 = arith.constant 0 : index
    %47 = vector.load %arg6[%c0_97, %c184, %c0_98] : memref<2x392x352xf32, #tpu.memory_space<vmem>>, vector<2x8x352xf32>
    tpu.vector_store %arg6[%c0_97, %c184, %c0_98], %46 {strides = array<i32>} : memref<2x392x352xf32, #tpu.memory_space<vmem>>, vector<2x8x352xf32>,
    %c0_99 = arith.constant 0 : index
    %c0_100 = arith.constant 0 : index
    %c69 = arith.constant 69 : index
    %48 = vector.load %arg4[%c0_99, %c0_100, %c69] : memref<2x8x512xf32, #tpu.memory_space<vmem>>, vector<2x8x352xf32>
    %c0_101 = arith.constant 0 : index
    %c192 = arith.constant 192 : index
    %c0_102 = arith.constant 0 : index
    %49 = vector.load %arg6[%c0_101, %c192, %c0_102] : memref<2x392x352xf32, #tpu.memory_space<vmem>>, vector<2x8x352xf32>
    tpu.vector_store %arg6[%c0_101, %c192, %c0_102], %48 {strides = array<i32>} : memref<2x392x352xf32, #tpu.memory_space<vmem>>, vector<2x8x352xf32>,
    %c0_103 = arith.constant 0 : index
    %c0_104 = arith.constant 0 : index
    %c70 = arith.constant 70 : index
    %50 = vector.load %arg4[%c0_103, %c0_104, %c70] : memref<2x8x512xf32, #tpu.memory_space<vmem>>, vector<2x8x352xf32>
    %c0_105 = arith.constant 0 : index
    %c200 = arith.constant 200 : index
    %c0_106 = arith.constant 0 : index
    %51 = vector.load %arg6[%c0_105, %c200, %c0_106] : memref<2x392x352xf32, #tpu.memory_space<vmem>>, vector<2x8x352xf32>
    tpu.vector_store %arg6[%c0_105, %c200, %c0_106], %50 {strides = array<i32>} : memref<2x392x352xf32, #tpu.memory_space<vmem>>, vector<2x8x352xf32>,
    %c0_107 = arith.constant 0 : index
    %c0_108 = arith.constant 0 : index
    %c71 = arith.constant 71 : index
    %52 = vector.load %arg4[%c0_107, %c0_108, %c71] : memref<2x8x512xf32, #tpu.memory_space<vmem>>, vector<2x8x352xf32>
    %c0_109 = arith.constant 0 : index
    %c208 = arith.constant 208 : index
    %c0_110 = arith.constant 0 : index
    %53 = vector.load %arg6[%c0_109, %c208, %c0_110] : memref<2x392x352xf32, #tpu.memory_space<vmem>>, vector<2x8x352xf32>
    tpu.vector_store %arg6[%c0_109, %c208, %c0_110], %52 {strides = array<i32>} : memref<2x392x352xf32, #tpu.memory_space<vmem>>, vector<2x8x352xf32>,
    %c0_111 = arith.constant 0 : index
    %c0_112 = arith.constant 0 : index
    %c72_113 = arith.constant 72 : index
    %54 = vector.load %arg4[%c0_111, %c0_112, %c72_113] : memref<2x8x512xf32, #tpu.memory_space<vmem>>, vector<2x8x352xf32>
    %c0_114 = arith.constant 0 : index
    %c216 = arith.constant 216 : index
    %c0_115 = arith.constant 0 : index
    %55 = vector.load %arg6[%c0_114, %c216, %c0_115] : memref<2x392x352xf32, #tpu.memory_space<vmem>>, vector<2x8x352xf32>
    tpu.vector_store %arg6[%c0_114, %c216, %c0_115], %54 {strides = array<i32>} : memref<2x392x352xf32, #tpu.memory_space<vmem>>, vector<2x8x352xf32>,
    %c0_116 = arith.constant 0 : index
    %c0_117 = arith.constant 0 : index
    %c88_118 = arith.constant 88 : index
    %56 = vector.load %arg4[%c0_116, %c0_117, %c88_118] : memref<2x8x512xf32, #tpu.memory_space<vmem>>, vector<2x8x352xf32>
    %c0_119 = arith.constant 0 : index
    %c224 = arith.constant 224 : index
    %c0_120 = arith.constant 0 : index
    %57 = vector.load %arg6[%c0_119, %c224, %c0_120] : memref<2x392x352xf32, #tpu.memory_space<vmem>>, vector<2x8x352xf32>
    tpu.vector_store %arg6[%c0_119, %c224, %c0_120], %56 {strides = array<i32>} : memref<2x392x352xf32, #tpu.memory_space<vmem>>, vector<2x8x352xf32>,
    %c0_121 = arith.constant 0 : index
    %c0_122 = arith.constant 0 : index
    %c89 = arith.constant 89 : index
    %58 = vector.load %arg4[%c0_121, %c0_122, %c89] : memref<2x8x512xf32, #tpu.memory_space<vmem>>, vector<2x8x352xf32>
    %c0_123 = arith.constant 0 : index
    %c232 = arith.constant 232 : index
    %c0_124 = arith.constant 0 : index
    %59 = vector.load %arg6[%c0_123, %c232, %c0_124] : memref<2x392x352xf32, #tpu.memory_space<vmem>>, vector<2x8x352xf32>
    tpu.vector_store %arg6[%c0_123, %c232, %c0_124], %58 {strides = array<i32>} : memref<2x392x352xf32, #tpu.memory_space<vmem>>, vector<2x8x352xf32>,
    %c0_125 = arith.constant 0 : index
    %c0_126 = arith.constant 0 : index
    %c90 = arith.constant 90 : index
    %60 = vector.load %arg4[%c0_125, %c0_126, %c90] : memref<2x8x512xf32, #tpu.memory_space<vmem>>, vector<2x8x352xf32>
    %c0_127 = arith.constant 0 : index
    %c240 = arith.constant 240 : index
    %c0_128 = arith.constant 0 : index
    %61 = vector.load %arg6[%c0_127, %c240, %c0_128] : memref<2x392x352xf32, #tpu.memory_space<vmem>>, vector<2x8x352xf32>
    tpu.vector_store %arg6[%c0_127, %c240, %c0_128], %60 {strides = array<i32>} : memref<2x392x352xf32, #tpu.memory_space<vmem>>, vector<2x8x352xf32>,
    %c0_129 = arith.constant 0 : index
    %c0_130 = arith.constant 0 : index
    %c91 = arith.constant 91 : index
    %62 = vector.load %arg4[%c0_129, %c0_130, %c91] : memref<2x8x512xf32, #tpu.memory_space<vmem>>, vector<2x8x352xf32>
    %c0_131 = arith.constant 0 : index
    %c248 = arith.constant 248 : index
    %c0_132 = arith.constant 0 : index
    %63 = vector.load %arg6[%c0_131, %c248, %c0_132] : memref<2x392x352xf32, #tpu.memory_space<vmem>>, vector<2x8x352xf32>
    tpu.vector_store %arg6[%c0_131, %c248, %c0_132], %62 {strides = array<i32>} : memref<2x392x352xf32, #tpu.memory_space<vmem>>, vector<2x8x352xf32>,
    %c0_133 = arith.constant 0 : index
    %c0_134 = arith.constant 0 : index
    %c92 = arith.constant 92 : index
    %64 = vector.load %arg4[%c0_133, %c0_134, %c92] : memref<2x8x512xf32, #tpu.memory_space<vmem>>, vector<2x8x352xf32>
    %c0_135 = arith.constant 0 : index
    %c256 = arith.constant 256 : index
    %c0_136 = arith.constant 0 : index
    %65 = vector.load %arg6[%c0_135, %c256, %c0_136] : memref<2x392x352xf32, #tpu.memory_space<vmem>>, vector<2x8x352xf32>
    tpu.vector_store %arg6[%c0_135, %c256, %c0_136], %64 {strides = array<i32>} : memref<2x392x352xf32, #tpu.memory_space<vmem>>, vector<2x8x352xf32>,
    %c0_137 = arith.constant 0 : index
    %c0_138 = arith.constant 0 : index
    %c93 = arith.constant 93 : index
    %66 = vector.load %arg4[%c0_137, %c0_138, %c93] : memref<2x8x512xf32, #tpu.memory_space<vmem>>, vector<2x8x352xf32>
    %c0_139 = arith.constant 0 : index
    %c264 = arith.constant 264 : index
    %c0_140 = arith.constant 0 : index
    %67 = vector.load %arg6[%c0_139, %c264, %c0_140] : memref<2x392x352xf32, #tpu.memory_space<vmem>>, vector<2x8x352xf32>
    tpu.vector_store %arg6[%c0_139, %c264, %c0_140], %66 {strides = array<i32>} : memref<2x392x352xf32, #tpu.memory_space<vmem>>, vector<2x8x352xf32>,
    %c0_141 = arith.constant 0 : index
    %c0_142 = arith.constant 0 : index
    %c94 = arith.constant 94 : index
    %68 = vector.load %arg4[%c0_141, %c0_142, %c94] : memref<2x8x512xf32, #tpu.memory_space<vmem>>, vector<2x8x352xf32>
    %c0_143 = arith.constant 0 : index
    %c272 = arith.constant 272 : index
    %c0_144 = arith.constant 0 : index
    %69 = vector.load %arg6[%c0_143, %c272, %c0_144] : memref<2x392x352xf32, #tpu.memory_space<vmem>>, vector<2x8x352xf32>
    tpu.vector_store %arg6[%c0_143, %c272, %c0_144], %68 {strides = array<i32>} : memref<2x392x352xf32, #tpu.memory_space<vmem>>, vector<2x8x352xf32>,
    %c0_145 = arith.constant 0 : index
    %c0_146 = arith.constant 0 : index
    %c110 = arith.constant 110 : index
    %70 = vector.load %arg4[%c0_145, %c0_146, %c110] : memref<2x8x512xf32, #tpu.memory_space<vmem>>, vector<2x8x352xf32>
    %c0_147 = arith.constant 0 : index
    %c280 = arith.constant 280 : index
    %c0_148 = arith.constant 0 : index
    %71 = vector.load %arg6[%c0_147, %c280, %c0_148] : memref<2x392x352xf32, #tpu.memory_space<vmem>>, vector<2x8x352xf32>
    tpu.vector_store %arg6[%c0_147, %c280, %c0_148], %70 {strides = array<i32>} : memref<2x392x352xf32, #tpu.memory_space<vmem>>, vector<2x8x352xf32>,
    %c0_149 = arith.constant 0 : index
    %c0_150 = arith.constant 0 : index
    %c111 = arith.constant 111 : index
    %72 = vector.load %arg4[%c0_149, %c0_150, %c111] : memref<2x8x512xf32, #tpu.memory_space<vmem>>, vector<2x8x352xf32>
    %c0_151 = arith.constant 0 : index
    %c288 = arith.constant 288 : index
    %c0_152 = arith.constant 0 : index
    %73 = vector.load %arg6[%c0_151, %c288, %c0_152] : memref<2x392x352xf32, #tpu.memory_space<vmem>>, vector<2x8x352xf32>
    tpu.vector_store %arg6[%c0_151, %c288, %c0_152], %72 {strides = array<i32>} : memref<2x392x352xf32, #tpu.memory_space<vmem>>, vector<2x8x352xf32>,
    %c0_153 = arith.constant 0 : index
    %c0_154 = arith.constant 0 : index
    %c112_155 = arith.constant 112 : index
    %74 = vector.load %arg4[%c0_153, %c0_154, %c112_155] : memref<2x8x512xf32, #tpu.memory_space<vmem>>, vector<2x8x352xf32>
    %c0_156 = arith.constant 0 : index
    %c296 = arith.constant 296 : index
    %c0_157 = arith.constant 0 : index
    %75 = vector.load %arg6[%c0_156, %c296, %c0_157] : memref<2x392x352xf32, #tpu.memory_space<vmem>>, vector<2x8x352xf32>
    tpu.vector_store %arg6[%c0_156, %c296, %c0_157], %74 {strides = array<i32>} : memref<2x392x352xf32, #tpu.memory_space<vmem>>, vector<2x8x352xf32>,
    %c0_158 = arith.constant 0 : index
    %c0_159 = arith.constant 0 : index
    %c113 = arith.constant 113 : index
    %76 = vector.load %arg4[%c0_158, %c0_159, %c113] : memref<2x8x512xf32, #tpu.memory_space<vmem>>, vector<2x8x352xf32>
    %c0_160 = arith.constant 0 : index
    %c304 = arith.constant 304 : index
    %c0_161 = arith.constant 0 : index
    %77 = vector.load %arg6[%c0_160, %c304, %c0_161] : memref<2x392x352xf32, #tpu.memory_space<vmem>>, vector<2x8x352xf32>
    tpu.vector_store %arg6[%c0_160, %c304, %c0_161], %76 {strides = array<i32>} : memref<2x392x352xf32, #tpu.memory_space<vmem>>, vector<2x8x352xf32>,
    %c0_162 = arith.constant 0 : index
    %c0_163 = arith.constant 0 : index
    %c114 = arith.constant 114 : index
    %78 = vector.load %arg4[%c0_162, %c0_163, %c114] : memref<2x8x512xf32, #tpu.memory_space<vmem>>, vector<2x8x352xf32>
    %c0_164 = arith.constant 0 : index
    %c312 = arith.constant 312 : index
    %c0_165 = arith.constant 0 : index
    %79 = vector.load %arg6[%c0_164, %c312, %c0_165] : memref<2x392x352xf32, #tpu.memory_space<vmem>>, vector<2x8x352xf32>
    tpu.vector_store %arg6[%c0_164, %c312, %c0_165], %78 {strides = array<i32>} : memref<2x392x352xf32, #tpu.memory_space<vmem>>, vector<2x8x352xf32>,
    %c0_166 = arith.constant 0 : index
    %c0_167 = arith.constant 0 : index
    %c115 = arith.constant 115 : index
    %80 = vector.load %arg4[%c0_166, %c0_167, %c115] : memref<2x8x512xf32, #tpu.memory_space<vmem>>, vector<2x8x352xf32>
    %c0_168 = arith.constant 0 : index
    %c320 = arith.constant 320 : index
    %c0_169 = arith.constant 0 : index
    %81 = vector.load %arg6[%c0_168, %c320, %c0_169] : memref<2x392x352xf32, #tpu.memory_space<vmem>>, vector<2x8x352xf32>
    tpu.vector_store %arg6[%c0_168, %c320, %c0_169], %80 {strides = array<i32>} : memref<2x392x352xf32, #tpu.memory_space<vmem>>, vector<2x8x352xf32>,
    %c0_170 = arith.constant 0 : index
    %c0_171 = arith.constant 0 : index
    %c116 = arith.constant 116 : index
    %82 = vector.load %arg4[%c0_170, %c0_171, %c116] : memref<2x8x512xf32, #tpu.memory_space<vmem>>, vector<2x8x352xf32>
    %c0_172 = arith.constant 0 : index
    %c328 = arith.constant 328 : index
    %c0_173 = arith.constant 0 : index
    %83 = vector.load %arg6[%c0_172, %c328, %c0_173] : memref<2x392x352xf32, #tpu.memory_space<vmem>>, vector<2x8x352xf32>
    tpu.vector_store %arg6[%c0_172, %c328, %c0_173], %82 {strides = array<i32>} : memref<2x392x352xf32, #tpu.memory_space<vmem>>, vector<2x8x352xf32>,
    %c0_174 = arith.constant 0 : index
    %c0_175 = arith.constant 0 : index
    %c132 = arith.constant 132 : index
    %84 = vector.load %arg4[%c0_174, %c0_175, %c132] : memref<2x8x512xf32, #tpu.memory_space<vmem>>, vector<2x8x352xf32>
    %c0_176 = arith.constant 0 : index
    %c336 = arith.constant 336 : index
    %c0_177 = arith.constant 0 : index
    %85 = vector.load %arg6[%c0_176, %c336, %c0_177] : memref<2x392x352xf32, #tpu.memory_space<vmem>>, vector<2x8x352xf32>
    tpu.vector_store %arg6[%c0_176, %c336, %c0_177], %84 {strides = array<i32>} : memref<2x392x352xf32, #tpu.memory_space<vmem>>, vector<2x8x352xf32>,
    %c0_178 = arith.constant 0 : index
    %c0_179 = arith.constant 0 : index
    %c133 = arith.constant 133 : index
    %86 = vector.load %arg4[%c0_178, %c0_179, %c133] : memref<2x8x512xf32, #tpu.memory_space<vmem>>, vector<2x8x352xf32>
    %c0_180 = arith.constant 0 : index
    %c344 = arith.constant 344 : index
    %c0_181 = arith.constant 0 : index
    %87 = vector.load %arg6[%c0_180, %c344, %c0_181] : memref<2x392x352xf32, #tpu.memory_space<vmem>>, vector<2x8x352xf32>
    tpu.vector_store %arg6[%c0_180, %c344, %c0_181], %86 {strides = array<i32>} : memref<2x392x352xf32, #tpu.memory_space<vmem>>, vector<2x8x352xf32>,
    %c0_182 = arith.constant 0 : index
    %c0_183 = arith.constant 0 : index
    %c134 = arith.constant 134 : index
    %88 = vector.load %arg4[%c0_182, %c0_183, %c134] : memref<2x8x512xf32, #tpu.memory_space<vmem>>, vector<2x8x352xf32>
    %c0_184 = arith.constant 0 : index
    %c352 = arith.constant 352 : index
    %c0_185 = arith.constant 0 : index
    %89 = vector.load %arg6[%c0_184, %c352, %c0_185] : memref<2x392x352xf32, #tpu.memory_space<vmem>>, vector<2x8x352xf32>
    tpu.vector_store %arg6[%c0_184, %c352, %c0_185], %88 {strides = array<i32>} : memref<2x392x352xf32, #tpu.memory_space<vmem>>, vector<2x8x352xf32>,
    %c0_186 = arith.constant 0 : index
    %c0_187 = arith.constant 0 : index
    %c135 = arith.constant 135 : index
    %90 = vector.load %arg4[%c0_186, %c0_187, %c135] : memref<2x8x512xf32, #tpu.memory_space<vmem>>, vector<2x8x352xf32>
    %c0_188 = arith.constant 0 : index
    %c360 = arith.constant 360 : index
    %c0_189 = arith.constant 0 : index
    %91 = vector.load %arg6[%c0_188, %c360, %c0_189] : memref<2x392x352xf32, #tpu.memory_space<vmem>>, vector<2x8x352xf32>
    tpu.vector_store %arg6[%c0_188, %c360, %c0_189], %90 {strides = array<i32>} : memref<2x392x352xf32, #tpu.memory_space<vmem>>, vector<2x8x352xf32>,
    %c0_190 = arith.constant 0 : index
    %c0_191 = arith.constant 0 : index
    %c136_192 = arith.constant 136 : index
    %92 = vector.load %arg4[%c0_190, %c0_191, %c136_192] : memref<2x8x512xf32, #tpu.memory_space<vmem>>, vector<2x8x352xf32>
    %c0_193 = arith.constant 0 : index
    %c368 = arith.constant 368 : index
    %c0_194 = arith.constant 0 : index
    %93 = vector.load %arg6[%c0_193, %c368, %c0_194] : memref<2x392x352xf32, #tpu.memory_space<vmem>>, vector<2x8x352xf32>
    tpu.vector_store %arg6[%c0_193, %c368, %c0_194], %92 {strides = array<i32>} : memref<2x392x352xf32, #tpu.memory_space<vmem>>, vector<2x8x352xf32>,
    %c0_195 = arith.constant 0 : index
    %c0_196 = arith.constant 0 : index
    %c137 = arith.constant 137 : index
    %94 = vector.load %arg4[%c0_195, %c0_196, %c137] : memref<2x8x512xf32, #tpu.memory_space<vmem>>, vector<2x8x352xf32>
    %c0_197 = arith.constant 0 : index
    %c376 = arith.constant 376 : index
    %c0_198 = arith.constant 0 : index
    %95 = vector.load %arg6[%c0_197, %c376, %c0_198] : memref<2x392x352xf32, #tpu.memory_space<vmem>>, vector<2x8x352xf32>
    tpu.vector_store %arg6[%c0_197, %c376, %c0_198], %94 {strides = array<i32>} : memref<2x392x352xf32, #tpu.memory_space<vmem>>, vector<2x8x352xf32>,
    %c0_199 = arith.constant 0 : index
    %c0_200 = arith.constant 0 : index
    %c138 = arith.constant 138 : index
    %96 = vector.load %arg4[%c0_199, %c0_200, %c138] : memref<2x8x512xf32, #tpu.memory_space<vmem>>, vector<2x8x352xf32>
    %c0_201 = arith.constant 0 : index
    %c384 = arith.constant 384 : index
    %c0_202 = arith.constant 0 : index
    %97 = vector.load %arg6[%c0_201, %c384, %c0_202] : memref<2x392x352xf32, #tpu.memory_space<vmem>>, vector<2x8x352xf32>
    tpu.vector_store %arg6[%c0_201, %c384, %c0_202], %96 {strides = array<i32>} : memref<2x392x352xf32, #tpu.memory_space<vmem>>, vector<2x8x352xf32>,
    %c0_203 = arith.constant 0 : index
    %c0_204 = arith.constant 0 : index
    %98 = vector.load %arg1[%c0_203, %c0_204] : memref<4x392xf32, #tpu.memory_space<vmem>>, vector<4x392xf32>
    %c0_205 = arith.constant 0 : index
    %c0_206 = arith.constant 0 : index
    %99 = vector.load %arg2[%c0_205, %c0_206] : memref<4x1xf32, #tpu.memory_space<vmem>>, vector<4x1xf32>
    %c0_207 = arith.constant 0 : index
    %c0_208 = arith.constant 0 : index
    %100 = vector.load %arg3[%c0_207, %c0_208] : memref<4x1xf32, #tpu.memory_space<vmem>>, vector<4x1xf32>
    %c0_209 = arith.constant 0 : index
    %c0_210 = arith.constant 0 : index
    %c0_211 = arith.constant 0 : index
    %101 = vector.load %arg6[%c0_209, %c0_210, %c0_211] : memref<2x392x352xf32, #tpu.memory_space<vmem>>, vector<1x392x352xf32>
    %102 = vector.shape_cast %101 : vector<1x392x352xf32> to vector<392x352xf32>
    %cst = arith.constant dense<0.000000e+00> : vector<4x352xf32>
    %103 = tpu.matmul %98, %102, %cst {dimension_numbers = #tpu.dot_dimension_numbers<[1], [0], [0], [1], [0, 0, 1, 1], [], []>} : vector<4x392xf32>, vector<392x352xf32>, vector<4x352xf32> -> vector<4x352xf32>
    %104 = vector.broadcast %99 : vector<4x1xf32> to vector<4x352xf32>
    %105 = arith.mulf %103, %104 : vector<4x352xf32>
    %106 = vector.broadcast %100 : vector<4x1xf32> to vector<4x352xf32>
    %107 = arith.addf %105, %106 : vector<4x352xf32>
    %cst_212 = arith.constant 0.000000e+00 : f32
    %108 = vector.broadcast %cst_212 : f32 to vector<4x352xf32>
    %109 = arith.maximumf %107, %108 : vector<4x352xf32>
    %c0_213 = arith.constant 0 : index
    %c0_214 = arith.constant 0 : index
    %c0_215 = arith.constant 0 : index
    %110 = vector.load %arg5[%c0_213, %c0_214, %c0_215] : memref<2x4x352xf32, #tpu.memory_space<vmem>>, vector<1x4x352xf32>
    %111 = vector.shape_cast %110 : vector<1x4x352xf32> to vector<4x352xf32>
    %112 = vector.shape_cast %109 : vector<4x352xf32> to vector<1x4x352xf32>
    tpu.vector_store %arg5[%c0_213, %c0_214, %c0_215], %112 {strides = array<i32>} : memref<2x4x352xf32, #tpu.memory_space<vmem>>, vector<1x4x352xf32>,
    %c1_216 = arith.constant 1 : index
    %c0_217 = arith.constant 0 : index
    %c0_218 = arith.constant 0 : index
    %113 = vector.load %arg6[%c1_216, %c0_217, %c0_218] : memref<2x392x352xf32, #tpu.memory_space<vmem>>, vector<1x392x352xf32>
    %114 = vector.shape_cast %113 : vector<1x392x352xf32> to vector<392x352xf32>
    %cst_219 = arith.constant dense<0.000000e+00> : vector<4x352xf32>
    %115 = tpu.matmul %98, %114, %cst_219 {dimension_numbers = #tpu.dot_dimension_numbers<[1], [0], [0], [1], [0, 0, 1, 1], [], []>} : vector<4x392xf32>, vector<392x352xf32>, vector<4x352xf32> -> vector<4x352xf32>
    %116 = vector.broadcast %99 : vector<4x1xf32> to vector<4x352xf32>
    %117 = arith.mulf %115, %116 : vector<4x352xf32>
    %118 = vector.broadcast %100 : vector<4x1xf32> to vector<4x352xf32>
    %119 = arith.addf %117, %118 : vector<4x352xf32>
    %cst_220 = arith.constant 0.000000e+00 : f32
    %120 = vector.broadcast %cst_220 : f32 to vector<4x352xf32>
    %121 = arith.maximumf %119, %120 : vector<4x352xf32>
    %c1_221 = arith.constant 1 : index
    %c0_222 = arith.constant 0 : index
    %c0_223 = arith.constant 0 : index
    %122 = vector.load %arg5[%c1_221, %c0_222, %c0_223] : memref<2x4x352xf32, #tpu.memory_space<vmem>>, vector<1x4x352xf32>
    %123 = vector.shape_cast %122 : vector<1x4x352xf32> to vector<4x352xf32>
    %124 = vector.shape_cast %121 : vector<4x352xf32> to vector<1x4x352xf32>
    tpu.vector_store %arg5[%c1_221, %c0_222, %c0_223], %124 {strides = array<i32>} : memref<2x4x352xf32, #tpu.memory_space<vmem>>, vector<1x4x352xf32>,
    return
  }
  func.func @transform_0(%arg0: i32) -> (i32, i32) {
    %c0_i32 = arith.constant 0 : i32
    %c0_i32_0 = arith.constant 0 : i32
    %c0_i32_1 = arith.constant 0 : i32
    return %c0_i32, %c0_i32_0 : i32, i32
  }
  func.func @transform_1(%arg0: i32) -> (i32, i32) {
    %c0_i32 = arith.constant 0 : i32
    %c0_i32_0 = arith.constant 0 : i32
    %c0_i32_1 = arith.constant 0 : i32
    return %c0_i32, %c0_i32_0 : i32, i32
  }
  func.func @transform_2(%arg0: i32) -> (i32, i32) {
    %c0_i32 = arith.constant 0 : i32
    %c0_i32_0 = arith.constant 0 : i32
    %c0_i32_1 = arith.constant 0 : i32
    return %c0_i32, %c0_i32_0 : i32, i32
  }
  func.func @transform_3(%arg0: i32) -> (i32, i32, i32) {
    %c0_i32 = arith.constant 0 : i32
    %c0_i32_0 = arith.constant 0 : i32
    %c0_i32_1 = arith.constant 0 : i32
    return %arg0, %c0_i32, %c0_i32_0 : i32, i32, i32
  }
  func.func @transform_4(%arg0: i32) -> (i32, i32, i32) {
    %c0_i32 = arith.constant 0 : i32
    %c0_i32_0 = arith.constant 0 : i32
    %c0_i32_1 = arith.constant 0 : i32
    return %arg0, %c0_i32, %c0_i32_0 : i32, i32, i32
  }
}

</mosaic_0001>

<llo_original>
// kernel: tpu_custom_call.1
$region0: #{tpu_custom_call.1}
  #allocation0 [shape = 'u32[]', space=smem, size = 0x4, offset = 0x4, fixed_abs, tag = 'smem constant byte address 0x4 - core index']
  #allocation1 [shape = 'u32[72,128]{1,0:T(1,128)}', space=vmem, size = 0x9000, scoped, tag = 'internal scratch']
  #allocation2 [shape = 'f32[2,392,352]{2,1,0:T(8,128)}', space=vmem, size = 0x126000, scoped, tag = 'scratch operand']
  %s0 = inlined_call_operand.hbm [shape: f32[4,392], index: 0, kind: input, shape index: {}]
  %s1 = inlined_call_operand.vmem [shape: f32[4,1], index: 1, kind: input, shape index: {}]
  %s2 = inlined_call_operand.vmem [shape: f32[4,1], index: 2, kind: input, shape index: {}]
  %s3 = inlined_call_operand.hbm [shape: f32[2,8,512], index: 3, kind: input, shape index: {}]
  %s4 = inlined_call_operand.hbm [shape: f32[2,4,352], index: 4, kind: output, shape index: {}]
  %s5 = sld [smem:[#allocation0]]
  $region34: #{tpu_custom_call.1} parent=0
    _
  %s7 = ssub.s32 1, %s5
  %s8 = scalar_select 0, %s7, %s5
  $region1: #{tpu_custom_call.1} parent=0
    #allocation3 [shape = 'u8[8192]{0}', space=vmem, size = 0x2000, scoped, tag = 'input window, operand 0, single buffered']
    #allocation4 [shape = 's32[1]{0}', space=sflag, size = 0x4, scoped, tag = 'scoped memory for tpu_custom_call.1']
    #allocation5 [shape = 's32[1]{0}', space=sflag, size = 0x4, scoped, tag = 'scoped memory for tpu_custom_call.1']
    #allocation6 [shape = 'u8[32768]{0}', space=vmem, size = 0x8000, scoped, tag = 'input window, operand 3, single buffered']
    #allocation7 [shape = 's32[1]{0}', space=sflag, size = 0x4, scoped, tag = 'scoped memory for tpu_custom_call.1']
    #allocation8 [shape = 'u8[12288]{0}', space=vmem, size = 0x3000, scoped, tag = 'output window, operand 0, single buffered']
    %9 = vsyncpa [#allocation4], 0
    %10 = vsyncpa [#allocation7], 0
    %11 = vsyncpa [#allocation5], 0
    // Predicated region
    $region2: #{tpu_custom_call.1} parent=1 // pred_check
      _
    $region3: #{tpu_custom_call.1} parent=1 // pred_check_branch
      %13 = sbr.rel (0) target = $region5
    $region4: #{tpu_custom_call.1} parent=1 // pred_region
      %15 = vsyncadd [#allocation4], 0
      %s17 = sshll.u32 %s0, 4
      %s18 = int_to_ptr.hbm [resolvable:$true] %s17
      %s19 = sshll.u32 [#allocation3], 4
      %s20 = int_to_ptr.vmem [resolvable:$true] %s19
      %22 = dma.hbm_to_vmem [thread:$0]  %s18, 256, %s20, [#allocation4]
    $region5: #{tpu_custom_call.1} parent=1 // pred_fallthru
      _
    // Predicated region
    $region6: #{tpu_custom_call.1} parent=1 // pred_check
      _
    $region7: #{tpu_custom_call.1} parent=1 // pred_check_branch
      %24 = sbr.rel (0) target = $region9
    $region8: #{tpu_custom_call.1} parent=1 // pred_region
      _
    $region9: #{tpu_custom_call.1} parent=1 // pred_fallthru
      _
    // Predicated region
    $region10: #{tpu_custom_call.1} parent=1 // pred_check
      _
    $region11: #{tpu_custom_call.1} parent=1 // pred_check_branch
      %26 = sbr.rel (0) target = $region13
    $region12: #{tpu_custom_call.1} parent=1 // pred_region
      _
    $region13: #{tpu_custom_call.1} parent=1 // pred_fallthru
      _
    // Predicated region
    $region14: #{tpu_custom_call.1} parent=1 // pred_check
      _
    $region15: #{tpu_custom_call.1} parent=1 // pred_check_branch
      %28 = sbr.rel (0) target = $region17
    $region16: #{tpu_custom_call.1} parent=1 // pred_region
      %30 = vsyncadd [#allocation7], 0
      %s31 = sshll.u32 %s3, 4
      %s32 = int_to_ptr.hbm [resolvable:$true] %s31
      %s33 = sshll.u32 [#allocation6], 4
      %s34 = int_to_ptr.vmem [resolvable:$true] %s33
      %39 = dma.hbm_to_vmem [thread:$0]  %s32, 1024, %s34, [#allocation7], 512, 512, 32
    $region17: #{tpu_custom_call.1} parent=1 // pred_fallthru
      _
    // Predicated region
    $region18: #{tpu_custom_call.1} parent=1 // pred_check
      _
    $region19: #{tpu_custom_call.1} parent=1 // pred_check_branch
      %41 = sbr.rel (0) target = $region21
    $region20: #{tpu_custom_call.1} parent=1 // pred_region
      %43 = dma.done [#allocation4], 256
    $region21: #{tpu_custom_call.1} parent=1 // pred_fallthru
      _
    // Predicated region
    $region22: #{tpu_custom_call.1} parent=1 // pred_check
      _
    $region23: #{tpu_custom_call.1} parent=1 // pred_check_branch
      %45 = sbr.rel (0) target = $region25
    $region24: #{tpu_custom_call.1} parent=1 // pred_region
      %47 = dma.done [#allocation7], 1024
    $region25: #{tpu_custom_call.1} parent=1 // pred_fallthru
      _
    %v48 = vld [vmem:[#allocation6] sm:$0xff]
    %v49 = vld [vmem:[#allocation6 + $0x8] sm:$0xff]
    %v50 = vld [vmem:[#allocation6 + $0x10] sm:$0xff]
    %v51 = vld [vmem:[#allocation6 + $0x20] sm:$0xff]
    %v52 = vld [vmem:[#allocation6 + $0x28] sm:$0xff]
    %v53 = vld [vmem:[#allocation6 + $0x30] sm:$0xff]
    %54 = vst [vmem:[#allocation2] sm:$0xff] %v48
    %55 = vst [vmem:[#allocation2 + $0x8] sm:$0xff] %v49
    %vm56 = vcmask 785408
    %57 = vst.msk [vmem:[#allocation2 + $0x10] sm:$0xff] %vm56, %v50
    %58 = vst [vmem:[#allocation2 + $0x498] sm:$0xff] %v51
    %59 = vst [vmem:[#allocation2 + $0x4a0] sm:$0xff] %v52
    %60 = vst.msk [vmem:[#allocation2 + $0x4a8] sm:$0xff] %vm56, %v53
    %v61 = vld [vmem:[#allocation6] sm:$0xff]
    %v62 = vld [vmem:[#allocation6 + $0x8] sm:$0xff]
    %v63 = vld [vmem:[#allocation6 + $0x10] sm:$0xff]
    %v64 = vld [vmem:[#allocation6 + $0x20] sm:$0xff]
    %v65 = vld [vmem:[#allocation6 + $0x28] sm:$0xff]
    %v66 = vld [vmem:[#allocation6 + $0x30] sm:$0xff]
    %73 = vrot.lane.b32.xlu0 %v61, 127
    %v74 = vpop.permute.xlu0 %73
    %75 = vrot.lane.b32.xlu0 %v62, 127
    %v76 = vpop.permute.xlu0 %75
    %77 = vrot.lane.b32.xlu0 %v63, 127
    %v78 = vpop.permute.xlu0 %77
    %79 = vrot.lane.b32.xlu0 %v64, 127
    %v80 = vpop.permute.xlu0 %79
    %81 = vrot.lane.b32.xlu0 %v65, 127
    %v82 = vpop.permute.xlu0 %81
    %83 = vrot.lane.b32.xlu0 %v66, 127
    %v84 = vpop.permute.xlu0 %83
    %vm85 = vcmask 1039360
    %v86 = vsel %vm85, %v74, %v76
    %v87 = vsel %vm85, %v76, %v78
    %v88 = vsel %vm85, %v80, %v82
    %v89 = vsel %vm85, %v82, %v84
    %96 = vst [vmem:[#allocation2 + $0x18] sm:$0xff] %v86
    %97 = vst [vmem:[#allocation2 + $0x20] sm:$0xff] %v87
    %98 = vst.msk [vmem:[#allocation2 + $0x28] sm:$0xff] %vm56, %v78
    %99 = vst [vmem:[#allocation2 + $0x4b0] sm:$0xff] %v88
    %100 = vst [vmem:[#allocation2 + $0x4b8] sm:$0xff] %v89
    %101 = vst.msk [vmem:[#allocation2 + $0x4c0] sm:$0xff] %vm56, %v84
    %v102 = vld [vmem:[#allocation6] sm:$0xff]
    %v103 = vld [vmem:[#allocation6 + $0x8] sm:$0xff]
    %v104 = vld [vmem:[#allocation6 + $0x10] sm:$0xff]
    %v105 = vld [vmem:[#allocation6 + $0x20] sm:$0xff]
    %v106 = vld [vmem:[#allocation6 + $0x28] sm:$0xff]
    %v107 = vld [vmem:[#allocation6 + $0x30] sm:$0xff]
    %114 = vrot.lane.b32.xlu0 %v102, 126
    %v115 = vpop.permute.xlu0 %114
    %116 = vrot.lane.b32.xlu0 %v103, 126
    %v117 = vpop.permute.xlu0 %116
    %118 = vrot.lane.b32.xlu0 %v104, 126
    %v119 = vpop.permute.xlu0 %118
    %120 = vrot.lane.b32.xlu0 %v105, 126
    %v121 = vpop.permute.xlu0 %120
    %122 = vrot.lane.b32.xlu0 %v106, 126
    %v123 = vpop.permute.xlu0 %122
    %124 = vrot.lane.b32.xlu0 %v107, 126
    %v125 = vpop.permute.xlu0 %124
    %vm126 = vcmask 1031168
    %v127 = vsel %vm126, %v115, %v117
    %v128 = vsel %vm126, %v117, %v119
    %v129 = vsel %vm126, %v121, %v123
    %v130 = vsel %vm126, %v123, %v125
    %137 = vst [vmem:[#allocation2 + $0x30] sm:$0xff] %v127
    %138 = vst [vmem:[#allocation2 + $0x38] sm:$0xff] %v128
    %139 = vst.msk [vmem:[#allocation2 + $0x40] sm:$0xff] %vm56, %v119
    %140 = vst [vmem:[#allocation2 + $0x4c8] sm:$0xff] %v129
    %141 = vst [vmem:[#allocation2 + $0x4d0] sm:$0xff] %v130
    %142 = vst.msk [vmem:[#allocation2 + $0x4d8] sm:$0xff] %vm56, %v125
    %v143 = vld [vmem:[#allocation6] sm:$0xff]
    %v144 = vld [vmem:[#allocation6 + $0x8] sm:$0xff]
    %v145 = vld [vmem:[#allocation6 + $0x10] sm:$0xff]
    %v146 = vld [vmem:[#allocation6 + $0x20] sm:$0xff]
    %v147 = vld [vmem:[#allocation6 + $0x28] sm:$0xff]
    %v148 = vld [vmem:[#allocation6 + $0x30] sm:$0xff]
    %155 = vrot.lane.b32.xlu0 %v143, 125
    %v156 = vpop.permute.xlu0 %155
    %157 = vrot.lane.b32.xlu0 %v144, 125
    %v158 = vpop.permute.xlu0 %157
    %159 = vrot.lane.b32.xlu0 %v145, 125
    %v160 = vpop.permute.xlu0 %159
    %161 = vrot.lane.b32.xlu0 %v146, 125
    %v162 = vpop.permute.xlu0 %161
    %163 = vrot.lane.b32.xlu0 %v147, 125
    %v164 = vpop.permute.xlu0 %163
    %165 = vrot.lane.b32.xlu0 %v148, 125
    %v166 = vpop.permute.xlu0 %165
    %vm167 = vcmask 1022976
    %v168 = vsel %vm167, %v156, %v158
    %v169 = vsel %vm167, %v158, %v160
    %v170 = vsel %vm167, %v162, %v164
    %v171 = vsel %vm167, %v164, %v166
    %178 = vst [vmem:[#allocation2 + $0x48] sm:$0xff] %v168
    %179 = vst [vmem:[#allocation2 + $0x50] sm:$0xff] %v169
    %180 = vst.msk [vmem:[#allocation2 + $0x58] sm:$0xff] %vm56, %v160
    %181 = vst [vmem:[#allocation2 + $0x4e0] sm:$0xff] %v170
    %182 = vst [vmem:[#allocation2 + $0x4e8] sm:$0xff] %v171
    %183 = vst.msk [vmem:[#allocation2 + $0x4f0] sm:$0xff] %vm56, %v166
    %v184 = vld [vmem:[#allocation6] sm:$0xff]
    %v185 = vld [vmem:[#allocation6 + $0x8] sm:$0xff]
    %v186 = vld [vmem:[#allocation6 + $0x10] sm:$0xff]
    %v187 = vld [vmem:[#allocation6 + $0x20] sm:$0xff]
    %v188 = vld [vmem:[#allocation6 + $0x28] sm:$0xff]
    %v189 = vld [vmem:[#allocation6 + $0x30] sm:$0xff]
    %196 = vrot.lane.b32.xlu0 %v184, 124
    %v197 = vpop.permute.xlu0 %196
    %198 = vrot.lane.b32.xlu0 %v185, 124
    %v199 = vpop.permute.xlu0 %198
    %200 = vrot.lane.b32.xlu0 %v186, 124
    %v201 = vpop.permute.xlu0 %200
    %202 = vrot.lane.b32.xlu0 %v187, 124
    %v203 = vpop.permute.xlu0 %202
    %204 = vrot.lane.b32.xlu0 %v188, 124
    %v205 = vpop.permute.xlu0 %204
    %206 = vrot.lane.b32.xlu0 %v189, 124
    %v207 = vpop.permute.xlu0 %206
    %vm208 = vcmask 1014784
    %v209 = vsel %vm208, %v197, %v199
    %v210 = vsel %vm208, %v199, %v201
    %v211 = vsel %vm208, %v203, %v205
    %v212 = vsel %vm208, %v205, %v207
    %219 = vst [vmem:[#allocation2 + $0x60] sm:$0xff] %v209
    %220 = vst [vmem:[#allocation2 + $0x68] sm:$0xff] %v210
    %221 = vst.msk [vmem:[#allocation2 + $0x70] sm:$0xff] %vm56, %v201
    %222 = vst [vmem:[#allocation2 + $0x4f8] sm:$0xff] %v211
    %223 = vst [vmem:[#allocation2 + $0x500] sm:$0xff] %v212
    %224 = vst.msk [vmem:[#allocation2 + $0x508] sm:$0xff] %vm56, %v207
    %v225 = vld [vmem:[#allocation6] sm:$0xff]
    %v226 = vld [vmem:[#allocation6 + $0x8] sm:$0xff]
    %v227 = vld [vmem:[#allocation6 + $0x10] sm:$0xff]
    %v228 = vld [vmem:[#allocation6 + $0x20] sm:$0xff]
    %v229 = vld [vmem:[#allocation6 + $0x28] sm:$0xff]
    %v230 = vld [vmem:[#allocation6 + $0x30] sm:$0xff]
    %237 = vrot.lane.b32.xlu0 %v225, 123
    %v238 = vpop.permute.xlu0 %237
    %239 = vrot.lane.b32.xlu0 %v226, 123
    %v240 = vpop.permute.xlu0 %239
    %241 = vrot.lane.b32.xlu0 %v227, 123
    %v242 = vpop.permute.xlu0 %241
    %243 = vrot.lane.b32.xlu0 %v228, 123
    %v244 = vpop.permute.xlu0 %243
    %245 = vrot.lane.b32.xlu0 %v229, 123
    %v246 = vpop.permute.xlu0 %245
    %247 = vrot.lane.b32.xlu0 %v230, 123
    %v248 = vpop.permute.xlu0 %247
    %vm249 = vcmask 1006592
    %v250 = vsel %vm249, %v238, %v240
    %v251 = vsel %vm249, %v240, %v242
    %v252 = vsel %vm249, %v244, %v246
    %v253 = vsel %vm249, %v246, %v248
    %260 = vst [vmem:[#allocation2 + $0x78] sm:$0xff] %v250
    %261 = vst [vmem:[#allocation2 + $0x80] sm:$0xff] %v251
    %262 = vst.msk [vmem:[#allocation2 + $0x88] sm:$0xff] %vm56, %v242
    %263 = vst [vmem:[#allocation2 + $0x510] sm:$0xff] %v252
    %264 = vst [vmem:[#allocation2 + $0x518] sm:$0xff] %v253
    %265 = vst.msk [vmem:[#allocation2 + $0x520] sm:$0xff] %vm56, %v248
    %v266 = vld [vmem:[#allocation6] sm:$0xff]
    %v267 = vld [vmem:[#allocation6 + $0x8] sm:$0xff]
    %v268 = vld [vmem:[#allocation6 + $0x10] sm:$0xff]
    %v269 = vld [vmem:[#allocation6 + $0x20] sm:$0xff]
    %v270 = vld [vmem:[#allocation6 + $0x28] sm:$0xff]
    %v271 = vld [vmem:[#allocation6 + $0x30] sm:$0xff]
    %278 = vrot.lane.b32.xlu0 %v266, 122
    %v279 = vpop.permute.xlu0 %278
    %280 = vrot.lane.b32.xlu0 %v267, 122
    %v281 = vpop.permute.xlu0 %280
    %282 = vrot.lane.b32.xlu0 %v268, 122
    %v283 = vpop.permute.xlu0 %282
    %284 = vrot.lane.b32.xlu0 %v269, 122
    %v285 = vpop.permute.xlu0 %284
    %286 = vrot.lane.b32.xlu0 %v270, 122
    %v287 = vpop.permute.xlu0 %286
    %288 = vrot.lane.b32.xlu0 %v271, 122
    %v289 = vpop.permute.xlu0 %288
    %vm290 = vcmask 998400
    %v291 = vsel %vm290, %v279, %v281
    %v292 = vsel %vm290, %v281, %v283
    %v293 = vsel %vm290, %v285, %v287
    %v294 = vsel %vm290, %v287, %v289
    %301 = vst [vmem:[#allocation2 + $0x90] sm:$0xff] %v291
    %302 = vst [vmem:[#allocation2 + $0x98] sm:$0xff] %v292
    %303 = vst.msk [vmem:[#allocation2 + $0xa0] sm:$0xff] %vm56, %v283
    %304 = vst [vmem:[#allocation2 + $0x528] sm:$0xff] %v293
    %305 = vst [vmem:[#allocation2 + $0x530] sm:$0xff] %v294
    %306 = vst.msk [vmem:[#allocation2 + $0x538] sm:$0xff] %vm56, %v289
    %v307 = vld [vmem:[#allocation6] sm:$0xff]
    %v308 = vld [vmem:[#allocation6 + $0x8] sm:$0xff]
    %v309 = vld [vmem:[#allocation6 + $0x10] sm:$0xff]
    %v310 = vld [vmem:[#allocation6 + $0x20] sm:$0xff]
    %v311 = vld [vmem:[#allocation6 + $0x28] sm:$0xff]
    %v312 = vld [vmem:[#allocation6 + $0x30] sm:$0xff]
    %319 = vrot.lane.b32.xlu0 %v307, 106
    %v320 = vpop.permute.xlu0 %319
    %321 = vrot.lane.b32.xlu0 %v308, 106
    %v322 = vpop.permute.xlu0 %321
    %323 = vrot.lane.b32.xlu0 %v309, 106
    %v324 = vpop.permute.xlu0 %323
    %325 = vrot.lane.b32.xlu0 %v310, 106
    %v326 = vpop.permute.xlu0 %325
    %327 = vrot.lane.b32.xlu0 %v311, 106
    %v328 = vpop.permute.xlu0 %327
    %329 = vrot.lane.b32.xlu0 %v312, 106
    %v330 = vpop.permute.xlu0 %329
    %vm331 = vcmask 867328
    %v332 = vsel %vm331, %v320, %v322
    %v333 = vsel %vm331, %v322, %v324
    %v334 = vsel %vm331, %v326, %v328
    %v335 = vsel %vm331, %v328, %v330
    %342 = vst [vmem:[#allocation2 + $0xa8] sm:$0xff] %v332
    %343 = vst [vmem:[#allocation2 + $0xb0] sm:$0xff] %v333
    %344 = vst.msk [vmem:[#allocation2 + $0xb8] sm:$0xff] %vm56, %v324
    %345 = vst [vmem:[#allocation2 + $0x540] sm:$0xff] %v334
    %346 = vst [vmem:[#allocation2 + $0x548] sm:$0xff] %v335
    %347 = vst.msk [vmem:[#allocation2 + $0x550] sm:$0xff] %vm56, %v330
    %v348 = vld [vmem:[#allocation6] sm:$0xff]
    %v349 = vld [vmem:[#allocation6 + $0x8] sm:$0xff]
    %v350 = vld [vmem:[#allocation6 + $0x10] sm:$0xff]
    %v351 = vld [vmem:[#allocation6 + $0x20] sm:$0xff]
    %v352 = vld [vmem:[#allocation6 + $0x28] sm:$0xff]
    %v353 = vld [vmem:[#allocation6 + $0x30] sm:$0xff]
    %360 = vrot.lane.b32.xlu0 %v348, 105
    %v361 = vpop.permute.xlu0 %360
    %362 = vrot.lane.b32.xlu0 %v349, 105
    %v363 = vpop.permute.xlu0 %362
    %364 = vrot.lane.b32.xlu0 %v350, 105
    %v365 = vpop.permute.xlu0 %364
    %366 = vrot.lane.b32.xlu0 %v351, 105
    %v367 = vpop.permute.xlu0 %366
    %368 = vrot.lane.b32.xlu0 %v352, 105
    %v369 = vpop.permute.xlu0 %368
    %370 = vrot.lane.b32.xlu0 %v353, 105
    %v371 = vpop.permute.xlu0 %370
    %vm372 = vcmask 859136
    %v373 = vsel %vm372, %v361, %v363
    %v374 = vsel %vm372, %v363, %v365
    %v375 = vsel %vm372, %v367, %v369
    %v376 = vsel %vm372, %v369, %v371
    %383 = vst [vmem:[#allocation2 + $0xc0] sm:$0xff] %v373
    %384 = vst [vmem:[#allocation2 + $0xc8] sm:$0xff] %v374
    %385 = vst.msk [vmem:[#allocation2 + $0xd0] sm:$0xff] %vm56, %v365
    %386 = vst [vmem:[#allocation2 + $0x558] sm:$0xff] %v375
    %387 = vst [vmem:[#allocation2 + $0x560] sm:$0xff] %v376
    %388 = vst.msk [vmem:[#allocation2 + $0x568] sm:$0xff] %vm56, %v371
    %v389 = vld [vmem:[#allocation6] sm:$0xff]
    %v390 = vld [vmem:[#allocation6 + $0x8] sm:$0xff]
    %v391 = vld [vmem:[#allocation6 + $0x10] sm:$0xff]
    %v392 = vld [vmem:[#allocation6 + $0x20] sm:$0xff]
    %v393 = vld [vmem:[#allocation6 + $0x28] sm:$0xff]
    %v394 = vld [vmem:[#allocation6 + $0x30] sm:$0xff]
    %401 = vrot.lane.b32.xlu0 %v389, 104
    %v402 = vpop.permute.xlu0 %401
    %403 = vrot.lane.b32.xlu0 %v390, 104
    %v404 = vpop.permute.xlu0 %403
    %405 = vrot.lane.b32.xlu0 %v391, 104
    %v406 = vpop.permute.xlu0 %405
    %407 = vrot.lane.b32.xlu0 %v392, 104
    %v408 = vpop.permute.xlu0 %407
    %409 = vrot.lane.b32.xlu0 %v393, 104
    %v410 = vpop.permute.xlu0 %409
    %411 = vrot.lane.b32.xlu0 %v394, 104
    %v412 = vpop.permute.xlu0 %411
    %vm413 = vcmask 850944
    %v414 = vsel %vm413, %v402, %v404
    %v415 = vsel %vm413, %v404, %v406
    %v416 = vsel %vm413, %v408, %v410
    %v417 = vsel %vm413, %v410, %v412
    %424 = vst [vmem:[#allocation2 + $0xd8] sm:$0xff] %v414
    %425 = vst [vmem:[#allocation2 + $0xe0] sm:$0xff] %v415
    %426 = vst.msk [vmem:[#allocation2 + $0xe8] sm:$0xff] %vm56, %v406
    %427 = vst [vmem:[#allocation2 + $0x570] sm:$0xff] %v416
    %428 = vst [vmem:[#allocation2 + $0x578] sm:$0xff] %v417
    %429 = vst.msk [vmem:[#allocation2 + $0x580] sm:$0xff] %vm56, %v412
    %v430 = vld [vmem:[#allocation6] sm:$0xff]
    %v431 = vld [vmem:[#allocation6 + $0x8] sm:$0xff]
    %v432 = vld [vmem:[#allocation6 + $0x10] sm:$0xff]
    %v433 = vld [vmem:[#allocation6 + $0x20] sm:$0xff]
    %v434 = vld [vmem:[#allocation6 + $0x28] sm:$0xff]
    %v435 = vld [vmem:[#allocation6 + $0x30] sm:$0xff]
    %442 = vrot.lane.b32.xlu0 %v430, 103
    %v443 = vpop.permute.xlu0 %442
    %444 = vrot.lane.b32.xlu0 %v431, 103
    %v445 = vpop.permute.xlu0 %444
    %446 = vrot.lane.b32.xlu0 %v432, 103
    %v447 = vpop.permute.xlu0 %446
    %448 = vrot.lane.b32.xlu0 %v433, 103
    %v449 = vpop.permute.xlu0 %448
    %450 = vrot.lane.b32.xlu0 %v434, 103
    %v451 = vpop.permute.xlu0 %450
    %452 = vrot.lane.b32.xlu0 %v435, 103
    %v453 = vpop.permute.xlu0 %452
    %vm454 = vcmask 842752
    %v455 = vsel %vm454, %v443, %v445
    %v456 = vsel %vm454, %v445, %v447
    %v457 = vsel %vm454, %v449, %v451
    %v458 = vsel %vm454, %v451, %v453
    %465 = vst [vmem:[#allocation2 + $0xf0] sm:$0xff] %v455
    %466 = vst [vmem:[#allocation2 + $0xf8] sm:$0xff] %v456
    %467 = vst.msk [vmem:[#allocation2 + $0x100] sm:$0xff] %vm56, %v447
    %468 = vst [vmem:[#allocation2 + $0x588] sm:$0xff] %v457
    %469 = vst [vmem:[#allocation2 + $0x590] sm:$0xff] %v458
    %470 = vst.msk [vmem:[#allocation2 + $0x598] sm:$0xff] %vm56, %v453
    %v471 = vld [vmem:[#allocation6] sm:$0xff]
    %v472 = vld [vmem:[#allocation6 + $0x8] sm:$0xff]
    %v473 = vld [vmem:[#allocation6 + $0x10] sm:$0xff]
    %v474 = vld [vmem:[#allocation6 + $0x20] sm:$0xff]
    %v475 = vld [vmem:[#allocation6 + $0x28] sm:$0xff]
    %v476 = vld [vmem:[#allocation6 + $0x30] sm:$0xff]
    %483 = vrot.lane.b32.xlu0 %v471, 102
    %v484 = vpop.permute.xlu0 %483
    %485 = vrot.lane.b32.xlu0 %v472, 102
    %v486 = vpop.permute.xlu0 %485
    %487 = vrot.lane.b32.xlu0 %v473, 102
    %v488 = vpop.permute.xlu0 %487
    %489 = vrot.lane.b32.xlu0 %v474, 102
    %v490 = vpop.permute.xlu0 %489
    %491 = vrot.lane.b32.xlu0 %v475, 102
    %v492 = vpop.permute.xlu0 %491
    %493 = vrot.lane.b32.xlu0 %v476, 102
    %v494 = vpop.permute.xlu0 %493
    %vm495 = vcmask 834560
    %v496 = vsel %vm495, %v484, %v486
    %v497 = vsel %vm495, %v486, %v488
    %v498 = vsel %vm495, %v490, %v492
    %v499 = vsel %vm495, %v492, %v494
    %506 = vst [vmem:[#allocation2 + $0x108] sm:$0xff] %v496
    %507 = vst [vmem:[#allocation2 + $0x110] sm:$0xff] %v497
    %508 = vst.msk [vmem:[#allocation2 + $0x118] sm:$0xff] %vm56, %v488
    %509 = vst [vmem:[#allocation2 + $0x5a0] sm:$0xff] %v498
    %510 = vst [vmem:[#allocation2 + $0x5a8] sm:$0xff] %v499
    %511 = vst.msk [vmem:[#allocation2 + $0x5b0] sm:$0xff] %vm56, %v494
    %v512 = vld [vmem:[#allocation6] sm:$0xff]
    %v513 = vld [vmem:[#allocation6 + $0x8] sm:$0xff]
    %v514 = vld [vmem:[#allocation6 + $0x10] sm:$0xff]
    %v515 = vld [vmem:[#allocation6 + $0x20] sm:$0xff]
    %v516 = vld [vmem:[#allocation6 + $0x28] sm:$0xff]
    %v517 = vld [vmem:[#allocation6 + $0x30] sm:$0xff]
    %524 = vrot.lane.b32.xlu0 %v512, 101
    %v525 = vpop.permute.xlu0 %524
    %526 = vrot.lane.b32.xlu0 %v513, 101
    %v527 = vpop.permute.xlu0 %526
    %528 = vrot.lane.b32.xlu0 %v514, 101
    %v529 = vpop.permute.xlu0 %528
    %530 = vrot.lane.b32.xlu0 %v515, 101
    %v531 = vpop.permute.xlu0 %530
    %532 = vrot.lane.b32.xlu0 %v516, 101
    %v533 = vpop.permute.xlu0 %532
    %534 = vrot.lane.b32.xlu0 %v517, 101
    %v535 = vpop.permute.xlu0 %534
    %vm536 = vcmask 826368
    %v537 = vsel %vm536, %v525, %v527
    %v538 = vsel %vm536, %v527, %v529
    %v539 = vsel %vm536, %v531, %v533
    %v540 = vsel %vm536, %v533, %v535
    %547 = vst [vmem:[#allocation2 + $0x120] sm:$0xff] %v537
    %548 = vst [vmem:[#allocation2 + $0x128] sm:$0xff] %v538
    %549 = vst.msk [vmem:[#allocation2 + $0x130] sm:$0xff] %vm56, %v529
    %550 = vst [vmem:[#allocation2 + $0x5b8] sm:$0xff] %v539
    %551 = vst [vmem:[#allocation2 + $0x5c0] sm:$0xff] %v540
    %552 = vst.msk [vmem:[#allocation2 + $0x5c8] sm:$0xff] %vm56, %v535
    %v553 = vld [vmem:[#allocation6] sm:$0xff]
    %v554 = vld [vmem:[#allocation6 + $0x8] sm:$0xff]
    %v555 = vld [vmem:[#allocation6 + $0x10] sm:$0xff]
    %v556 = vld [vmem:[#allocation6 + $0x20] sm:$0xff]
    %v557 = vld [vmem:[#allocation6 + $0x28] sm:$0xff]
    %v558 = vld [vmem:[#allocation6 + $0x30] sm:$0xff]
    %565 = vrot.lane.b32.xlu0 %v553, 100
    %v566 = vpop.permute.xlu0 %565
    %567 = vrot.lane.b32.xlu0 %v554, 100
    %v568 = vpop.permute.xlu0 %567
    %569 = vrot.lane.b32.xlu0 %v555, 100
    %v570 = vpop.permute.xlu0 %569
    %571 = vrot.lane.b32.xlu0 %v556, 100
    %v572 = vpop.permute.xlu0 %571
    %573 = vrot.lane.b32.xlu0 %v557, 100
    %v574 = vpop.permute.xlu0 %573
    %575 = vrot.lane.b32.xlu0 %v558, 100
    %v576 = vpop.permute.xlu0 %575
    %vm577 = vcmask 818176
    %v578 = vsel %vm577, %v566, %v568
    %v579 = vsel %vm577, %v568, %v570
    %v580 = vsel %vm577, %v572, %v574
    %v581 = vsel %vm577, %v574, %v576
    %588 = vst [vmem:[#allocation2 + $0x138] sm:$0xff] %v578
    %589 = vst [vmem:[#allocation2 + $0x140] sm:$0xff] %v579
    %590 = vst.msk [vmem:[#allocation2 + $0x148] sm:$0xff] %vm56, %v570
    %591 = vst [vmem:[#allocation2 + $0x5d0] sm:$0xff] %v580
    %592 = vst [vmem:[#allocation2 + $0x5d8] sm:$0xff] %v581
    %593 = vst.msk [vmem:[#allocation2 + $0x5e0] sm:$0xff] %vm56, %v576
    %v594 = vld [vmem:[#allocation6] sm:$0xff]
    %v595 = vld [vmem:[#allocation6 + $0x8] sm:$0xff]
    %v596 = vld [vmem:[#allocation6 + $0x10] sm:$0xff]
    %v597 = vld [vmem:[#allocation6 + $0x18] sm:$0xff]
    %v598 = vld [vmem:[#allocation6 + $0x20] sm:$0xff]
    %v599 = vld [vmem:[#allocation6 + $0x28] sm:$0xff]
    %v600 = vld [vmem:[#allocation6 + $0x30] sm:$0xff]
    %v601 = vld [vmem:[#allocation6 + $0x38] sm:$0xff]
    %610 = vrot.lane.b32.xlu0 %v594, 84
    %v611 = vpop.permute.xlu0 %610
    %612 = vrot.lane.b32.xlu0 %v595, 84
    %v613 = vpop.permute.xlu0 %612
    %614 = vrot.lane.b32.xlu0 %v596, 84
    %v615 = vpop.permute.xlu0 %614
    %616 = vrot.lane.b32.xlu0 %v597, 84
    %v617 = vpop.permute.xlu0 %616
    %618 = vrot.lane.b32.xlu0 %v598, 84
    %v619 = vpop.permute.xlu0 %618
    %620 = vrot.lane.b32.xlu0 %v599, 84
    %v621 = vpop.permute.xlu0 %620
    %622 = vrot.lane.b32.xlu0 %v600, 84
    %v623 = vpop.permute.xlu0 %622
    %624 = vrot.lane.b32.xlu0 %v601, 84
    %v625 = vpop.permute.xlu0 %624
    %vm626 = vcmask 687104
    %v627 = vsel %vm626, %v611, %v613
    %v628 = vsel %vm626, %v613, %v615
    %v629 = vsel %vm626, %v615, %v617
    %v630 = vsel %vm626, %v619, %v621
    %v631 = vsel %vm626, %v621, %v623
    %v632 = vsel %vm626, %v623, %v625
    %639 = vst [vmem:[#allocation2 + $0x150] sm:$0xff] %v627
    %640 = vst [vmem:[#allocation2 + $0x158] sm:$0xff] %v628
    %641 = vst.msk [vmem:[#allocation2 + $0x160] sm:$0xff] %vm56, %v629
    %642 = vst [vmem:[#allocation2 + $0x5e8] sm:$0xff] %v630
    %643 = vst [vmem:[#allocation2 + $0x5f0] sm:$0xff] %v631
    %644 = vst.msk [vmem:[#allocation2 + $0x5f8] sm:$0xff] %vm56, %v632
    %v645 = vld [vmem:[#allocation6] sm:$0xff]
    %v646 = vld [vmem:[#allocation6 + $0x8] sm:$0xff]
    %v647 = vld [vmem:[#allocation6 + $0x10] sm:$0xff]
    %v648 = vld [vmem:[#allocation6 + $0x18] sm:$0xff]
    %v649 = vld [vmem:[#allocation6 + $0x20] sm:$0xff]
    %v650 = vld [vmem:[#allocation6 + $0x28] sm:$0xff]
    %v651 = vld [vmem:[#allocation6 + $0x30] sm:$0xff]
    %v652 = vld [vmem:[#allocation6 + $0x38] sm:$0xff]
    %661 = vrot.lane.b32.xlu0 %v645, 83
    %v662 = vpop.permute.xlu0 %661
    %663 = vrot.lane.b32.xlu0 %v646, 83
    %v664 = vpop.permute.xlu0 %663
    %665 = vrot.lane.b32.xlu0 %v647, 83
    %v666 = vpop.permute.xlu0 %665
    %667 = vrot.lane.b32.xlu0 %v648, 83
    %v668 = vpop.permute.xlu0 %667
    %669 = vrot.lane.b32.xlu0 %v649, 83
    %v670 = vpop.permute.xlu0 %669
    %671 = vrot.lane.b32.xlu0 %v650, 83
    %v672 = vpop.permute.xlu0 %671
    %673 = vrot.lane.b32.xlu0 %v651, 83
    %v674 = vpop.permute.xlu0 %673
    %675 = vrot.lane.b32.xlu0 %v652, 83
    %v676 = vpop.permute.xlu0 %675
    %vm677 = vcmask 678912
    %v678 = vsel %vm677, %v662, %v664
    %v679 = vsel %vm677, %v664, %v666
    %v680 = vsel %vm677, %v666, %v668
    %v681 = vsel %vm677, %v670, %v672
    %v682 = vsel %vm677, %v672, %v674
    %v683 = vsel %vm677, %v674, %v676
    %690 = vst [vmem:[#allocation2 + $0x168] sm:$0xff] %v678
    %691 = vst [vmem:[#allocation2 + $0x170] sm:$0xff] %v679
    %692 = vst.msk [vmem:[#allocation2 + $0x178] sm:$0xff] %vm56, %v680
    %693 = vst [vmem:[#allocation2 + $0x600] sm:$0xff] %v681
    %694 = vst [vmem:[#allocation2 + $0x608] sm:$0xff] %v682
    %695 = vst.msk [vmem:[#allocation2 + $0x610] sm:$0xff] %vm56, %v683
    %v696 = vld [vmem:[#allocation6] sm:$0xff]
    %v697 = vld [vmem:[#allocation6 + $0x8] sm:$0xff]
    %v698 = vld [vmem:[#allocation6 + $0x10] sm:$0xff]
    %v699 = vld [vmem:[#allocation6 + $0x18] sm:$0xff]
    %v700 = vld [vmem:[#allocation6 + $0x20] sm:$0xff]
    %v701 = vld [vmem:[#allocation6 + $0x28] sm:$0xff]
    %v702 = vld [vmem:[#allocation6 + $0x30] sm:$0xff]
    %v703 = vld [vmem:[#allocation6 + $0x38] sm:$0xff]
    %712 = vrot.lane.b32.xlu0 %v696, 82
    %v713 = vpop.permute.xlu0 %712
    %714 = vrot.lane.b32.xlu0 %v697, 82
    %v715 = vpop.permute.xlu0 %714
    %716 = vrot.lane.b32.xlu0 %v698, 82
    %v717 = vpop.permute.xlu0 %716
    %718 = vrot.lane.b32.xlu0 %v699, 82
    %v719 = vpop.permute.xlu0 %718
    %720 = vrot.lane.b32.xlu0 %v700, 82
    %v721 = vpop.permute.xlu0 %720
    %722 = vrot.lane.b32.xlu0 %v701, 82
    %v723 = vpop.permute.xlu0 %722
    %724 = vrot.lane.b32.xlu0 %v702, 82
    %v725 = vpop.permute.xlu0 %724
    %726 = vrot.lane.b32.xlu0 %v703, 82
    %v727 = vpop.permute.xlu0 %726
    %vm728 = vcmask 670720
    %v729 = vsel %vm728, %v713, %v715
    %v730 = vsel %vm728, %v715, %v717
    %v731 = vsel %vm728, %v717, %v719
    %v732 = vsel %vm728, %v721, %v723
    %v733 = vsel %vm728, %v723, %v725
    %v734 = vsel %vm728, %v725, %v727
    %741 = vst [vmem:[#allocation2 + $0x180] sm:$0xff] %v729
    %742 = vst [vmem:[#allocation2 + $0x188] sm:$0xff] %v730
    %743 = vst.msk [vmem:[#allocation2 + $0x190] sm:$0xff] %vm56, %v731
    %744 = vst [vmem:[#allocation2 + $0x618] sm:$0xff] %v732
    %745 = vst [vmem:[#allocation2 + $0x620] sm:$0xff] %v733
    %746 = vst.msk [vmem:[#allocation2 + $0x628] sm:$0xff] %vm56, %v734
    %v747 = vld [vmem:[#allocation6] sm:$0xff]
    %v748 = vld [vmem:[#allocation6 + $0x8] sm:$0xff]
    %v749 = vld [vmem:[#allocation6 + $0x10] sm:$0xff]
    %v750 = vld [vmem:[#allocation6 + $0x18] sm:$0xff]
    %v751 = vld [vmem:[#allocation6 + $0x20] sm:$0xff]
    %v752 = vld [vmem:[#allocation6 + $0x28] sm:$0xff]
    %v753 = vld [vmem:[#allocation6 + $0x30] sm:$0xff]
    %v754 = vld [vmem:[#allocation6 + $0x38] sm:$0xff]
    %763 = vrot.lane.b32.xlu0 %v747, 81
    %v764 = vpop.permute.xlu0 %763
    %765 = vrot.lane.b32.xlu0 %v748, 81
    %v766 = vpop.permute.xlu0 %765
    %767 = vrot.lane.b32.xlu0 %v749, 81
    %v768 = vpop.permute.xlu0 %767
    %769 = vrot.lane.b32.xlu0 %v750, 81
    %v770 = vpop.permute.xlu0 %769
    %771 = vrot.lane.b32.xlu0 %v751, 81
    %v772 = vpop.permute.xlu0 %771
    %773 = vrot.lane.b32.xlu0 %v752, 81
    %v774 = vpop.permute.xlu0 %773
    %775 = vrot.lane.b32.xlu0 %v753, 81
    %v776 = vpop.permute.xlu0 %775
    %777 = vrot.lane.b32.xlu0 %v754, 81
    %v778 = vpop.permute.xlu0 %777
    %vm779 = vcmask 662528
    %v780 = vsel %vm779, %v764, %v766
    %v781 = vsel %vm779, %v766, %v768
    %v782 = vsel %vm779, %v768, %v770
    %v783 = vsel %vm779, %v772, %v774
    %v784 = vsel %vm779, %v774, %v776
    %v785 = vsel %vm779, %v776, %v778
    %792 = vst [vmem:[#allocation2 + $0x198] sm:$0xff] %v780
    %793 = vst [vmem:[#allocation2 + $0x1a0] sm:$0xff] %v781
    %794 = vst.msk [vmem:[#allocation2 + $0x1a8] sm:$0xff] %vm56, %v782
    %795 = vst [vmem:[#allocation2 + $0x630] sm:$0xff] %v783
    %796 = vst [vmem:[#allocation2 + $0x638] sm:$0xff] %v784
    %797 = vst.msk [vmem:[#allocation2 + $0x640] sm:$0xff] %vm56, %v785
    %v798 = vld [vmem:[#allocation6] sm:$0xff]
    %v799 = vld [vmem:[#allocation6 + $0x8] sm:$0xff]
    %v800 = vld [vmem:[#allocation6 + $0x10] sm:$0xff]
    %v801 = vld [vmem:[#allocation6 + $0x18] sm:$0xff]
    %v802 = vld [vmem:[#allocation6 + $0x20] sm:$0xff]
    %v803 = vld [vmem:[#allocation6 + $0x28] sm:$0xff]
    %v804 = vld [vmem:[#allocation6 + $0x30] sm:$0xff]
    %v805 = vld [vmem:[#allocation6 + $0x38] sm:$0xff]
    %814 = vrot.lane.b32.xlu0 %v798, 80
    %v815 = vpop.permute.xlu0 %814
    %816 = vrot.lane.b32.xlu0 %v799, 80
    %v817 = vpop.permute.xlu0 %816
    %818 = vrot.lane.b32.xlu0 %v800, 80
    %v819 = vpop.permute.xlu0 %818
    %820 = vrot.lane.b32.xlu0 %v801, 80
    %v821 = vpop.permute.xlu0 %820
    %822 = vrot.lane.b32.xlu0 %v802, 80
    %v823 = vpop.permute.xlu0 %822
    %824 = vrot.lane.b32.xlu0 %v803, 80
    %v825 = vpop.permute.xlu0 %824
    %826 = vrot.lane.b32.xlu0 %v804, 80
    %v827 = vpop.permute.xlu0 %826
    %828 = vrot.lane.b32.xlu0 %v805, 80
    %v829 = vpop.permute.xlu0 %828
    %vm830 = vcmask 654336
    %v831 = vsel %vm830, %v815, %v817
    %v832 = vsel %vm830, %v817, %v819
    %v833 = vsel %vm830, %v819, %v821
    %v834 = vsel %vm830, %v823, %v825
    %v835 = vsel %vm830, %v825, %v827
    %v836 = vsel %vm830, %v827, %v829
    %843 = vst [vmem:[#allocation2 + $0x1b0] sm:$0xff] %v831
    %844 = vst [vmem:[#allocation2 + $0x1b8] sm:$0xff] %v832
    %845 = vst.msk [vmem:[#allocation2 + $0x1c0] sm:$0xff] %vm56, %v833
    %846 = vst [vmem:[#allocation2 + $0x648] sm:$0xff] %v834
    %847 = vst [vmem:[#allocation2 + $0x650] sm:$0xff] %v835
    %848 = vst.msk [vmem:[#allocation2 + $0x658] sm:$0xff] %vm56, %v836
    %v849 = vld [vmem:[#allocation6] sm:$0xff]
    %v850 = vld [vmem:[#allocation6 + $0x8] sm:$0xff]
    %v851 = vld [vmem:[#allocation6 + $0x10] sm:$0xff]
    %v852 = vld [vmem:[#allocation6 + $0x18] sm:$0xff]
    %v853 = vld [vmem:[#allocation6 + $0x20] sm:$0xff]
    %v854 = vld [vmem:[#allocation6 + $0x28] sm:$0xff]
    %v855 = vld [vmem:[#allocation6 + $0x30] sm:$0xff]
    %v856 = vld [vmem:[#allocation6 + $0x38] sm:$0xff]
    %865 = vrot.lane.b32.xlu0 %v849, 79
    %v866 = vpop.permute.xlu0 %865
    %867 = vrot.lane.b32.xlu0 %v850, 79
    %v868 = vpop.permute.xlu0 %867
    %869 = vrot.lane.b32.xlu0 %v851, 79
    %v870 = vpop.permute.xlu0 %869
    %871 = vrot.lane.b32.xlu0 %v852, 79
    %v872 = vpop.permute.xlu0 %871
    %873 = vrot.lane.b32.xlu0 %v853, 79
    %v874 = vpop.permute.xlu0 %873
    %875 = vrot.lane.b32.xlu0 %v854, 79
    %v876 = vpop.permute.xlu0 %875
    %877 = vrot.lane.b32.xlu0 %v855, 79
    %v878 = vpop.permute.xlu0 %877
    %879 = vrot.lane.b32.xlu0 %v856, 79
    %v880 = vpop.permute.xlu0 %879
    %vm881 = vcmask 646144
    %v882 = vsel %vm881, %v866, %v868
    %v883 = vsel %vm881, %v868, %v870
    %v884 = vsel %vm881, %v870, %v872
    %v885 = vsel %vm881, %v874, %v876
    %v886 = vsel %vm881, %v876, %v878
    %v887 = vsel %vm881, %v878, %v880
    %894 = vst [vmem:[#allocation2 + $0x1c8] sm:$0xff] %v882
    %895 = vst [vmem:[#allocation2 + $0x1d0] sm:$0xff] %v883
    %896 = vst.msk [vmem:[#allocation2 + $0x1d8] sm:$0xff] %vm56, %v884
    %897 = vst [vmem:[#allocation2 + $0x660] sm:$0xff] %v885
    %898 = vst [vmem:[#allocation2 + $0x668] sm:$0xff] %v886
    %899 = vst.msk [vmem:[#allocation2 + $0x670] sm:$0xff] %vm56, %v887
    %v900 = vld [vmem:[#allocation6] sm:$0xff]
    %v901 = vld [vmem:[#allocation6 + $0x8] sm:$0xff]
    %v902 = vld [vmem:[#allocation6 + $0x10] sm:$0xff]
    %v903 = vld [vmem:[#allocation6 + $0x18] sm:$0xff]
    %v904 = vld [vmem:[#allocation6 + $0x20] sm:$0xff]
    %v905 = vld [vmem:[#allocation6 + $0x28] sm:$0xff]
    %v906 = vld [vmem:[#allocation6 + $0x30] sm:$0xff]
    %v907 = vld [vmem:[#allocation6 + $0x38] sm:$0xff]
    %916 = vrot.lane.b32.xlu0 %v900, 78
    %v917 = vpop.permute.xlu0 %916
    %918 = vrot.lane.b32.xlu0 %v901, 78
    %v919 = vpop.permute.xlu0 %918
    %920 = vrot.lane.b32.xlu0 %v902, 78
    %v921 = vpop.permute.xlu0 %920
    %922 = vrot.lane.b32.xlu0 %v903, 78
    %v923 = vpop.permute.xlu0 %922
    %924 = vrot.lane.b32.xlu0 %v904, 78
    %v925 = vpop.permute.xlu0 %924
    %926 = vrot.lane.b32.xlu0 %v905, 78
    %v927 = vpop.permute.xlu0 %926
    %928 = vrot.lane.b32.xlu0 %v906, 78
    %v929 = vpop.permute.xlu0 %928
    %930 = vrot.lane.b32.xlu0 %v907, 78
    %v931 = vpop.permute.xlu0 %930
    %vm932 = vcmask 637952
    %v933 = vsel %vm932, %v917, %v919
    %v934 = vsel %vm932, %v919, %v921
    %v935 = vsel %vm932, %v921, %v923
    %v936 = vsel %vm932, %v925, %v927
    %v937 = vsel %vm932, %v927, %v929
    %v938 = vsel %vm932, %v929, %v931
    %945 = vst [vmem:[#allocation2 + $0x1e0] sm:$0xff] %v933
    %946 = vst [vmem:[#allocation2 + $0x1e8] sm:$0xff] %v934
    %947 = vst.msk [vmem:[#allocation2 + $0x1f0] sm:$0xff] %vm56, %v935
    %948 = vst [vmem:[#allocation2 + $0x678] sm:$0xff] %v936
    %949 = vst [vmem:[#allocation2 + $0x680] sm:$0xff] %v937
    %950 = vst.msk [vmem:[#allocation2 + $0x688] sm:$0xff] %vm56, %v938
    %v951 = vld [vmem:[#allocation6] sm:$0xff]
    %v952 = vld [vmem:[#allocation6 + $0x8] sm:$0xff]
    %v953 = vld [vmem:[#allocation6 + $0x10] sm:$0xff]
    %v954 = vld [vmem:[#allocation6 + $0x18] sm:$0xff]
    %v955 = vld [vmem:[#allocation6 + $0x20] sm:$0xff]
    %v956 = vld [vmem:[#allocation6 + $0x28] sm:$0xff]
    %v957 = vld [vmem:[#allocation6 + $0x30] sm:$0xff]
    %v958 = vld [vmem:[#allocation6 + $0x38] sm:$0xff]
    %967 = vrot.lane.b32.xlu0 %v951, 62
    %v968 = vpop.permute.xlu0 %967
    %969 = vrot.lane.b32.xlu0 %v952, 62
    %v970 = vpop.permute.xlu0 %969
    %971 = vrot.lane.b32.xlu0 %v953, 62
    %v972 = vpop.permute.xlu0 %971
    %973 = vrot.lane.b32.xlu0 %v954, 62
    %v974 = vpop.permute.xlu0 %973
    %975 = vrot.lane.b32.xlu0 %v955, 62
    %v976 = vpop.permute.xlu0 %975
    %977 = vrot.lane.b32.xlu0 %v956, 62
    %v978 = vpop.permute.xlu0 %977
    %979 = vrot.lane.b32.xlu0 %v957, 62
    %v980 = vpop.permute.xlu0 %979
    %981 = vrot.lane.b32.xlu0 %v958, 62
    %v982 = vpop.permute.xlu0 %981
    %vm983 = vcmask 506880
    %v984 = vsel %vm983, %v968, %v970
    %v985 = vsel %vm983, %v970, %v972
    %v986 = vsel %vm983, %v972, %v974
    %v987 = vsel %vm983, %v976, %v978
    %v988 = vsel %vm983, %v978, %v980
    %v989 = vsel %vm983, %v980, %v982
    %996 = vst [vmem:[#allocation2 + $0x1f8] sm:$0xff] %v984
    %997 = vst [vmem:[#allocation2 + $0x200] sm:$0xff] %v985
    %998 = vst.msk [vmem:[#allocation2 + $0x208] sm:$0xff] %vm56, %v986
    %999 = vst [vmem:[#allocation2 + $0x690] sm:$0xff] %v987
    %1000 = vst [vmem:[#allocation2 + $0x698] sm:$0xff] %v988
    %1001 = vst.msk [vmem:[#allocation2 + $0x6a0] sm:$0xff] %vm56, %v989
    %v1002 = vld [vmem:[#allocation6] sm:$0xff]
    %v1003 = vld [vmem:[#allocation6 + $0x8] sm:$0xff]
    %v1004 = vld [vmem:[#allocation6 + $0x10] sm:$0xff]
    %v1005 = vld [vmem:[#allocation6 + $0x18] sm:$0xff]
    %v1006 = vld [vmem:[#allocation6 + $0x20] sm:$0xff]
    %v1007 = vld [vmem:[#allocation6 + $0x28] sm:$0xff]
    %v1008 = vld [vmem:[#allocation6 + $0x30] sm:$0xff]
    %v1009 = vld [vmem:[#allocation6 + $0x38] sm:$0xff]
    %1018 = vrot.lane.b32.xlu0 %v1002, 61
    %v1019 = vpop.permute.xlu0 %1018
    %1020 = vrot.lane.b32.xlu0 %v1003, 61
    %v1021 = vpop.permute.xlu0 %1020
    %1022 = vrot.lane.b32.xlu0 %v1004, 61
    %v1023 = vpop.permute.xlu0 %1022
    %1024 = vrot.lane.b32.xlu0 %v1005, 61
    %v1025 = vpop.permute.xlu0 %1024
    %1026 = vrot.lane.b32.xlu0 %v1006, 61
    %v1027 = vpop.permute.xlu0 %1026
    %1028 = vrot.lane.b32.xlu0 %v1007, 61
    %v1029 = vpop.permute.xlu0 %1028
    %1030 = vrot.lane.b32.xlu0 %v1008, 61
    %v1031 = vpop.permute.xlu0 %1030
    %1032 = vrot.lane.b32.xlu0 %v1009, 61
    %v1033 = vpop.permute.xlu0 %1032
    %vm1034 = vcmask 498688
    %v1035 = vsel %vm1034, %v1019, %v1021
    %v1036 = vsel %vm1034, %v1021, %v1023
    %v1037 = vsel %vm1034, %v1023, %v1025
    %v1038 = vsel %vm1034, %v1027, %v1029
    %v1039 = vsel %vm1034, %v1029, %v1031
    %v1040 = vsel %vm1034, %v1031, %v1033
    %1047 = vst [vmem:[#allocation2 + $0x210] sm:$0xff] %v1035
    %1048 = vst [vmem:[#allocation2 + $0x218] sm:$0xff] %v1036
    %1049 = vst.msk [vmem:[#allocation2 + $0x220] sm:$0xff] %vm56, %v1037
    %1050 = vst [vmem:[#allocation2 + $0x6a8] sm:$0xff] %v1038
    %1051 = vst [vmem:[#allocation2 + $0x6b0] sm:$0xff] %v1039
    %1052 = vst.msk [vmem:[#allocation2 + $0x6b8] sm:$0xff] %vm56, %v1040
    %v1053 = vld [vmem:[#allocation6] sm:$0xff]
    %v1054 = vld [vmem:[#allocation6 + $0x8] sm:$0xff]
    %v1055 = vld [vmem:[#allocation6 + $0x10] sm:$0xff]
    %v1056 = vld [vmem:[#allocation6 + $0x18] sm:$0xff]
    %v1057 = vld [vmem:[#allocation6 + $0x20] sm:$0xff]
    %v1058 = vld [vmem:[#allocation6 + $0x28] sm:$0xff]
    %v1059 = vld [vmem:[#allocation6 + $0x30] sm:$0xff]
    %v1060 = vld [vmem:[#allocation6 + $0x38] sm:$0xff]
    %1069 = vrot.lane.b32.xlu0 %v1053, 60
    %v1070 = vpop.permute.xlu0 %1069
    %1071 = vrot.lane.b32.xlu0 %v1054, 60
    %v1072 = vpop.permute.xlu0 %1071
    %1073 = vrot.lane.b32.xlu0 %v1055, 60
    %v1074 = vpop.permute.xlu0 %1073
    %1075 = vrot.lane.b32.xlu0 %v1056, 60
    %v1076 = vpop.permute.xlu0 %1075
    %1077 = vrot.lane.b32.xlu0 %v1057, 60
    %v1078 = vpop.permute.xlu0 %1077
    %1079 = vrot.lane.b32.xlu0 %v1058, 60
    %v1080 = vpop.permute.xlu0 %1079
    %1081 = vrot.lane.b32.xlu0 %v1059, 60
    %v1082 = vpop.permute.xlu0 %1081
    %1083 = vrot.lane.b32.xlu0 %v1060, 60
    %v1084 = vpop.permute.xlu0 %1083
    %vm1085 = vcmask 490496
    %v1086 = vsel %vm1085, %v1070, %v1072
    %v1087 = vsel %vm1085, %v1072, %v1074
    %v1088 = vsel %vm1085, %v1074, %v1076
    %v1089 = vsel %vm1085, %v1078, %v1080
    %v1090 = vsel %vm1085, %v1080, %v1082
    %v1091 = vsel %vm1085, %v1082, %v1084
    %1098 = vst [vmem:[#allocation2 + $0x228] sm:$0xff] %v1086
    %1099 = vst [vmem:[#allocation2 + $0x230] sm:$0xff] %v1087
    %1100 = vst.msk [vmem:[#allocation2 + $0x238] sm:$0xff] %vm56, %v1088
    %1101 = vst [vmem:[#allocation2 + $0x6c0] sm:$0xff] %v1089
    %1102 = vst [vmem:[#allocation2 + $0x6c8] sm:$0xff] %v1090
    %1103 = vst.msk [vmem:[#allocation2 + $0x6d0] sm:$0xff] %vm56, %v1091
    %v1104 = vld [vmem:[#allocation6] sm:$0xff]
    %v1105 = vld [vmem:[#allocation6 + $0x8] sm:$0xff]
    %v1106 = vld [vmem:[#allocation6 + $0x10] sm:$0xff]
    %v1107 = vld [vmem:[#allocation6 + $0x18] sm:$0xff]
    %v1108 = vld [vmem:[#allocation6 + $0x20] sm:$0xff]
    %v1109 = vld [vmem:[#allocation6 + $0x28] sm:$0xff]
    %v1110 = vld [vmem:[#allocation6 + $0x30] sm:$0xff]
    %v1111 = vld [vmem:[#allocation6 + $0x38] sm:$0xff]
    %1120 = vrot.lane.b32.xlu0 %v1104, 59
    %v1121 = vpop.permute.xlu0 %1120
    %1122 = vrot.lane.b32.xlu0 %v1105, 59
    %v1123 = vpop.permute.xlu0 %1122
    %1124 = vrot.lane.b32.xlu0 %v1106, 59
    %v1125 = vpop.permute.xlu0 %1124
    %1126 = vrot.lane.b32.xlu0 %v1107, 59
    %v1127 = vpop.permute.xlu0 %1126
    %1128 = vrot.lane.b32.xlu0 %v1108, 59
    %v1129 = vpop.permute.xlu0 %1128
    %1130 = vrot.lane.b32.xlu0 %v1109, 59
    %v1131 = vpop.permute.xlu0 %1130
    %1132 = vrot.lane.b32.xlu0 %v1110, 59
    %v1133 = vpop.permute.xlu0 %1132
    %1134 = vrot.lane.b32.xlu0 %v1111, 59
    %v1135 = vpop.permute.xlu0 %1134
    %vm1136 = vcmask 482304
    %v1137 = vsel %vm1136, %v1121, %v1123
    %v1138 = vsel %vm1136, %v1123, %v1125
    %v1139 = vsel %vm1136, %v1125, %v1127
    %v1140 = vsel %vm1136, %v1129, %v1131
    %v1141 = vsel %vm1136, %v1131, %v1133
    %v1142 = vsel %vm1136, %v1133, %v1135
    %1149 = vst [vmem:[#allocation2 + $0x240] sm:$0xff] %v1137
    %1150 = vst [vmem:[#allocation2 + $0x248] sm:$0xff] %v1138
    %1151 = vst.msk [vmem:[#allocation2 + $0x250] sm:$0xff] %vm56, %v1139
    %1152 = vst [vmem:[#allocation2 + $0x6d8] sm:$0xff] %v1140
    %1153 = vst [vmem:[#allocation2 + $0x6e0] sm:$0xff] %v1141
    %1154 = vst.msk [vmem:[#allocation2 + $0x6e8] sm:$0xff] %vm56, %v1142
    %v1155 = vld [vmem:[#allocation6] sm:$0xff]
    %v1156 = vld [vmem:[#allocation6 + $0x8] sm:$0xff]
    %v1157 = vld [vmem:[#allocation6 + $0x10] sm:$0xff]
    %v1158 = vld [vmem:[#allocation6 + $0x18] sm:$0xff]
    %v1159 = vld [vmem:[#allocation6 + $0x20] sm:$0xff]
    %v1160 = vld [vmem:[#allocation6 + $0x28] sm:$0xff]
    %v1161 = vld [vmem:[#allocation6 + $0x30] sm:$0xff]
    %v1162 = vld [vmem:[#allocation6 + $0x38] sm:$0xff]
    %1171 = vrot.lane.b32.xlu0 %v1155, 58
    %v1172 = vpop.permute.xlu0 %1171
    %1173 = vrot.lane.b32.xlu0 %v1156, 58
    %v1174 = vpop.permute.xlu0 %1173
    %1175 = vrot.lane.b32.xlu0 %v1157, 58
    %v1176 = vpop.permute.xlu0 %1175
    %1177 = vrot.lane.b32.xlu0 %v1158, 58
    %v1178 = vpop.permute.xlu0 %1177
    %1179 = vrot.lane.b32.xlu0 %v1159, 58
    %v1180 = vpop.permute.xlu0 %1179
    %1181 = vrot.lane.b32.xlu0 %v1160, 58
    %v1182 = vpop.permute.xlu0 %1181
    %1183 = vrot.lane.b32.xlu0 %v1161, 58
    %v1184 = vpop.permute.xlu0 %1183
    %1185 = vrot.lane.b32.xlu0 %v1162, 58
    %v1186 = vpop.permute.xlu0 %1185
    %vm1187 = vcmask 474112
    %v1188 = vsel %vm1187, %v1172, %v1174
    %v1189 = vsel %vm1187, %v1174, %v1176
    %v1190 = vsel %vm1187, %v1176, %v1178
    %v1191 = vsel %vm1187, %v1180, %v1182
    %v1192 = vsel %vm1187, %v1182, %v1184
    %v1193 = vsel %vm1187, %v1184, %v1186
    %1200 = vst [vmem:[#allocation2 + $0x258] sm:$0xff] %v1188
    %1201 = vst [vmem:[#allocation2 + $0x260] sm:$0xff] %v1189
    %1202 = vst.msk [vmem:[#allocation2 + $0x268] sm:$0xff] %vm56, %v1190
    %1203 = vst [vmem:[#allocation2 + $0x6f0] sm:$0xff] %v1191
    %1204 = vst [vmem:[#allocation2 + $0x6f8] sm:$0xff] %v1192
    %1205 = vst.msk [vmem:[#allocation2 + $0x700] sm:$0xff] %vm56, %v1193
    %v1206 = vld [vmem:[#allocation6] sm:$0xff]
    %v1207 = vld [vmem:[#allocation6 + $0x8] sm:$0xff]
    %v1208 = vld [vmem:[#allocation6 + $0x10] sm:$0xff]
    %v1209 = vld [vmem:[#allocation6 + $0x18] sm:$0xff]
    %v1210 = vld [vmem:[#allocation6 + $0x20] sm:$0xff]
    %v1211 = vld [vmem:[#allocation6 + $0x28] sm:$0xff]
    %v1212 = vld [vmem:[#allocation6 + $0x30] sm:$0xff]
    %v1213 = vld [vmem:[#allocation6 + $0x38] sm:$0xff]
    %1222 = vrot.lane.b32.xlu0 %v1206, 57
    %v1223 = vpop.permute.xlu0 %1222
    %1224 = vrot.lane.b32.xlu0 %v1207, 57
    %v1225 = vpop.permute.xlu0 %1224
    %1226 = vrot.lane.b32.xlu0 %v1208, 57
    %v1227 = vpop.permute.xlu0 %1226
    %1228 = vrot.lane.b32.xlu0 %v1209, 57
    %v1229 = vpop.permute.xlu0 %1228
    %1230 = vrot.lane.b32.xlu0 %v1210, 57
    %v1231 = vpop.permute.xlu0 %1230
    %1232 = vrot.lane.b32.xlu0 %v1211, 57
    %v1233 = vpop.permute.xlu0 %1232
    %1234 = vrot.lane.b32.xlu0 %v1212, 57
    %v1235 = vpop.permute.xlu0 %1234
    %1236 = vrot.lane.b32.xlu0 %v1213, 57
    %v1237 = vpop.permute.xlu0 %1236
    %vm1238 = vcmask 465920
    %v1239 = vsel %vm1238, %v1223, %v1225
    %v1240 = vsel %vm1238, %v1225, %v1227
    %v1241 = vsel %vm1238, %v1227, %v1229
    %v1242 = vsel %vm1238, %v1231, %v1233
    %v1243 = vsel %vm1238, %v1233, %v1235
    %v1244 = vsel %vm1238, %v1235, %v1237
    %1251 = vst [vmem:[#allocation2 + $0x270] sm:$0xff] %v1239
    %1252 = vst [vmem:[#allocation2 + $0x278] sm:$0xff] %v1240
    %1253 = vst.msk [vmem:[#allocation2 + $0x280] sm:$0xff] %vm56, %v1241
    %1254 = vst [vmem:[#allocation2 + $0x708] sm:$0xff] %v1242
    %1255 = vst [vmem:[#allocation2 + $0x710] sm:$0xff] %v1243
    %1256 = vst.msk [vmem:[#allocation2 + $0x718] sm:$0xff] %vm56, %v1244
    %v1257 = vld [vmem:[#allocation6] sm:$0xff]
    %v1258 = vld [vmem:[#allocation6 + $0x8] sm:$0xff]
    %v1259 = vld [vmem:[#allocation6 + $0x10] sm:$0xff]
    %v1260 = vld [vmem:[#allocation6 + $0x18] sm:$0xff]
    %v1261 = vld [vmem:[#allocation6 + $0x20] sm:$0xff]
    %v1262 = vld [vmem:[#allocation6 + $0x28] sm:$0xff]
    %v1263 = vld [vmem:[#allocation6 + $0x30] sm:$0xff]
    %v1264 = vld [vmem:[#allocation6 + $0x38] sm:$0xff]
    %1273 = vrot.lane.b32.xlu0 %v1257, 56
    %v1274 = vpop.permute.xlu0 %1273
    %1275 = vrot.lane.b32.xlu0 %v1258, 56
    %v1276 = vpop.permute.xlu0 %1275
    %1277 = vrot.lane.b32.xlu0 %v1259, 56
    %v1278 = vpop.permute.xlu0 %1277
    %1279 = vrot.lane.b32.xlu0 %v1260, 56
    %v1280 = vpop.permute.xlu0 %1279
    %1281 = vrot.lane.b32.xlu0 %v1261, 56
    %v1282 = vpop.permute.xlu0 %1281
    %1283 = vrot.lane.b32.xlu0 %v1262, 56
    %v1284 = vpop.permute.xlu0 %1283
    %1285 = vrot.lane.b32.xlu0 %v1263, 56
    %v1286 = vpop.permute.xlu0 %1285
    %1287 = vrot.lane.b32.xlu0 %v1264, 56
    %v1288 = vpop.permute.xlu0 %1287
    %vm1289 = vcmask 457728
    %v1290 = vsel %vm1289, %v1274, %v1276
    %v1291 = vsel %vm1289, %v1276, %v1278
    %v1292 = vsel %vm1289, %v1278, %v1280
    %v1293 = vsel %vm1289, %v1282, %v1284
    %v1294 = vsel %vm1289, %v1284, %v1286
    %v1295 = vsel %vm1289, %v1286, %v1288
    %1302 = vst [vmem:[#allocation2 + $0x288] sm:$0xff] %v1290
    %1303 = vst [vmem:[#allocation2 + $0x290] sm:$0xff] %v1291
    %1304 = vst.msk [vmem:[#allocation2 + $0x298] sm:$0xff] %vm56, %v1292
    %1305 = vst [vmem:[#allocation2 + $0x720] sm:$0xff] %v1293
    %1306 = vst [vmem:[#allocation2 + $0x728] sm:$0xff] %v1294
    %1307 = vst.msk [vmem:[#allocation2 + $0x730] sm:$0xff] %vm56, %v1295
    %v1308 = vld [vmem:[#allocation6] sm:$0xff]
    %v1309 = vld [vmem:[#allocation6 + $0x8] sm:$0xff]
    %v1310 = vld [vmem:[#allocation6 + $0x10] sm:$0xff]
    %v1311 = vld [vmem:[#allocation6 + $0x18] sm:$0xff]
    %v1312 = vld [vmem:[#allocation6 + $0x20] sm:$0xff]
    %v1313 = vld [vmem:[#allocation6 + $0x28] sm:$0xff]
    %v1314 = vld [vmem:[#allocation6 + $0x30] sm:$0xff]
    %v1315 = vld [vmem:[#allocation6 + $0x38] sm:$0xff]
    %1324 = vrot.lane.b32.xlu0 %v1308, 40
    %v1325 = vpop.permute.xlu0 %1324
    %1326 = vrot.lane.b32.xlu0 %v1309, 40
    %v1327 = vpop.permute.xlu0 %1326
    %1328 = vrot.lane.b32.xlu0 %v1310, 40
    %v1329 = vpop.permute.xlu0 %1328
    %1330 = vrot.lane.b32.xlu0 %v1311, 40
    %v1331 = vpop.permute.xlu0 %1330
    %1332 = vrot.lane.b32.xlu0 %v1312, 40
    %v1333 = vpop.permute.xlu0 %1332
    %1334 = vrot.lane.b32.xlu0 %v1313, 40
    %v1335 = vpop.permute.xlu0 %1334
    %1336 = vrot.lane.b32.xlu0 %v1314, 40
    %v1337 = vpop.permute.xlu0 %1336
    %1338 = vrot.lane.b32.xlu0 %v1315, 40
    %v1339 = vpop.permute.xlu0 %1338
    %vm1340 = vcmask 326656
    %v1341 = vsel %vm1340, %v1325, %v1327
    %v1342 = vsel %vm1340, %v1327, %v1329
    %v1343 = vsel %vm1340, %v1329, %v1331
    %v1344 = vsel %vm1340, %v1333, %v1335
    %v1345 = vsel %vm1340, %v1335, %v1337
    %v1346 = vsel %vm1340, %v1337, %v1339
    %1353 = vst [vmem:[#allocation2 + $0x2a0] sm:$0xff] %v1341
    %1354 = vst [vmem:[#allocation2 + $0x2a8] sm:$0xff] %v1342
    %1355 = vst.msk [vmem:[#allocation2 + $0x2b0] sm:$0xff] %vm56, %v1343
    %1356 = vst [vmem:[#allocation2 + $0x738] sm:$0xff] %v1344
    %1357 = vst [vmem:[#allocation2 + $0x740] sm:$0xff] %v1345
    %1358 = vst.msk [vmem:[#allocation2 + $0x748] sm:$0xff] %vm56, %v1346
    %v1359 = vld [vmem:[#allocation6] sm:$0xff]
    %v1360 = vld [vmem:[#allocation6 + $0x8] sm:$0xff]
    %v1361 = vld [vmem:[#allocation6 + $0x10] sm:$0xff]
    %v1362 = vld [vmem:[#allocation6 + $0x18] sm:$0xff]
    %v1363 = vld [vmem:[#allocation6 + $0x20] sm:$0xff]
    %v1364 = vld [vmem:[#allocation6 + $0x28] sm:$0xff]
    %v1365 = vld [vmem:[#allocation6 + $0x30] sm:$0xff]
    %v1366 = vld [vmem:[#allocation6 + $0x38] sm:$0xff]
    %1375 = vrot.lane.b32.xlu0 %v1359, 39
    %v1376 = vpop.permute.xlu0 %1375
    %1377 = vrot.lane.b32.xlu0 %v1360, 39
    %v1378 = vpop.permute.xlu0 %1377
    %1379 = vrot.lane.b32.xlu0 %v1361, 39
    %v1380 = vpop.permute.xlu0 %1379
    %1381 = vrot.lane.b32.xlu0 %v1362, 39
    %v1382 = vpop.permute.xlu0 %1381
    %1383 = vrot.lane.b32.xlu0 %v1363, 39
    %v1384 = vpop.permute.xlu0 %1383
    %1385 = vrot.lane.b32.xlu0 %v1364, 39
    %v1386 = vpop.permute.xlu0 %1385
    %1387 = vrot.lane.b32.xlu0 %v1365, 39
    %v1388 = vpop.permute.xlu0 %1387
    %1389 = vrot.lane.b32.xlu0 %v1366, 39
    %v1390 = vpop.permute.xlu0 %1389
    %vm1391 = vcmask 318464
    %v1392 = vsel %vm1391, %v1376, %v1378
    %v1393 = vsel %vm1391, %v1378, %v1380
    %v1394 = vsel %vm1391, %v1380, %v1382
    %v1395 = vsel %vm1391, %v1384, %v1386
    %v1396 = vsel %vm1391, %v1386, %v1388
    %v1397 = vsel %vm1391, %v1388, %v1390
    %1404 = vst [vmem:[#allocation2 + $0x2b8] sm:$0xff] %v1392
    %1405 = vst [vmem:[#allocation2 + $0x2c0] sm:$0xff] %v1393
    %1406 = vst.msk [vmem:[#allocation2 + $0x2c8] sm:$0xff] %vm56, %v1394
    %1407 = vst [vmem:[#allocation2 + $0x750] sm:$0xff] %v1395
    %1408 = vst [vmem:[#allocation2 + $0x758] sm:$0xff] %v1396
    %1409 = vst.msk [vmem:[#allocation2 + $0x760] sm:$0xff] %vm56, %v1397
    %v1410 = vld [vmem:[#allocation6] sm:$0xff]
    %v1411 = vld [vmem:[#allocation6 + $0x8] sm:$0xff]
    %v1412 = vld [vmem:[#allocation6 + $0x10] sm:$0xff]
    %v1413 = vld [vmem:[#allocation6 + $0x18] sm:$0xff]
    %v1414 = vld [vmem:[#allocation6 + $0x20] sm:$0xff]
    %v1415 = vld [vmem:[#allocation6 + $0x28] sm:$0xff]
    %v1416 = vld [vmem:[#allocation6 + $0x30] sm:$0xff]
    %v1417 = vld [vmem:[#allocation6 + $0x38] sm:$0xff]
    %1426 = vrot.lane.b32.xlu0 %v1410, 38
    %v1427 = vpop.permute.xlu0 %1426
    %1428 = vrot.lane.b32.xlu0 %v1411, 38
    %v1429 = vpop.permute.xlu0 %1428
    %1430 = vrot.lane.b32.xlu0 %v1412, 38
    %v1431 = vpop.permute.xlu0 %1430
    %1432 = vrot.lane.b32.xlu0 %v1413, 38
    %v1433 = vpop.permute.xlu0 %1432
    %1434 = vrot.lane.b32.xlu0 %v1414, 38
    %v1435 = vpop.permute.xlu0 %1434
    %1436 = vrot.lane.b32.xlu0 %v1415, 38
    %v1437 = vpop.permute.xlu0 %1436
    %1438 = vrot.lane.b32.xlu0 %v1416, 38
    %v1439 = vpop.permute.xlu0 %1438
    %1440 = vrot.lane.b32.xlu0 %v1417, 38
    %v1441 = vpop.permute.xlu0 %1440
    %vm1442 = vcmask 310272
    %v1443 = vsel %vm1442, %v1427, %v1429
    %v1444 = vsel %vm1442, %v1429, %v1431
    %v1445 = vsel %vm1442, %v1431, %v1433
    %v1446 = vsel %vm1442, %v1435, %v1437
    %v1447 = vsel %vm1442, %v1437, %v1439
    %v1448 = vsel %vm1442, %v1439, %v1441
    %1455 = vst [vmem:[#allocation2 + $0x2d0] sm:$0xff] %v1443
    %1456 = vst [vmem:[#allocation2 + $0x2d8] sm:$0xff] %v1444
    %1457 = vst.msk [vmem:[#allocation2 + $0x2e0] sm:$0xff] %vm56, %v1445
    %1458 = vst [vmem:[#allocation2 + $0x768] sm:$0xff] %v1446
    %1459 = vst [vmem:[#allocation2 + $0x770] sm:$0xff] %v1447
    %1460 = vst.msk [vmem:[#allocation2 + $0x778] sm:$0xff] %vm56, %v1448
    %v1461 = vld [vmem:[#allocation6] sm:$0xff]
    %v1462 = vld [vmem:[#allocation6 + $0x8] sm:$0xff]
    %v1463 = vld [vmem:[#allocation6 + $0x10] sm:$0xff]
    %v1464 = vld [vmem:[#allocation6 + $0x18] sm:$0xff]
    %v1465 = vld [vmem:[#allocation6 + $0x20] sm:$0xff]
    %v1466 = vld [vmem:[#allocation6 + $0x28] sm:$0xff]
    %v1467 = vld [vmem:[#allocation6 + $0x30] sm:$0xff]
    %v1468 = vld [vmem:[#allocation6 + $0x38] sm:$0xff]
    %1477 = vrot.lane.b32.xlu0 %v1461, 37
    %v1478 = vpop.permute.xlu0 %1477
    %1479 = vrot.lane.b32.xlu0 %v1462, 37
    %v1480 = vpop.permute.xlu0 %1479
    %1481 = vrot.lane.b32.xlu0 %v1463, 37
    %v1482 = vpop.permute.xlu0 %1481
    %1483 = vrot.lane.b32.xlu0 %v1464, 37
    %v1484 = vpop.permute.xlu0 %1483
    %1485 = vrot.lane.b32.xlu0 %v1465, 37
    %v1486 = vpop.permute.xlu0 %1485
    %1487 = vrot.lane.b32.xlu0 %v1466, 37
    %v1488 = vpop.permute.xlu0 %1487
    %1489 = vrot.lane.b32.xlu0 %v1467, 37
    %v1490 = vpop.permute.xlu0 %1489
    %1491 = vrot.lane.b32.xlu0 %v1468, 37
    %v1492 = vpop.permute.xlu0 %1491
    %vm1493 = vcmask 302080
    %v1494 = vsel %vm1493, %v1478, %v1480
    %v1495 = vsel %vm1493, %v1480, %v1482
    %v1496 = vsel %vm1493, %v1482, %v1484
    %v1497 = vsel %vm1493, %v1486, %v1488
    %v1498 = vsel %vm1493, %v1488, %v1490
    %v1499 = vsel %vm1493, %v1490, %v1492
    %1506 = vst [vmem:[#allocation2 + $0x2e8] sm:$0xff] %v1494
    %1507 = vst [vmem:[#allocation2 + $0x2f0] sm:$0xff] %v1495
    %1508 = vst.msk [vmem:[#allocation2 + $0x2f8] sm:$0xff] %vm56, %v1496
    %1509 = vst [vmem:[#allocation2 + $0x780] sm:$0xff] %v1497
    %1510 = vst [vmem:[#allocation2 + $0x788] sm:$0xff] %v1498
    %1511 = vst.msk [vmem:[#allocation2 + $0x790] sm:$0xff] %vm56, %v1499
    %v1512 = vld [vmem:[#allocation6] sm:$0xff]
    %v1513 = vld [vmem:[#allocation6 + $0x8] sm:$0xff]
    %v1514 = vld [vmem:[#allocation6 + $0x10] sm:$0xff]
    %v1515 = vld [vmem:[#allocation6 + $0x18] sm:$0xff]
    %v1516 = vld [vmem:[#allocation6 + $0x20] sm:$0xff]
    %v1517 = vld [vmem:[#allocation6 + $0x28] sm:$0xff]
    %v1518 = vld [vmem:[#allocation6 + $0x30] sm:$0xff]
    %v1519 = vld [vmem:[#allocation6 + $0x38] sm:$0xff]
    %1528 = vrot.lane.b32.xlu0 %v1512, 36
    %v1529 = vpop.permute.xlu0 %1528
    %1530 = vrot.lane.b32.xlu0 %v1513, 36
    %v1531 = vpop.permute.xlu0 %1530
    %1532 = vrot.lane.b32.xlu0 %v1514, 36
    %v1533 = vpop.permute.xlu0 %1532
    %1534 = vrot.lane.b32.xlu0 %v1515, 36
    %v1535 = vpop.permute.xlu0 %1534
    %1536 = vrot.lane.b32.xlu0 %v1516, 36
    %v1537 = vpop.permute.xlu0 %1536
    %1538 = vrot.lane.b32.xlu0 %v1517, 36
    %v1539 = vpop.permute.xlu0 %1538
    %1540 = vrot.lane.b32.xlu0 %v1518, 36
    %v1541 = vpop.permute.xlu0 %1540
    %1542 = vrot.lane.b32.xlu0 %v1519, 36
    %v1543 = vpop.permute.xlu0 %1542
    %vm1544 = vcmask 293888
    %v1545 = vsel %vm1544, %v1529, %v1531
    %v1546 = vsel %vm1544, %v1531, %v1533
    %v1547 = vsel %vm1544, %v1533, %v1535
    %v1548 = vsel %vm1544, %v1537, %v1539
    %v1549 = vsel %vm1544, %v1539, %v1541
    %v1550 = vsel %vm1544, %v1541, %v1543
    %1557 = vst [vmem:[#allocation2 + $0x300] sm:$0xff] %v1545
    %1558 = vst [vmem:[#allocation2 + $0x308] sm:$0xff] %v1546
    %1559 = vst.msk [vmem:[#allocation2 + $0x310] sm:$0xff] %vm56, %v1547
    %1560 = vst [vmem:[#allocation2 + $0x798] sm:$0xff] %v1548
    %1561 = vst [vmem:[#allocation2 + $0x7a0] sm:$0xff] %v1549
    %1562 = vst.msk [vmem:[#allocation2 + $0x7a8] sm:$0xff] %vm56, %v1550
    %v1563 = vld [vmem:[#allocation6] sm:$0xff]
    %v1564 = vld [vmem:[#allocation6 + $0x8] sm:$0xff]
    %v1565 = vld [vmem:[#allocation6 + $0x10] sm:$0xff]
    %v1566 = vld [vmem:[#allocation6 + $0x18] sm:$0xff]
    %v1567 = vld [vmem:[#allocation6 + $0x20] sm:$0xff]
    %v1568 = vld [vmem:[#allocation6 + $0x28] sm:$0xff]
    %v1569 = vld [vmem:[#allocation6 + $0x30] sm:$0xff]
    %v1570 = vld [vmem:[#allocation6 + $0x38] sm:$0xff]
    %1579 = vrot.lane.b32.xlu0 %v1563, 35
    %v1580 = vpop.permute.xlu0 %1579
    %1581 = vrot.lane.b32.xlu0 %v1564, 35
    %v1582 = vpop.permute.xlu0 %1581
    %1583 = vrot.lane.b32.xlu0 %v1565, 35
    %v1584 = vpop.permute.xlu0 %1583
    %1585 = vrot.lane.b32.xlu0 %v1566, 35
    %v1586 = vpop.permute.xlu0 %1585
    %1587 = vrot.lane.b32.xlu0 %v1567, 35
    %v1588 = vpop.permute.xlu0 %1587
    %1589 = vrot.lane.b32.xlu0 %v1568, 35
    %v1590 = vpop.permute.xlu0 %1589
    %1591 = vrot.lane.b32.xlu0 %v1569, 35
    %v1592 = vpop.permute.xlu0 %1591
    %1593 = vrot.lane.b32.xlu0 %v1570, 35
    %v1594 = vpop.permute.xlu0 %1593
    %vm1595 = vcmask 285696
    %v1596 = vsel %vm1595, %v1580, %v1582
    %v1597 = vsel %vm1595, %v1582, %v1584
    %v1598 = vsel %vm1595, %v1584, %v1586
    %v1599 = vsel %vm1595, %v1588, %v1590
    %v1600 = vsel %vm1595, %v1590, %v1592
    %v1601 = vsel %vm1595, %v1592, %v1594
    %1608 = vst [vmem:[#allocation2 + $0x318] sm:$0xff] %v1596
    %1609 = vst [vmem:[#allocation2 + $0x320] sm:$0xff] %v1597
    %1610 = vst.msk [vmem:[#allocation2 + $0x328] sm:$0xff] %vm56, %v1598
    %1611 = vst [vmem:[#allocation2 + $0x7b0] sm:$0xff] %v1599
    %1612 = vst [vmem:[#allocation2 + $0x7b8] sm:$0xff] %v1600
    %1613 = vst.msk [vmem:[#allocation2 + $0x7c0] sm:$0xff] %vm56, %v1601
    %v1614 = vld [vmem:[#allocation6] sm:$0xff]
    %v1615 = vld [vmem:[#allocation6 + $0x8] sm:$0xff]
    %v1616 = vld [vmem:[#allocation6 + $0x10] sm:$0xff]
    %v1617 = vld [vmem:[#allocation6 + $0x18] sm:$0xff]
    %v1618 = vld [vmem:[#allocation6 + $0x20] sm:$0xff]
    %v1619 = vld [vmem:[#allocation6 + $0x28] sm:$0xff]
    %v1620 = vld [vmem:[#allocation6 + $0x30] sm:$0xff]
    %v1621 = vld [vmem:[#allocation6 + $0x38] sm:$0xff]
    %1630 = vrot.lane.b32.xlu0 %v1614, 34
    %v1631 = vpop.permute.xlu0 %1630
    %1632 = vrot.lane.b32.xlu0 %v1615, 34
    %v1633 = vpop.permute.xlu0 %1632
    %1634 = vrot.lane.b32.xlu0 %v1616, 34
    %v1635 = vpop.permute.xlu0 %1634
    %1636 = vrot.lane.b32.xlu0 %v1617, 34
    %v1637 = vpop.permute.xlu0 %1636
    %1638 = vrot.lane.b32.xlu0 %v1618, 34
    %v1639 = vpop.permute.xlu0 %1638
    %1640 = vrot.lane.b32.xlu0 %v1619, 34
    %v1641 = vpop.permute.xlu0 %1640
    %1642 = vrot.lane.b32.xlu0 %v1620, 34
    %v1643 = vpop.permute.xlu0 %1642
    %1644 = vrot.lane.b32.xlu0 %v1621, 34
    %v1645 = vpop.permute.xlu0 %1644
    %vm1646 = vcmask 277504
    %v1647 = vsel %vm1646, %v1631, %v1633
    %v1648 = vsel %vm1646, %v1633, %v1635
    %v1649 = vsel %vm1646, %v1635, %v1637
    %v1650 = vsel %vm1646, %v1639, %v1641
    %v1651 = vsel %vm1646, %v1641, %v1643
    %v1652 = vsel %vm1646, %v1643, %v1645
    %1659 = vst [vmem:[#allocation2 + $0x330] sm:$0xff] %v1647
    %1660 = vst [vmem:[#allocation2 + $0x338] sm:$0xff] %v1648
    %1661 = vst.msk [vmem:[#allocation2 + $0x340] sm:$0xff] %vm56, %v1649
    %1662 = vst [vmem:[#allocation2 + $0x7c8] sm:$0xff] %v1650
    %1663 = vst [vmem:[#allocation2 + $0x7d0] sm:$0xff] %v1651
    %1664 = vst.msk [vmem:[#allocation2 + $0x7d8] sm:$0xff] %vm56, %v1652
    %v1665 = vld [vmem:[#allocation6] sm:$0xff]
    %v1666 = vld [vmem:[#allocation6 + $0x8] sm:$0xff]
    %v1667 = vld [vmem:[#allocation6 + $0x10] sm:$0xff]
    %v1668 = vld [vmem:[#allocation6 + $0x18] sm:$0xff]
    %v1669 = vld [vmem:[#allocation6 + $0x20] sm:$0xff]
    %v1670 = vld [vmem:[#allocation6 + $0x28] sm:$0xff]
    %v1671 = vld [vmem:[#allocation6 + $0x30] sm:$0xff]
    %v1672 = vld [vmem:[#allocation6 + $0x38] sm:$0xff]
    %1681 = vrot.lane.b32.xlu0 %v1665, 18
    %v1682 = vpop.permute.xlu0 %1681
    %1683 = vrot.lane.b32.xlu0 %v1666, 18
    %v1684 = vpop.permute.xlu0 %1683
    %1685 = vrot.lane.b32.xlu0 %v1667, 18
    %v1686 = vpop.permute.xlu0 %1685
    %1687 = vrot.lane.b32.xlu0 %v1668, 18
    %v1688 = vpop.permute.xlu0 %1687
    %1689 = vrot.lane.b32.xlu0 %v1669, 18
    %v1690 = vpop.permute.xlu0 %1689
    %1691 = vrot.lane.b32.xlu0 %v1670, 18
    %v1692 = vpop.permute.xlu0 %1691
    %1693 = vrot.lane.b32.xlu0 %v1671, 18
    %v1694 = vpop.permute.xlu0 %1693
    %1695 = vrot.lane.b32.xlu0 %v1672, 18
    %v1696 = vpop.permute.xlu0 %1695
    %vm1697 = vcmask 146432
    %v1698 = vsel %vm1697, %v1682, %v1684
    %v1699 = vsel %vm1697, %v1684, %v1686
    %v1700 = vsel %vm1697, %v1686, %v1688
    %v1701 = vsel %vm1697, %v1690, %v1692
    %v1702 = vsel %vm1697, %v1692, %v1694
    %v1703 = vsel %vm1697, %v1694, %v1696
    %1710 = vst [vmem:[#allocation2 + $0x348] sm:$0xff] %v1698
    %1711 = vst [vmem:[#allocation2 + $0x350] sm:$0xff] %v1699
    %1712 = vst.msk [vmem:[#allocation2 + $0x358] sm:$0xff] %vm56, %v1700
    %1713 = vst [vmem:[#allocation2 + $0x7e0] sm:$0xff] %v1701
    %1714 = vst [vmem:[#allocation2 + $0x7e8] sm:$0xff] %v1702
    %1715 = vst.msk [vmem:[#allocation2 + $0x7f0] sm:$0xff] %vm56, %v1703
    %v1716 = vld [vmem:[#allocation6] sm:$0xff]
    %v1717 = vld [vmem:[#allocation6 + $0x8] sm:$0xff]
    %v1718 = vld [vmem:[#allocation6 + $0x10] sm:$0xff]
    %v1719 = vld [vmem:[#allocation6 + $0x18] sm:$0xff]
    %v1720 = vld [vmem:[#allocation6 + $0x20] sm:$0xff]
    %v1721 = vld [vmem:[#allocation6 + $0x28] sm:$0xff]
    %v1722 = vld [vmem:[#allocation6 + $0x30] sm:$0xff]
    %v1723 = vld [vmem:[#allocation6 + $0x38] sm:$0xff]
    %1732 = vrot.lane.b32.xlu0 %v1716, 17
    %v1733 = vpop.permute.xlu0 %1732
    %1734 = vrot.lane.b32.xlu0 %v1717, 17
    %v1735 = vpop.permute.xlu0 %1734
    %1736 = vrot.lane.b32.xlu0 %v1718, 17
    %v1737 = vpop.permute.xlu0 %1736
    %1738 = vrot.lane.b32.xlu0 %v1719, 17
    %v1739 = vpop.permute.xlu0 %1738
    %1740 = vrot.lane.b32.xlu0 %v1720, 17
    %v1741 = vpop.permute.xlu0 %1740
    %1742 = vrot.lane.b32.xlu0 %v1721, 17
    %v1743 = vpop.permute.xlu0 %1742
    %1744 = vrot.lane.b32.xlu0 %v1722, 17
    %v1745 = vpop.permute.xlu0 %1744
    %1746 = vrot.lane.b32.xlu0 %v1723, 17
    %v1747 = vpop.permute.xlu0 %1746
    %vm1748 = vcmask 138240
    %v1749 = vsel %vm1748, %v1733, %v1735
    %v1750 = vsel %vm1748, %v1735, %v1737
    %v1751 = vsel %vm1748, %v1737, %v1739
    %v1752 = vsel %vm1748, %v1741, %v1743
    %v1753 = vsel %vm1748, %v1743, %v1745
    %v1754 = vsel %vm1748, %v1745, %v1747
    %1761 = vst [vmem:[#allocation2 + $0x360] sm:$0xff] %v1749
    %1762 = vst [vmem:[#allocation2 + $0x368] sm:$0xff] %v1750
    %1763 = vst.msk [vmem:[#allocation2 + $0x370] sm:$0xff] %vm56, %v1751
    %1764 = vst [vmem:[#allocation2 + $0x7f8] sm:$0xff] %v1752
    %1765 = vst [vmem:[#allocation2 + $0x800] sm:$0xff] %v1753
    %1766 = vst.msk [vmem:[#allocation2 + $0x808] sm:$0xff] %vm56, %v1754
    %v1767 = vld [vmem:[#allocation6] sm:$0xff]
    %v1768 = vld [vmem:[#allocation6 + $0x8] sm:$0xff]
    %v1769 = vld [vmem:[#allocation6 + $0x10] sm:$0xff]
    %v1770 = vld [vmem:[#allocation6 + $0x18] sm:$0xff]
    %v1771 = vld [vmem:[#allocation6 + $0x20] sm:$0xff]
    %v1772 = vld [vmem:[#allocation6 + $0x28] sm:$0xff]
    %v1773 = vld [vmem:[#allocation6 + $0x30] sm:$0xff]
    %v1774 = vld [vmem:[#allocation6 + $0x38] sm:$0xff]
    %1783 = vrot.lane.b32.xlu0 %v1767, 16
    %v1784 = vpop.permute.xlu0 %1783
    %1785 = vrot.lane.b32.xlu0 %v1768, 16
    %v1786 = vpop.permute.xlu0 %1785
    %1787 = vrot.lane.b32.xlu0 %v1769, 16
    %v1788 = vpop.permute.xlu0 %1787
    %1789 = vrot.lane.b32.xlu0 %v1770, 16
    %v1790 = vpop.permute.xlu0 %1789
    %1791 = vrot.lane.b32.xlu0 %v1771, 16
    %v1792 = vpop.permute.xlu0 %1791
    %1793 = vrot.lane.b32.xlu0 %v1772, 16
    %v1794 = vpop.permute.xlu0 %1793
    %1795 = vrot.lane.b32.xlu0 %v1773, 16
    %v1796 = vpop.permute.xlu0 %1795
    %1797 = vrot.lane.b32.xlu0 %v1774, 16
    %v1798 = vpop.permute.xlu0 %1797
    %vm1799 = vcmask 130048
    %v1800 = vsel %vm1799, %v1784, %v1786
    %v1801 = vsel %vm1799, %v1786, %v1788
    %v1802 = vsel %vm1799, %v1788, %v1790
    %v1803 = vsel %vm1799, %v1792, %v1794
    %v1804 = vsel %vm1799, %v1794, %v1796
    %v1805 = vsel %vm1799, %v1796, %v1798
    %1812 = vst [vmem:[#allocation2 + $0x378] sm:$0xff] %v1800
    %1813 = vst [vmem:[#allocation2 + $0x380] sm:$0xff] %v1801
    %1814 = vst.msk [vmem:[#allocation2 + $0x388] sm:$0xff] %vm56, %v1802
    %1815 = vst [vmem:[#allocation2 + $0x810] sm:$0xff] %v1803
    %1816 = vst [vmem:[#allocation2 + $0x818] sm:$0xff] %v1804
    %1817 = vst.msk [vmem:[#allocation2 + $0x820] sm:$0xff] %vm56, %v1805
    %v1818 = vld [vmem:[#allocation6] sm:$0xff]
    %v1819 = vld [vmem:[#allocation6 + $0x8] sm:$0xff]
    %v1820 = vld [vmem:[#allocation6 + $0x10] sm:$0xff]
    %v1821 = vld [vmem:[#allocation6 + $0x18] sm:$0xff]
    %v1822 = vld [vmem:[#allocation6 + $0x20] sm:$0xff]
    %v1823 = vld [vmem:[#allocation6 + $0x28] sm:$0xff]
    %v1824 = vld [vmem:[#allocation6 + $0x30] sm:$0xff]
    %v1825 = vld [vmem:[#allocation6 + $0x38] sm:$0xff]
    %1834 = vrot.lane.b32.xlu0 %v1818, 15
    %v1835 = vpop.permute.xlu0 %1834
    %1836 = vrot.lane.b32.xlu0 %v1819, 15
    %v1837 = vpop.permute.xlu0 %1836
    %1838 = vrot.lane.b32.xlu0 %v1820, 15
    %v1839 = vpop.permute.xlu0 %1838
    %1840 = vrot.lane.b32.xlu0 %v1821, 15
    %v1841 = vpop.permute.xlu0 %1840
    %1842 = vrot.lane.b32.xlu0 %v1822, 15
    %v1843 = vpop.permute.xlu0 %1842
    %1844 = vrot.lane.b32.xlu0 %v1823, 15
    %v1845 = vpop.permute.xlu0 %1844
    %1846 = vrot.lane.b32.xlu0 %v1824, 15
    %v1847 = vpop.permute.xlu0 %1846
    %1848 = vrot.lane.b32.xlu0 %v1825, 15
    %v1849 = vpop.permute.xlu0 %1848
    %vm1850 = vcmask 121856
    %v1851 = vsel %vm1850, %v1835, %v1837
    %v1852 = vsel %vm1850, %v1837, %v1839
    %v1853 = vsel %vm1850, %v1839, %v1841
    %v1854 = vsel %vm1850, %v1843, %v1845
    %v1855 = vsel %vm1850, %v1845, %v1847
    %v1856 = vsel %vm1850, %v1847, %v1849
    %1863 = vst [vmem:[#allocation2 + $0x390] sm:$0xff] %v1851
    %1864 = vst [vmem:[#allocation2 + $0x398] sm:$0xff] %v1852
    %1865 = vst.msk [vmem:[#allocation2 + $0x3a0] sm:$0xff] %vm56, %v1853
    %1866 = vst [vmem:[#allocation2 + $0x828] sm:$0xff] %v1854
    %1867 = vst [vmem:[#allocation2 + $0x830] sm:$0xff] %v1855
    %1868 = vst.msk [vmem:[#allocation2 + $0x838] sm:$0xff] %vm56, %v1856
    %v1869 = vld [vmem:[#allocation6] sm:$0xff]
    %v1870 = vld [vmem:[#allocation6 + $0x8] sm:$0xff]
    %v1871 = vld [vmem:[#allocation6 + $0x10] sm:$0xff]
    %v1872 = vld [vmem:[#allocation6 + $0x18] sm:$0xff]
    %v1873 = vld [vmem:[#allocation6 + $0x20] sm:$0xff]
    %v1874 = vld [vmem:[#allocation6 + $0x28] sm:$0xff]
    %v1875 = vld [vmem:[#allocation6 + $0x30] sm:$0xff]
    %v1876 = vld [vmem:[#allocation6 + $0x38] sm:$0xff]
    %1885 = vrot.lane.b32.xlu0 %v1869, 14
    %v1886 = vpop.permute.xlu0 %1885
    %1887 = vrot.lane.b32.xlu0 %v1870, 14
    %v1888 = vpop.permute.xlu0 %1887
    %1889 = vrot.lane.b32.xlu0 %v1871, 14
    %v1890 = vpop.permute.xlu0 %1889
    %1891 = vrot.lane.b32.xlu0 %v1872, 14
    %v1892 = vpop.permute.xlu0 %1891
    %1893 = vrot.lane.b32.xlu0 %v1873, 14
    %v1894 = vpop.permute.xlu0 %1893
    %1895 = vrot.lane.b32.xlu0 %v1874, 14
    %v1896 = vpop.permute.xlu0 %1895
    %1897 = vrot.lane.b32.xlu0 %v1875, 14
    %v1898 = vpop.permute.xlu0 %1897
    %1899 = vrot.lane.b32.xlu0 %v1876, 14
    %v1900 = vpop.permute.xlu0 %1899
    %vm1901 = vcmask 113664
    %v1902 = vsel %vm1901, %v1886, %v1888
    %v1903 = vsel %vm1901, %v1888, %v1890
    %v1904 = vsel %vm1901, %v1890, %v1892
    %v1905 = vsel %vm1901, %v1894, %v1896
    %v1906 = vsel %vm1901, %v1896, %v1898
    %v1907 = vsel %vm1901, %v1898, %v1900
    %1914 = vst [vmem:[#allocation2 + $0x3a8] sm:$0xff] %v1902
    %1915 = vst [vmem:[#allocation2 + $0x3b0] sm:$0xff] %v1903
    %1916 = vst.msk [vmem:[#allocation2 + $0x3b8] sm:$0xff] %vm56, %v1904
    %1917 = vst [vmem:[#allocation2 + $0x840] sm:$0xff] %v1905
    %1918 = vst [vmem:[#allocation2 + $0x848] sm:$0xff] %v1906
    %1919 = vst.msk [vmem:[#allocation2 + $0x850] sm:$0xff] %vm56, %v1907
    %v1920 = vld [vmem:[#allocation6] sm:$0xff]
    %v1921 = vld [vmem:[#allocation6 + $0x8] sm:$0xff]
    %v1922 = vld [vmem:[#allocation6 + $0x10] sm:$0xff]
    %v1923 = vld [vmem:[#allocation6 + $0x18] sm:$0xff]
    %v1924 = vld [vmem:[#allocation6 + $0x20] sm:$0xff]
    %v1925 = vld [vmem:[#allocation6 + $0x28] sm:$0xff]
    %v1926 = vld [vmem:[#allocation6 + $0x30] sm:$0xff]
    %v1927 = vld [vmem:[#allocation6 + $0x38] sm:$0xff]
    %1936 = vrot.lane.b32.xlu0 %v1920, 13
    %v1937 = vpop.permute.xlu0 %1936
    %1938 = vrot.lane.b32.xlu0 %v1921, 13
    %v1939 = vpop.permute.xlu0 %1938
    %1940 = vrot.lane.b32.xlu0 %v1922, 13
    %v1941 = vpop.permute.xlu0 %1940
    %1942 = vrot.lane.b32.xlu0 %v1923, 13
    %v1943 = vpop.permute.xlu0 %1942
    %1944 = vrot.lane.b32.xlu0 %v1924, 13
    %v1945 = vpop.permute.xlu0 %1944
    %1946 = vrot.lane.b32.xlu0 %v1925, 13
    %v1947 = vpop.permute.xlu0 %1946
    %1948 = vrot.lane.b32.xlu0 %v1926, 13
    %v1949 = vpop.permute.xlu0 %1948
    %1950 = vrot.lane.b32.xlu0 %v1927, 13
    %v1951 = vpop.permute.xlu0 %1950
    %vm1952 = vcmask 105472
    %v1953 = vsel %vm1952, %v1937, %v1939
    %v1954 = vsel %vm1952, %v1939, %v1941
    %v1955 = vsel %vm1952, %v1941, %v1943
    %v1956 = vsel %vm1952, %v1945, %v1947
    %v1957 = vsel %vm1952, %v1947, %v1949
    %v1958 = vsel %vm1952, %v1949, %v1951
    %1965 = vst [vmem:[#allocation2 + $0x3c0] sm:$0xff] %v1953
    %1966 = vst [vmem:[#allocation2 + $0x3c8] sm:$0xff] %v1954
    %1967 = vst.msk [vmem:[#allocation2 + $0x3d0] sm:$0xff] %vm56, %v1955
    %1968 = vst [vmem:[#allocation2 + $0x858] sm:$0xff] %v1956
    %1969 = vst [vmem:[#allocation2 + $0x860] sm:$0xff] %v1957
    %1970 = vst.msk [vmem:[#allocation2 + $0x868] sm:$0xff] %vm56, %v1958
    %v1971 = vld [vmem:[#allocation6] sm:$0xff]
    %v1972 = vld [vmem:[#allocation6 + $0x8] sm:$0xff]
    %v1973 = vld [vmem:[#allocation6 + $0x10] sm:$0xff]
    %v1974 = vld [vmem:[#allocation6 + $0x18] sm:$0xff]
    %v1975 = vld [vmem:[#allocation6 + $0x20] sm:$0xff]
    %v1976 = vld [vmem:[#allocation6 + $0x28] sm:$0xff]
    %v1977 = vld [vmem:[#allocation6 + $0x30] sm:$0xff]
    %v1978 = vld [vmem:[#allocation6 + $0x38] sm:$0xff]
    %1987 = vrot.lane.b32.xlu0 %v1971, 12
    %v1988 = vpop.permute.xlu0 %1987
    %1989 = vrot.lane.b32.xlu0 %v1972, 12
    %v1990 = vpop.permute.xlu0 %1989
    %1991 = vrot.lane.b32.xlu0 %v1973, 12
    %v1992 = vpop.permute.xlu0 %1991
    %1993 = vrot.lane.b32.xlu0 %v1974, 12
    %v1994 = vpop.permute.xlu0 %1993
    %1995 = vrot.lane.b32.xlu0 %v1975, 12
    %v1996 = vpop.permute.xlu0 %1995
    %1997 = vrot.lane.b32.xlu0 %v1976, 12
    %v1998 = vpop.permute.xlu0 %1997
    %1999 = vrot.lane.b32.xlu0 %v1977, 12
    %v2000 = vpop.permute.xlu0 %1999
    %2001 = vrot.lane.b32.xlu0 %v1978, 12
    %v2002 = vpop.permute.xlu0 %2001
    %vm2003 = vcmask 97280
    %v2004 = vsel %vm2003, %v1988, %v1990
    %v2005 = vsel %vm2003, %v1990, %v1992
    %v2006 = vsel %vm2003, %v1992, %v1994
    %v2007 = vsel %vm2003, %v1996, %v1998
    %v2008 = vsel %vm2003, %v1998, %v2000
    %v2009 = vsel %vm2003, %v2000, %v2002
    %2016 = vst [vmem:[#allocation2 + $0x3d8] sm:$0xff] %v2004
    %2017 = vst [vmem:[#allocation2 + $0x3e0] sm:$0xff] %v2005
    %2018 = vst.msk [vmem:[#allocation2 + $0x3e8] sm:$0xff] %vm56, %v2006
    %2019 = vst [vmem:[#allocation2 + $0x870] sm:$0xff] %v2007
    %2020 = vst [vmem:[#allocation2 + $0x878] sm:$0xff] %v2008
    %2021 = vst.msk [vmem:[#allocation2 + $0x880] sm:$0xff] %vm56, %v2009
    %v2022 = vld [vmem:[#allocation6 + $0x8] sm:$0xff]
    %v2023 = vld [vmem:[#allocation6 + $0x10] sm:$0xff]
    %v2024 = vld [vmem:[#allocation6 + $0x18] sm:$0xff]
    %v2025 = vld [vmem:[#allocation6 + $0x28] sm:$0xff]
    %v2026 = vld [vmem:[#allocation6 + $0x30] sm:$0xff]
    %v2027 = vld [vmem:[#allocation6 + $0x38] sm:$0xff]
    %2034 = vrot.lane.b32.xlu0 %v2022, 124
    %v2035 = vpop.permute.xlu0 %2034
    %2036 = vrot.lane.b32.xlu0 %v2023, 124
    %v2037 = vpop.permute.xlu0 %2036
    %2038 = vrot.lane.b32.xlu0 %v2024, 124
    %v2039 = vpop.permute.xlu0 %2038
    %2040 = vrot.lane.b32.xlu0 %v2025, 124
    %v2041 = vpop.permute.xlu0 %2040
    %2042 = vrot.lane.b32.xlu0 %v2026, 124
    %v2043 = vpop.permute.xlu0 %2042
    %2044 = vrot.lane.b32.xlu0 %v2027, 124
    %v2045 = vpop.permute.xlu0 %2044
    %v2046 = vsel %vm208, %v2035, %v2037
    %v2047 = vsel %vm208, %v2037, %v2039
    %v2048 = vsel %vm208, %v2041, %v2043
    %v2049 = vsel %vm208, %v2043, %v2045
    %2056 = vst [vmem:[#allocation2 + $0x3f0] sm:$0xff] %v2046
    %2057 = vst [vmem:[#allocation2 + $0x3f8] sm:$0xff] %v2047
    %2058 = vst.msk [vmem:[#allocation2 + $0x400] sm:$0xff] %vm56, %v2039
    %2059 = vst [vmem:[#allocation2 + $0x888] sm:$0xff] %v2048
    %2060 = vst [vmem:[#allocation2 + $0x890] sm:$0xff] %v2049
    %2061 = vst.msk [vmem:[#allocation2 + $0x898] sm:$0xff] %vm56, %v2045
    %v2062 = vld [vmem:[#allocation6 + $0x8] sm:$0xff]
    %v2063 = vld [vmem:[#allocation6 + $0x10] sm:$0xff]
    %v2064 = vld [vmem:[#allocation6 + $0x18] sm:$0xff]
    %v2065 = vld [vmem:[#allocation6 + $0x28] sm:$0xff]
    %v2066 = vld [vmem:[#allocation6 + $0x30] sm:$0xff]
    %v2067 = vld [vmem:[#allocation6 + $0x38] sm:$0xff]
    %2074 = vrot.lane.b32.xlu0 %v2062, 123
    %v2075 = vpop.permute.xlu0 %2074
    %2076 = vrot.lane.b32.xlu0 %v2063, 123
    %v2077 = vpop.permute.xlu0 %2076
    %2078 = vrot.lane.b32.xlu0 %v2064, 123
    %v2079 = vpop.permute.xlu0 %2078
    %2080 = vrot.lane.b32.xlu0 %v2065, 123
    %v2081 = vpop.permute.xlu0 %2080
    %2082 = vrot.lane.b32.xlu0 %v2066, 123
    %v2083 = vpop.permute.xlu0 %2082
    %2084 = vrot.lane.b32.xlu0 %v2067, 123
    %v2085 = vpop.permute.xlu0 %2084
    %v2086 = vsel %vm249, %v2075, %v2077
    %v2087 = vsel %vm249, %v2077, %v2079
    %v2088 = vsel %vm249, %v2081, %v2083
    %v2089 = vsel %vm249, %v2083, %v2085
    %2096 = vst [vmem:[#allocation2 + $0x408] sm:$0xff] %v2086
    %2097 = vst [vmem:[#allocation2 + $0x410] sm:$0xff] %v2087
    %2098 = vst.msk [vmem:[#allocation2 + $0x418] sm:$0xff] %vm56, %v2079
    %2099 = vst [vmem:[#allocation2 + $0x8a0] sm:$0xff] %v2088
    %2100 = vst [vmem:[#allocation2 + $0x8a8] sm:$0xff] %v2089
    %2101 = vst.msk [vmem:[#allocation2 + $0x8b0] sm:$0xff] %vm56, %v2085
    %v2102 = vld [vmem:[#allocation6 + $0x8] sm:$0xff]
    %v2103 = vld [vmem:[#allocation6 + $0x10] sm:$0xff]
    %v2104 = vld [vmem:[#allocation6 + $0x18] sm:$0xff]
    %v2105 = vld [vmem:[#allocation6 + $0x28] sm:$0xff]
    %v2106 = vld [vmem:[#allocation6 + $0x30] sm:$0xff]
    %v2107 = vld [vmem:[#allocation6 + $0x38] sm:$0xff]
    %2114 = vrot.lane.b32.xlu0 %v2102, 122
    %v2115 = vpop.permute.xlu0 %2114
    %2116 = vrot.lane.b32.xlu0 %v2103, 122
    %v2117 = vpop.permute.xlu0 %2116
    %2118 = vrot.lane.b32.xlu0 %v2104, 122
    %v2119 = vpop.permute.xlu0 %2118
    %2120 = vrot.lane.b32.xlu0 %v2105, 122
    %v2121 = vpop.permute.xlu0 %2120
    %2122 = vrot.lane.b32.xlu0 %v2106, 122
    %v2123 = vpop.permute.xlu0 %2122
    %2124 = vrot.lane.b32.xlu0 %v2107, 122
    %v2125 = vpop.permute.xlu0 %2124
    %v2126 = vsel %vm290, %v2115, %v2117
    %v2127 = vsel %vm290, %v2117, %v2119
    %v2128 = vsel %vm290, %v2121, %v2123
    %v2129 = vsel %vm290, %v2123, %v2125
    %2136 = vst [vmem:[#allocation2 + $0x420] sm:$0xff] %v2126
    %2137 = vst [vmem:[#allocation2 + $0x428] sm:$0xff] %v2127
    %2138 = vst.msk [vmem:[#allocation2 + $0x430] sm:$0xff] %vm56, %v2119
    %2139 = vst [vmem:[#allocation2 + $0x8b8] sm:$0xff] %v2128
    %2140 = vst [vmem:[#allocation2 + $0x8c0] sm:$0xff] %v2129
    %2141 = vst.msk [vmem:[#allocation2 + $0x8c8] sm:$0xff] %vm56, %v2125
    %v2142 = vld [vmem:[#allocation6 + $0x8] sm:$0xff]
    %v2143 = vld [vmem:[#allocation6 + $0x10] sm:$0xff]
    %v2144 = vld [vmem:[#allocation6 + $0x18] sm:$0xff]
    %v2145 = vld [vmem:[#allocation6 + $0x28] sm:$0xff]
    %v2146 = vld [vmem:[#allocation6 + $0x30] sm:$0xff]
    %v2147 = vld [vmem:[#allocation6 + $0x38] sm:$0xff]
    %2154 = vrot.lane.b32.xlu0 %v2142, 121
    %v2155 = vpop.permute.xlu0 %2154
    %2156 = vrot.lane.b32.xlu0 %v2143, 121
    %v2157 = vpop.permute.xlu0 %2156
    %2158 = vrot.lane.b32.xlu0 %v2144, 121
    %v2159 = vpop.permute.xlu0 %2158
    %2160 = vrot.lane.b32.xlu0 %v2145, 121
    %v2161 = vpop.permute.xlu0 %2160
    %2162 = vrot.lane.b32.xlu0 %v2146, 121
    %v2163 = vpop.permute.xlu0 %2162
    %2164 = vrot.lane.b32.xlu0 %v2147, 121
    %v2165 = vpop.permute.xlu0 %2164
    %vm2166 = vcmask 990208
    %v2167 = vsel %vm2166, %v2155, %v2157
    %v2168 = vsel %vm2166, %v2157, %v2159
    %v2169 = vsel %vm2166, %v2161, %v2163
    %v2170 = vsel %vm2166, %v2163, %v2165
    %2177 = vst [vmem:[#allocation2 + $0x438] sm:$0xff] %v2167
    %2178 = vst [vmem:[#allocation2 + $0x440] sm:$0xff] %v2168
    %2179 = vst.msk [vmem:[#allocation2 + $0x448] sm:$0xff] %vm56, %v2159
    %2180 = vst [vmem:[#allocation2 + $0x8d0] sm:$0xff] %v2169
    %2181 = vst [vmem:[#allocation2 + $0x8d8] sm:$0xff] %v2170
    %2182 = vst.msk [vmem:[#allocation2 + $0x8e0] sm:$0xff] %vm56, %v2165
    %v2183 = vld [vmem:[#allocation6 + $0x8] sm:$0xff]
    %v2184 = vld [vmem:[#allocation6 + $0x10] sm:$0xff]
    %v2185 = vld [vmem:[#allocation6 + $0x18] sm:$0xff]
    %v2186 = vld [vmem:[#allocation6 + $0x28] sm:$0xff]
    %v2187 = vld [vmem:[#allocation6 + $0x30] sm:$0xff]
    %v2188 = vld [vmem:[#allocation6 + $0x38] sm:$0xff]
    %2195 = vrot.lane.b32.xlu0 %v2183, 120
    %v2196 = vpop.permute.xlu0 %2195
    %2197 = vrot.lane.b32.xlu0 %v2184, 120
    %v2198 = vpop.permute.xlu0 %2197
    %2199 = vrot.lane.b32.xlu0 %v2185, 120
    %v2200 = vpop.permute.xlu0 %2199
    %2201 = vrot.lane.b32.xlu0 %v2186, 120
    %v2202 = vpop.permute.xlu0 %2201
    %2203 = vrot.lane.b32.xlu0 %v2187, 120
    %v2204 = vpop.permute.xlu0 %2203
    %2205 = vrot.lane.b32.xlu0 %v2188, 120
    %v2206 = vpop.permute.xlu0 %2205
    %vm2207 = vcmask 982016
    %v2208 = vsel %vm2207, %v2196, %v2198
    %v2209 = vsel %vm2207, %v2198, %v2200
    %v2210 = vsel %vm2207, %v2202, %v2204
    %v2211 = vsel %vm2207, %v2204, %v2206
    %2218 = vst [vmem:[#allocation2 + $0x450] sm:$0xff] %v2208
    %2219 = vst [vmem:[#allocation2 + $0x458] sm:$0xff] %v2209
    %2220 = vst.msk [vmem:[#allocation2 + $0x460] sm:$0xff] %vm56, %v2200
    %2221 = vst [vmem:[#allocation2 + $0x8e8] sm:$0xff] %v2210
    %2222 = vst [vmem:[#allocation2 + $0x8f0] sm:$0xff] %v2211
    %2223 = vst.msk [vmem:[#allocation2 + $0x8f8] sm:$0xff] %vm56, %v2206
    %v2224 = vld [vmem:[#allocation6 + $0x8] sm:$0xff]
    %v2225 = vld [vmem:[#allocation6 + $0x10] sm:$0xff]
    %v2226 = vld [vmem:[#allocation6 + $0x18] sm:$0xff]
    %v2227 = vld [vmem:[#allocation6 + $0x28] sm:$0xff]
    %v2228 = vld [vmem:[#allocation6 + $0x30] sm:$0xff]
    %v2229 = vld [vmem:[#allocation6 + $0x38] sm:$0xff]
    %2236 = vrot.lane.b32.xlu0 %v2224, 119
    %v2237 = vpop.permute.xlu0 %2236
    %2238 = vrot.lane.b32.xlu0 %v2225, 119
    %v2239 = vpop.permute.xlu0 %2238
    %2240 = vrot.lane.b32.xlu0 %v2226, 119
    %v2241 = vpop.permute.xlu0 %2240
    %2242 = vrot.lane.b32.xlu0 %v2227, 119
    %v2243 = vpop.permute.xlu0 %2242
    %2244 = vrot.lane.b32.xlu0 %v2228, 119
    %v2245 = vpop.permute.xlu0 %2244
    %2246 = vrot.lane.b32.xlu0 %v2229, 119
    %v2247 = vpop.permute.xlu0 %2246
    %vm2248 = vcmask 973824
    %v2249 = vsel %vm2248, %v2237, %v2239
    %v2250 = vsel %vm2248, %v2239, %v2241
    %v2251 = vsel %vm2248, %v2243, %v2245
    %v2252 = vsel %vm2248, %v2245, %v2247
    %2259 = vst [vmem:[#allocation2 + $0x468] sm:$0xff] %v2249
    %2260 = vst [vmem:[#allocation2 + $0x470] sm:$0xff] %v2250
    %2261 = vst.msk [vmem:[#allocation2 + $0x478] sm:$0xff] %vm56, %v2241
    %2262 = vst [vmem:[#allocation2 + $0x900] sm:$0xff] %v2251
    %2263 = vst [vmem:[#allocation2 + $0x908] sm:$0xff] %v2252
    %2264 = vst.msk [vmem:[#allocation2 + $0x910] sm:$0xff] %vm56, %v2247
    %v2265 = vld [vmem:[#allocation6 + $0x8] sm:$0xff]
    %v2266 = vld [vmem:[#allocation6 + $0x10] sm:$0xff]
    %v2267 = vld [vmem:[#allocation6 + $0x18] sm:$0xff]
    %v2268 = vld [vmem:[#allocation6 + $0x28] sm:$0xff]
    %v2269 = vld [vmem:[#allocation6 + $0x30] sm:$0xff]
    %v2270 = vld [vmem:[#allocation6 + $0x38] sm:$0xff]
    %2277 = vrot.lane.b32.xlu0 %v2265, 118
    %v2278 = vpop.permute.xlu0 %2277
    %2279 = vrot.lane.b32.xlu0 %v2266, 118
    %v2280 = vpop.permute.xlu0 %2279
    %2281 = vrot.lane.b32.xlu0 %v2267, 118
    %v2282 = vpop.permute.xlu0 %2281
    %2283 = vrot.lane.b32.xlu0 %v2268, 118
    %v2284 = vpop.permute.xlu0 %2283
    %2285 = vrot.lane.b32.xlu0 %v2269, 118
    %v2286 = vpop.permute.xlu0 %2285
    %2287 = vrot.lane.b32.xlu0 %v2270, 118
    %v2288 = vpop.permute.xlu0 %2287
    %vm2289 = vcmask 965632
    %v2290 = vsel %vm2289, %v2278, %v2280
    %v2291 = vsel %vm2289, %v2280, %v2282
    %v2292 = vsel %vm2289, %v2284, %v2286
    %v2293 = vsel %vm2289, %v2286, %v2288
    %2300 = vst [vmem:[#allocation2 + $0x480] sm:$0xff] %v2290
    %2301 = vst [vmem:[#allocation2 + $0x488] sm:$0xff] %v2291
    %2302 = vst.msk [vmem:[#allocation2 + $0x490] sm:$0xff] %vm56, %v2282
    %2303 = vst [vmem:[#allocation2 + $0x918] sm:$0xff] %v2292
    %2304 = vst [vmem:[#allocation2 + $0x920] sm:$0xff] %v2293
    %2305 = vst.msk [vmem:[#allocation2 + $0x928] sm:$0xff] %vm56, %v2288
    %v2306 = vld [vmem:[#allocation3] sm:$0xff]
    %v2307 = vld [vmem:[#allocation3 + $0x8] sm:$0xff]
    %v2308 = vld [vmem:[%s1] sm:$0xf]
    %v2309 = vld [vmem:[%s2] sm:$0xf]
    %v2310 = vld [vmem:[#allocation2] sm:$0xff]
    %v2311 = vld [vmem:[#allocation2 + $0x8] sm:$0xff]
    %v2312 = vld [vmem:[#allocation2 + $0x10] sm:$0xff]
    %v2313 = vld [vmem:[#allocation2 + $0x18] sm:$0xff]
    %v2314 = vld [vmem:[#allocation2 + $0x20] sm:$0xff]
    %v2315 = vld [vmem:[#allocation2 + $0x28] sm:$0xff]
    %v2316 = vld [vmem:[#allocation2 + $0x30] sm:$0xff]
    %v2317 = vld [vmem:[#allocation2 + $0x38] sm:$0xff]
    %v2318 = vld [vmem:[#allocation2 + $0x40] sm:$0xff]
    %v2319 = vld [vmem:[#allocation2 + $0x48] sm:$0xff]
    %v2320 = vld [vmem:[#allocation2 + $0x50] sm:$0xff]
    %v2321 = vld [vmem:[#allocation2 + $0x58] sm:$0xff]
    %v2322 = vld [vmem:[#allocation2 + $0x60] sm:$0xff]
    %v2323 = vld [vmem:[#allocation2 + $0x68] sm:$0xff]
    %v2324 = vld [vmem:[#allocation2 + $0x70] sm:$0xff]
    %v2325 = vld [vmem:[#allocation2 + $0x78] sm:$0xff]
    %v2326 = vld [vmem:[#allocation2 + $0x80] sm:$0xff]
    %v2327 = vld [vmem:[#allocation2 + $0x88] sm:$0xff]
    %v2328 = vld [vmem:[#allocation2 + $0x90] sm:$0xff]
    %v2329 = vld [vmem:[#allocation2 + $0x98] sm:$0xff]
    %v2330 = vld [vmem:[#allocation2 + $0xa0] sm:$0xff]
    %v2331 = vld [vmem:[#allocation2 + $0xa8] sm:$0xff]
    %v2332 = vld [vmem:[#allocation2 + $0xb0] sm:$0xff]
    %v2333 = vld [vmem:[#allocation2 + $0xb8] sm:$0xff]
    %v2334 = vld [vmem:[#allocation2 + $0xc0] sm:$0xff]
    %v2335 = vld [vmem:[#allocation2 + $0xc8] sm:$0xff]
    %v2336 = vld [vmem:[#allocation2 + $0xd0] sm:$0xff]
    %v2337 = vld [vmem:[#allocation2 + $0xd8] sm:$0xff]
    %v2338 = vld [vmem:[#allocation2 + $0xe0] sm:$0xff]
    %v2339 = vld [vmem:[#allocation2 + $0xe8] sm:$0xff]
    %v2340 = vld [vmem:[#allocation2 + $0xf0] sm:$0xff]
    %v2341 = vld [vmem:[#allocation2 + $0xf8] sm:$0xff]
    %v2342 = vld [vmem:[#allocation2 + $0x100] sm:$0xff]
    %v2343 = vld [vmem:[#allocation2 + $0x108] sm:$0xff]
    %v2344 = vld [vmem:[#allocation2 + $0x110] sm:$0xff]
    %v2345 = vld [vmem:[#allocation2 + $0x118] sm:$0xff]
    %v2346 = vld [vmem:[#allocation2 + $0x120] sm:$0xff]
    %v2347 = vld [vmem:[#allocation2 + $0x128] sm:$0xff]
    %v2348 = vld [vmem:[#allocation2 + $0x130] sm:$0xff]
    %v2349 = vld [vmem:[#allocation2 + $0x138] sm:$0xff]
    %v2350 = vld [vmem:[#allocation2 + $0x140] sm:$0xff]
    %v2351 = vld [vmem:[#allocation2 + $0x148] sm:$0xff]
    %v2352 = vld [vmem:[#allocation2 + $0x150] sm:$0xff]
    %v2353 = vld [vmem:[#allocation2 + $0x158] sm:$0xff]
    %v2354 = vld [vmem:[#allocation2 + $0x160] sm:$0xff]
    %v2355 = vld [vmem:[#allocation2 + $0x168] sm:$0xff]
    %v2356 = vld [vmem:[#allocation2 + $0x170] sm:$0xff]
    %v2357 = vld [vmem:[#allocation2 + $0x178] sm:$0xff]
    %v2358 = vld [vmem:[#allocation2 + $0x180] sm:$0xff]
    %v2359 = vld [vmem:[#allocation2 + $0x188] sm:$0xff]
    %v2360 = vld [vmem:[#allocation2 + $0x190] sm:$0xff]
    %v2361 = vld [vmem:[#allocation2 + $0x198] sm:$0xff]
    %v2362 = vld [vmem:[#allocation2 + $0x1a0] sm:$0xff]
    %v2363 = vld [vmem:[#allocation2 + $0x1a8] sm:$0xff]
    %v2364 = vld [vmem:[#allocation2 + $0x1b0] sm:$0xff]
    %v2365 = vld [vmem:[#allocation2 + $0x1b8] sm:$0xff]
    %v2366 = vld [vmem:[#allocation2 + $0x1c0] sm:$0xff]
    %v2367 = vld [vmem:[#allocation2 + $0x1c8] sm:$0xff]
    %v2368 = vld [vmem:[#allocation2 + $0x1d0] sm:$0xff]
    %v2369 = vld [vmem:[#allocation2 + $0x1d8] sm:$0xff]
    %v2370 = vld [vmem:[#allocation2 + $0x1e0] sm:$0xff]
    %v2371 = vld [vmem:[#allocation2 + $0x1e8] sm:$0xff]
    %v2372 = vld [vmem:[#allocation2 + $0x1f0] sm:$0xff]
    %v2373 = vld [vmem:[#allocation2 + $0x1f8] sm:$0xff]
    %v2374 = vld [vmem:[#allocation2 + $0x200] sm:$0xff]
    %v2375 = vld [vmem:[#allocation2 + $0x208] sm:$0xff]
    %v2376 = vld [vmem:[#allocation2 + $0x210] sm:$0xff]
    %v2377 = vld [vmem:[#allocation2 + $0x218] sm:$0xff]
    %v2378 = vld [vmem:[#allocation2 + $0x220] sm:$0xff]
    %v2379 = vld [vmem:[#allocation2 + $0x228] sm:$0xff]
    %v2380 = vld [vmem:[#allocation2 + $0x230] sm:$0xff]
    %v2381 = vld [vmem:[#allocation2 + $0x238] sm:$0xff]
    %v2382 = vld [vmem:[#allocation2 + $0x240] sm:$0xff]
    %v2383 = vld [vmem:[#allocation2 + $0x248] sm:$0xff]
    %v2384 = vld [vmem:[#allocation2 + $0x250] sm:$0xff]
    %v2385 = vld [vmem:[#allocation2 + $0x258] sm:$0xff]
    %v2386 = vld [vmem:[#allocation2 + $0x260] sm:$0xff]
    %v2387 = vld [vmem:[#allocation2 + $0x268] sm:$0xff]
    %v2388 = vld [vmem:[#allocation2 + $0x270] sm:$0xff]
    %v2389 = vld [vmem:[#allocation2 + $0x278] sm:$0xff]
    %v2390 = vld [vmem:[#allocation2 + $0x280] sm:$0xff]
    %v2391 = vld [vmem:[#allocation2 + $0x288] sm:$0xff]
    %v2392 = vld [vmem:[#allocation2 + $0x290] sm:$0xff]
    %v2393 = vld [vmem:[#allocation2 + $0x298] sm:$0xff]
    %v2394 = vld [vmem:[#allocation2 + $0x2a0] sm:$0xff]
    %v2395 = vld [vmem:[#allocation2 + $0x2a8] sm:$0xff]
    %v2396 = vld [vmem:[#allocation2 + $0x2b0] sm:$0xff]
    %v2397 = vld [vmem:[#allocation2 + $0x2b8] sm:$0xff]
    %v2398 = vld [vmem:[#allocation2 + $0x2c0] sm:$0xff]
    %v2399 = vld [vmem:[#allocation2 + $0x2c8] sm:$0xff]
    %v2400 = vld [vmem:[#allocation2 + $0x2d0] sm:$0xff]
    %v2401 = vld [vmem:[#allocation2 + $0x2d8] sm:$0xff]
    %v2402 = vld [vmem:[#allocation2 + $0x2e0] sm:$0xff]
    %v2403 = vld [vmem:[#allocation2 + $0x2e8] sm:$0xff]
    %v2404 = vld [vmem:[#allocation2 + $0x2f0] sm:$0xff]
    %v2405 = vld [vmem:[#allocation2 + $0x2f8] sm:$0xff]
    %v2406 = vld [vmem:[#allocation2 + $0x300] sm:$0xff]
    %v2407 = vld [vmem:[#allocation2 + $0x308] sm:$0xff]
    %v2408 = vld [vmem:[#allocation2 + $0x310] sm:$0xff]
    %v2409 = vld [vmem:[#allocation2 + $0x318] sm:$0xff]
    %v2410 = vld [vmem:[#allocation2 + $0x320] sm:$0xff]
    %v2411 = vld [vmem:[#allocation2 + $0x328] sm:$0xff]
    %v2412 = vld [vmem:[#allocation2 + $0x330] sm:$0xff]
    %v2413 = vld [vmem:[#allocation2 + $0x338] sm:$0xff]
    %v2414 = vld [vmem:[#allocation2 + $0x340] sm:$0xff]
    %v2415 = vld [vmem:[#allocation2 + $0x348] sm:$0xff]
    %v2416 = vld [vmem:[#allocation2 + $0x350] sm:$0xff]
    %v2417 = vld [vmem:[#allocation2 + $0x358] sm:$0xff]
    %v2418 = vld [vmem:[#allocation2 + $0x360] sm:$0xff]
    %v2419 = vld [vmem:[#allocation2 + $0x368] sm:$0xff]
    %v2420 = vld [vmem:[#allocation2 + $0x370] sm:$0xff]
    %v2421 = vld [vmem:[#allocation2 + $0x378] sm:$0xff]
    %v2422 = vld [vmem:[#allocation2 + $0x380] sm:$0xff]
    %v2423 = vld [vmem:[#allocation2 + $0x388] sm:$0xff]
    %v2424 = vld [vmem:[#allocation2 + $0x390] sm:$0xff]
    %v2425 = vld [vmem:[#allocation2 + $0x398] sm:$0xff]
    %v2426 = vld [vmem:[#allocation2 + $0x3a0] sm:$0xff]
    %v2427 = vld [vmem:[#allocation2 + $0x3a8] sm:$0xff]
    %v2428 = vld [vmem:[#allocation2 + $0x3b0] sm:$0xff]
    %v2429 = vld [vmem:[#allocation2 + $0x3b8] sm:$0xff]
    %v2430 = vld [vmem:[#allocation2 + $0x3c0] sm:$0xff]
    %v2431 = vld [vmem:[#allocation2 + $0x3c8] sm:$0xff]
    %v2432 = vld [vmem:[#allocation2 + $0x3d0] sm:$0xff]
    %v2433 = vld [vmem:[#allocation2 + $0x3d8] sm:$0xff]
    %v2434 = vld [vmem:[#allocation2 + $0x3e0] sm:$0xff]
    %v2435 = vld [vmem:[#allocation2 + $0x3e8] sm:$0xff]
    %v2436 = vld [vmem:[#allocation2 + $0x3f0] sm:$0xff]
    %v2437 = vld [vmem:[#allocation2 + $0x3f8] sm:$0xff]
    %v2438 = vld [vmem:[#allocation2 + $0x400] sm:$0xff]
    %v2439 = vld [vmem:[#allocation2 + $0x408] sm:$0xff]
    %v2440 = vld [vmem:[#allocation2 + $0x410] sm:$0xff]
    %v2441 = vld [vmem:[#allocation2 + $0x418] sm:$0xff]
    %v2442 = vld [vmem:[#allocation2 + $0x420] sm:$0xff]
    %v2443 = vld [vmem:[#allocation2 + $0x428] sm:$0xff]
    %v2444 = vld [vmem:[#allocation2 + $0x430] sm:$0xff]
    %v2445 = vld [vmem:[#allocation2 + $0x438] sm:$0xff]
    %v2446 = vld [vmem:[#allocation2 + $0x440] sm:$0xff]
    %v2447 = vld [vmem:[#allocation2 + $0x448] sm:$0xff]
    %v2448 = vld [vmem:[#allocation2 + $0x450] sm:$0xff]
    %v2449 = vld [vmem:[#allocation2 + $0x458] sm:$0xff]
    %v2450 = vld [vmem:[#allocation2 + $0x460] sm:$0xff]
    %v2451 = vld [vmem:[#allocation2 + $0x468] sm:$0xff]
    %v2452 = vld [vmem:[#allocation2 + $0x470] sm:$0xff]
    %v2453 = vld [vmem:[#allocation2 + $0x478] sm:$0xff]
    %v2454 = vld [vmem:[#allocation2 + $0x480] sm:$0xff]
    %v2455 = vld [vmem:[#allocation2 + $0x488] sm:$0xff]
    %v2456 = vld [vmem:[#allocation2 + $0x490] sm:$0xff]
    %2459 = vst [vmem:[#allocation1] ss:$2 sm:$0xff] %v2306
    %s2460 = scalar_lea.vmem [#allocation1], 16
    %2461 = vst [vmem:[%s2460] ss:$2 sm:$0xff] %v2307
    %v2462 = vld.sshfl [vmem:[#allocation1] sm:$0xff pattern:$0x75316420]
    %v2463 = vld.sshfl [vmem:[#allocation1 + $0x8] sm:$0xff pattern:$0x75316420]
    %v2464 = vld.sshfl [vmem:[#allocation1 + $0x10] sm:$0xff pattern:$0x75316420]
    %v2465 = vld.sshfl [vmem:[#allocation1 + $0x18] sm:$0xff pattern:$0x75316420]
    %vm2469 = vcmask 64512
    %v2470 = vsel %vm2469, %v2465, 0
    %2472 = vmatpush.msra.mxu0 %v2355
    %2473 = vmatpush.msra.mxu0 %v2352
    %2474 = vmatpush.msra.mxu0 %v2349
    %2475 = vmatpush.msra.mxu0 %v2346
    %2476 = vmatpush.msra.mxu0 %v2343
    %2477 = vmatpush.msra.mxu0 %v2340
    %2478 = vmatpush.msra.mxu0 %v2337
    %2479 = vmatpush.msra.mxu0 %v2334
    %2480 = vmatpush.msra.mxu0 %v2331
    %2481 = vmatpush.msra.mxu0 %v2328
    %2482 = vmatpush.msra.mxu0 %v2325
    %2483 = vmatpush.msra.mxu0 %v2322
    %2484 = vmatpush.msra.mxu0 %v2319
    %2485 = vmatpush.msra.mxu0 %v2316
    %2486 = vmatpush.msra.mxu0 %v2313
    %2487 = vmatpush.msra.mxu0 %v2310
    %2488 = vmatmul.f32.gmra.mxu0 %v2462
    %v2489 = vpop.f32.mrf.mxu0
    %v2490 = vadd.f32 0.0, %v2489
    %2491 = vdwg.mxu0
    %2492 = vmatpush.msra.mxu0 %v2403
    %2493 = vmatpush.msra.mxu0 %v2400
    %2494 = vmatpush.msra.mxu0 %v2397
    %2495 = vmatpush.msra.mxu0 %v2394
    %2496 = vmatpush.msra.mxu0 %v2391
    %2497 = vmatpush.msra.mxu0 %v2388
    %2498 = vmatpush.msra.mxu0 %v2385
    %2499 = vmatpush.msra.mxu0 %v2382
    %2500 = vmatpush.msra.mxu0 %v2379
    %2501 = vmatpush.msra.mxu0 %v2376
    %2502 = vmatpush.msra.mxu0 %v2373
    %2503 = vmatpush.msra.mxu0 %v2370
    %2504 = vmatpush.msra.mxu0 %v2367
    %2505 = vmatpush.msra.mxu0 %v2364
    %2506 = vmatpush.msra.mxu0 %v2361
    %2507 = vmatpush.msra.mxu0 %v2358
    %2508 = vmatmul.f32.gmra.mxu0 %v2463
    %v2509 = vpop.f32.mrf.mxu0
    %v2510 = vadd.f32 %v2490, %v2509
    %2511 = vdwg.mxu0
    %2512 = vmatpush.msra.mxu0 %v2451
    %2513 = vmatpush.msra.mxu0 %v2448
    %2514 = vmatpush.msra.mxu0 %v2445
    %2515 = vmatpush.msra.mxu0 %v2442
    %2516 = vmatpush.msra.mxu0 %v2439
    %2517 = vmatpush.msra.mxu0 %v2436
    %2518 = vmatpush.msra.mxu0 %v2433
    %2519 = vmatpush.msra.mxu0 %v2430
    %2520 = vmatpush.msra.mxu0 %v2427
    %2521 = vmatpush.msra.mxu0 %v2424
    %2522 = vmatpush.msra.mxu0 %v2421
    %2523 = vmatpush.msra.mxu0 %v2418
    %2524 = vmatpush.msra.mxu0 %v2415
    %2525 = vmatpush.msra.mxu0 %v2412
    %2526 = vmatpush.msra.mxu0 %v2409
    %2527 = vmatpush.msra.mxu0 %v2406
    %2528 = vmatmul.f32.gmra.mxu0 %v2464
    %v2529 = vpop.f32.mrf.mxu0
    %v2530 = vadd.f32 %v2510, %v2529
    %2531 = vdwg.mxu0
    %2532 = vmatpush.msra.mxu0 0.0
    %2533 = vmatpush.msra.mxu0 0.0
    %2534 = vmatpush.msra.mxu0 0.0
    %2535 = vmatpush.msra.mxu0 0.0
    %2536 = vmatpush.msra.mxu0 0.0
    %2537 = vmatpush.msra.mxu0 0.0
    %2538 = vmatpush.msra.mxu0 0.0
    %2539 = vmatpush.msra.mxu0 0.0
    %2540 = vmatpush.msra.mxu0 0.0
    %2541 = vmatpush.msra.mxu0 0.0
    %2542 = vmatpush.msra.mxu0 0.0
    %2543 = vmatpush.msra.mxu0 0.0
    %2544 = vmatpush.msra.mxu0 0.0
    %2545 = vmatpush.msra.mxu0 0.0
    %2546 = vmatpush.msra.mxu0 0.0
    %2547 = vmatpush.msra.mxu0 %v2454
    %2548 = vmatmul.f32.gmra.mxu0 %v2470
    %v2549 = vpop.f32.mrf.mxu0
    %v2550 = vadd.f32 %v2530, %v2549
    %2551 = vdwg.mxu0
    %2552 = vmatpush.msra.mxu0 %v2356
    %2553 = vmatpush.msra.mxu0 %v2353
    %2554 = vmatpush.msra.mxu0 %v2350
    %2555 = vmatpush.msra.mxu0 %v2347
    %2556 = vmatpush.msra.mxu0 %v2344
    %2557 = vmatpush.msra.mxu0 %v2341
    %2558 = vmatpush.msra.mxu0 %v2338
    %2559 = vmatpush.msra.mxu0 %v2335
    %2560 = vmatpush.msra.mxu0 %v2332
    %2561 = vmatpush.msra.mxu0 %v2329
    %2562 = vmatpush.msra.mxu0 %v2326
    %2563 = vmatpush.msra.mxu0 %v2323
    %2564 = vmatpush.msra.mxu0 %v2320
    %2565 = vmatpush.msra.mxu0 %v2317
    %2566 = vmatpush.msra.mxu0 %v2314
    %2567 = vmatpush.msra.mxu0 %v2311
    %2568 = vmatmul.f32.gmra.mxu0 %v2462
    %v2569 = vpop.f32.mrf.mxu0
    %v2570 = vadd.f32 0.0, %v2569
    %2571 = vdwg.mxu0
    %2572 = vmatpush.msra.mxu0 %v2404
    %2573 = vmatpush.msra.mxu0 %v2401
    %2574 = vmatpush.msra.mxu0 %v2398
    %2575 = vmatpush.msra.mxu0 %v2395
    %2576 = vmatpush.msra.mxu0 %v2392
    %2577 = vmatpush.msra.mxu0 %v2389
    %2578 = vmatpush.msra.mxu0 %v2386
    %2579 = vmatpush.msra.mxu0 %v2383
    %2580 = vmatpush.msra.mxu0 %v2380
    %2581 = vmatpush.msra.mxu0 %v2377
    %2582 = vmatpush.msra.mxu0 %v2374
    %2583 = vmatpush.msra.mxu0 %v2371
    %2584 = vmatpush.msra.mxu0 %v2368
    %2585 = vmatpush.msra.mxu0 %v2365
    %2586 = vmatpush.msra.mxu0 %v2362
    %2587 = vmatpush.msra.mxu0 %v2359
    %2588 = vmatmul.f32.gmra.mxu0 %v2463
    %v2589 = vpop.f32.mrf.mxu0
    %v2590 = vadd.f32 %v2570, %v2589
    %2591 = vdwg.mxu0
    %2592 = vmatpush.msra.mxu0 %v2452
    %2593 = vmatpush.msra.mxu0 %v2449
    %2594 = vmatpush.msra.mxu0 %v2446
    %2595 = vmatpush.msra.mxu0 %v2443
    %2596 = vmatpush.msra.mxu0 %v2440
    %2597 = vmatpush.msra.mxu0 %v2437
    %2598 = vmatpush.msra.mxu0 %v2434
    %2599 = vmatpush.msra.mxu0 %v2431
    %2600 = vmatpush.msra.mxu0 %v2428
    %2601 = vmatpush.msra.mxu0 %v2425
    %2602 = vmatpush.msra.mxu0 %v2422
    %2603 = vmatpush.msra.mxu0 %v2419
    %2604 = vmatpush.msra.mxu0 %v2416
    %2605 = vmatpush.msra.mxu0 %v2413
    %2606 = vmatpush.msra.mxu0 %v2410
    %2607 = vmatpush.msra.mxu0 %v2407
    %2608 = vmatmul.f32.gmra.mxu0 %v2464
    %v2609 = vpop.f32.mrf.mxu0
    %v2610 = vadd.f32 %v2590, %v2609
    %2611 = vdwg.mxu0
    %2612 = vmatpush.msra.mxu0 0.0
    %2613 = vmatpush.msra.mxu0 0.0
    %2614 = vmatpush.msra.mxu0 0.0
    %2615 = vmatpush.msra.mxu0 0.0
    %2616 = vmatpush.msra.mxu0 0.0
    %2617 = vmatpush.msra.mxu0 0.0
    %2618 = vmatpush.msra.mxu0 0.0
    %2619 = vmatpush.msra.mxu0 0.0
    %2620 = vmatpush.msra.mxu0 0.0
    %2621 = vmatpush.msra.mxu0 0.0
    %2622 = vmatpush.msra.mxu0 0.0
    %2623 = vmatpush.msra.mxu0 0.0
    %2624 = vmatpush.msra.mxu0 0.0
    %2625 = vmatpush.msra.mxu0 0.0
    %2626 = vmatpush.msra.mxu0 0.0
    %2627 = vmatpush.msra.mxu0 %v2455
    %2628 = vmatmul.f32.gmra.mxu0 %v2470
    %v2629 = vpop.f32.mrf.mxu0
    %v2630 = vadd.f32 %v2610, %v2629
    %2631 = vdwg.mxu0
    %2632 = vmatpush.msra.mxu0 %v2357
    %2633 = vmatpush.msra.mxu0 %v2354
    %2634 = vmatpush.msra.mxu0 %v2351
    %2635 = vmatpush.msra.mxu0 %v2348
    %2636 = vmatpush.msra.mxu0 %v2345
    %2637 = vmatpush.msra.mxu0 %v2342
    %2638 = vmatpush.msra.mxu0 %v2339
    %2639 = vmatpush.msra.mxu0 %v2336
    %2640 = vmatpush.msra.mxu0 %v2333
    %2641 = vmatpush.msra.mxu0 %v2330
    %2642 = vmatpush.msra.mxu0 %v2327
    %2643 = vmatpush.msra.mxu0 %v2324
    %2644 = vmatpush.msra.mxu0 %v2321
    %2645 = vmatpush.msra.mxu0 %v2318
    %2646 = vmatpush.msra.mxu0 %v2315
    %2647 = vmatpush.msra.mxu0 %v2312
    %2648 = vmatmul.f32.gmra.mxu0 %v2462
    %v2649 = vpop.f32.mrf.mxu0
    %v2650 = vadd.f32 0.0, %v2649
    %2651 = vdwg.mxu0
    %2652 = vmatpush.msra.mxu0 %v2405
    %2653 = vmatpush.msra.mxu0 %v2402
    %2654 = vmatpush.msra.mxu0 %v2399
    %2655 = vmatpush.msra.mxu0 %v2396
    %2656 = vmatpush.msra.mxu0 %v2393
    %2657 = vmatpush.msra.mxu0 %v2390
    %2658 = vmatpush.msra.mxu0 %v2387
    %2659 = vmatpush.msra.mxu0 %v2384
    %2660 = vmatpush.msra.mxu0 %v2381
    %2661 = vmatpush.msra.mxu0 %v2378
    %2662 = vmatpush.msra.mxu0 %v2375
    %2663 = vmatpush.msra.mxu0 %v2372
    %2664 = vmatpush.msra.mxu0 %v2369
    %2665 = vmatpush.msra.mxu0 %v2366
    %2666 = vmatpush.msra.mxu0 %v2363
    %2667 = vmatpush.msra.mxu0 %v2360
    %2668 = vmatmul.f32.gmra.mxu0 %v2463
    %v2669 = vpop.f32.mrf.mxu0
    %v2670 = vadd.f32 %v2650, %v2669
    %2671 = vdwg.mxu0
    %2672 = vmatpush.msra.mxu0 %v2453
    %2673 = vmatpush.msra.mxu0 %v2450
    %2674 = vmatpush.msra.mxu0 %v2447
    %2675 = vmatpush.msra.mxu0 %v2444
    %2676 = vmatpush.msra.mxu0 %v2441
    %2677 = vmatpush.msra.mxu0 %v2438
    %2678 = vmatpush.msra.mxu0 %v2435
    %2679 = vmatpush.msra.mxu0 %v2432
    %2680 = vmatpush.msra.mxu0 %v2429
    %2681 = vmatpush.msra.mxu0 %v2426
    %2682 = vmatpush.msra.mxu0 %v2423
    %2683 = vmatpush.msra.mxu0 %v2420
    %2684 = vmatpush.msra.mxu0 %v2417
    %2685 = vmatpush.msra.mxu0 %v2414
    %2686 = vmatpush.msra.mxu0 %v2411
    %2687 = vmatpush.msra.mxu0 %v2408
    %2688 = vmatmul.f32.gmra.mxu0 %v2464
    %v2689 = vpop.f32.mrf.mxu0
    %v2690 = vadd.f32 %v2670, %v2689
    %2691 = vdwg.mxu0
    %2692 = vmatpush.msra.mxu0 0.0
    %2693 = vmatpush.msra.mxu0 0.0
    %2694 = vmatpush.msra.mxu0 0.0
    %2695 = vmatpush.msra.mxu0 0.0
    %2696 = vmatpush.msra.mxu0 0.0
    %2697 = vmatpush.msra.mxu0 0.0
    %2698 = vmatpush.msra.mxu0 0.0
    %2699 = vmatpush.msra.mxu0 0.0
    %2700 = vmatpush.msra.mxu0 0.0
    %2701 = vmatpush.msra.mxu0 0.0
    %2702 = vmatpush.msra.mxu0 0.0
    %2703 = vmatpush.msra.mxu0 0.0
    %2704 = vmatpush.msra.mxu0 0.0
    %2705 = vmatpush.msra.mxu0 0.0
    %2706 = vmatpush.msra.mxu0 0.0
    %2707 = vmatpush.msra.mxu0 %v2456
    %2708 = vmatmul.f32.gmra.mxu0 %v2470
    %v2709 = vpop.f32.mrf.mxu0
    %v2710 = vadd.f32 %v2690, %v2709
    %2711 = vdwg.mxu0
    %2713 = vset.pattern.permute.xlu0 0
    %2714 = vperm.xlu0 %2713, %v2308
    %v2715 = vpop.permute.xlu0 %2714
    %v2717 = vmul.f32 %v2550, %v2715
    %v2718 = vmul.f32 %v2630, %v2715
    %v2719 = vmul.f32 %v2710, %v2715
    %2721 = vset.pattern.permute.xlu0 0
    %2722 = vperm.xlu0 %2721, %v2309
    %v2723 = vpop.permute.xlu0 %2722
    %v2725 = vadd.f32 %v2717, %v2723
    %v2726 = vadd.f32 %v2718, %v2723
    %v2727 = vadd.f32 %v2719, %v2723
    %v2728 = vmax.f32 %v2725, 0.0
    %v2729 = vmax.f32 %v2726, 0.0
    %v2730 = vmax.f32 %v2727, 0.0
    %v2733 = vrot.slane %v2729, 4
    %vm2734 = vcmask 1043456
    %v2735 = vsel %vm2734, %v2728, %v2733
    %2737 = vst [vmem:[#allocation8] sm:$0xff] %v2735
    %vm2738 = vcmask 781312
    %2739 = vst.msk [vmem:[#allocation8 + $0x8] sm:$0xf] %vm2738, %v2730
    %s2740 = scalar_lea.vmem [#allocation2], 1176
    %v2741 = vld [vmem:[%s2740] sm:$0xff]
    %v2742 = vld [vmem:[%s2740 + $0x8] sm:$0xff]
    %v2743 = vld [vmem:[%s2740 + $0x10] sm:$0xff]
    %v2744 = vld [vmem:[%s2740 + $0x18] sm:$0xff]
    %v2745 = vld [vmem:[%s2740 + $0x20] sm:$0xff]
    %v2746 = vld [vmem:[%s2740 + $0x28] sm:$0xff]
    %v2747 = vld [vmem:[%s2740 + $0x30] sm:$0xff]
    %v2748 = vld [vmem:[%s2740 + $0x38] sm:$0xff]
    %v2749 = vld [vmem:[%s2740 + $0x40] sm:$0xff]
    %v2750 = vld [vmem:[%s2740 + $0x48] sm:$0xff]
    %v2751 = vld [vmem:[%s2740 + $0x50] sm:$0xff]
    %v2752 = vld [vmem:[%s2740 + $0x58] sm:$0xff]
    %v2753 = vld [vmem:[%s2740 + $0x60] sm:$0xff]
    %v2754 = vld [vmem:[%s2740 + $0x68] sm:$0xff]
    %v2755 = vld [vmem:[%s2740 + $0x70] sm:$0xff]
    %v2756 = vld [vmem:[%s2740 + $0x78] sm:$0xff]
    %v2757 = vld [vmem:[%s2740 + $0x80] sm:$0xff]
    %v2758 = vld [vmem:[%s2740 + $0x88] sm:$0xff]
    %v2759 = vld [vmem:[%s2740 + $0x90] sm:$0xff]
    %v2760 = vld [vmem:[%s2740 + $0x98] sm:$0xff]
    %v2761 = vld [vmem:[%s2740 + $0xa0] sm:$0xff]
    %v2762 = vld [vmem:[%s2740 + $0xa8] sm:$0xff]
    %v2763 = vld [vmem:[%s2740 + $0xb0] sm:$0xff]
    %v2764 = vld [vmem:[%s2740 + $0xb8] sm:$0xff]
    %v2765 = vld [vmem:[%s2740 + $0xc0] sm:$0xff]
    %v2766 = vld [vmem:[%s2740 + $0xc8] sm:$0xff]
    %v2767 = vld [vmem:[%s2740 + $0xd0] sm:$0xff]
    %v2768 = vld [vmem:[%s2740 + $0xd8] sm:$0xff]
    %v2769 = vld [vmem:[%s2740 + $0xe0] sm:$0xff]
    %v2770 = vld [vmem:[%s2740 + $0xe8] sm:$0xff]
    %v2771 = vld [vmem:[%s2740 + $0xf0] sm:$0xff]
    %v2772 = vld [vmem:[%s2740 + $0xf8] sm:$0xff]
    %v2773 = vld [vmem:[%s2740 + $0x100] sm:$0xff]
    %v2774 = vld [vmem:[%s2740 + $0x108] sm:$0xff]
    %v2775 = vld [vmem:[%s2740 + $0x110] sm:$0xff]
    %v2776 = vld [vmem:[%s2740 + $0x118] sm:$0xff]
    %v2777 = vld [vmem:[%s2740 + $0x120] sm:$0xff]
    %v2778 = vld [vmem:[%s2740 + $0x128] sm:$0xff]
    %v2779 = vld [vmem:[%s2740 + $0x130] sm:$0xff]
    %v2780 = vld [vmem:[%s2740 + $0x138] sm:$0xff]
    %v2781 = vld [vmem:[%s2740 + $0x140] sm:$0xff]
    %v2782 = vld [vmem:[%s2740 + $0x148] sm:$0xff]
    %v2783 = vld [vmem:[%s2740 + $0x150] sm:$0xff]
    %v2784 = vld [vmem:[%s2740 + $0x158] sm:$0xff]
    %v2785 = vld [vmem:[%s2740 + $0x160] sm:$0xff]
    %v2786 = vld [vmem:[%s2740 + $0x168] sm:$0xff]
    %v2787 = vld [vmem:[%s2740 + $0x170] sm:$0xff]
    %v2788 = vld [vmem:[%s2740 + $0x178] sm:$0xff]
    %v2789 = vld [vmem:[%s2740 + $0x180] sm:$0xff]
    %v2790 = vld [vmem:[%s2740 + $0x188] sm:$0xff]
    %v2791 = vld [vmem:[%s2740 + $0x190] sm:$0xff]
    %v2792 = vld [vmem:[%s2740 + $0x198] sm:$0xff]
    %v2793 = vld [vmem:[%s2740 + $0x1a0] sm:$0xff]
    %v2794 = vld [vmem:[%s2740 + $0x1a8] sm:$0xff]
    %v2795 = vld [vmem:[%s2740 + $0x1b0] sm:$0xff]
    %v2796 = vld [vmem:[%s2740 + $0x1b8] sm:$0xff]
    %v2797 = vld [vmem:[%s2740 + $0x1c0] sm:$0xff]
    %v2798 = vld [vmem:[%s2740 + $0x1c8] sm:$0xff]
    %v2799 = vld [vmem:[%s2740 + $0x1d0] sm:$0xff]
    %v2800 = vld [vmem:[%s2740 + $0x1d8] sm:$0xff]
    %v2801 = vld [vmem:[%s2740 + $0x1e0] sm:$0xff]
    %v2802 = vld [vmem:[%s2740 + $0x1e8] sm:$0xff]
    %v2803 = vld [vmem:[%s2740 + $0x1f0] sm:$0xff]
    %v2804 = vld [vmem:[%s2740 + $0x1f8] sm:$0xff]
    %v2805 = vld [vmem:[%s2740 + $0x200] sm:$0xff]
    %v2806 = vld [vmem:[%s2740 + $0x208] sm:$0xff]
    %v2807 = vld [vmem:[%s2740 + $0x210] sm:$0xff]
    %v2808 = vld [vmem:[%s2740 + $0x218] sm:$0xff]
    %v2809 = vld [vmem:[%s2740 + $0x220] sm:$0xff]
    %v2810 = vld [vmem:[%s2740 + $0x228] sm:$0xff]
    %v2811 = vld [vmem:[%s2740 + $0x230] sm:$0xff]
    %v2812 = vld [vmem:[%s2740 + $0x238] sm:$0xff]
    %v2813 = vld [vmem:[%s2740 + $0x240] sm:$0xff]
    %v2814 = vld [vmem:[%s2740 + $0x248] sm:$0xff]
    %v2815 = vld [vmem:[%s2740 + $0x250] sm:$0xff]
    %v2816 = vld [vmem:[%s2740 + $0x258] sm:$0xff]
    %v2817 = vld [vmem:[%s2740 + $0x260] sm:$0xff]
    %v2818 = vld [vmem:[%s2740 + $0x268] sm:$0xff]
    %v2819 = vld [vmem:[%s2740 + $0x270] sm:$0xff]
    %v2820 = vld [vmem:[%s2740 + $0x278] sm:$0xff]
    %v2821 = vld [vmem:[%s2740 + $0x280] sm:$0xff]
    %v2822 = vld [vmem:[%s2740 + $0x288] sm:$0xff]
    %v2823 = vld [vmem:[%s2740 + $0x290] sm:$0xff]
    %v2824 = vld [vmem:[%s2740 + $0x298] sm:$0xff]
    %v2825 = vld [vmem:[%s2740 + $0x2a0] sm:$0xff]
    %v2826 = vld [vmem:[%s2740 + $0x2a8] sm:$0xff]
    %v2827 = vld [vmem:[%s2740 + $0x2b0] sm:$0xff]
    %v2828 = vld [vmem:[%s2740 + $0x2b8] sm:$0xff]
    %v2829 = vld [vmem:[%s2740 + $0x2c0] sm:$0xff]
    %v2830 = vld [vmem:[%s2740 + $0x2c8] sm:$0xff]
    %v2831 = vld [vmem:[%s2740 + $0x2d0] sm:$0xff]
    %v2832 = vld [vmem:[%s2740 + $0x2d8] sm:$0xff]
    %v2833 = vld [vmem:[%s2740 + $0x2e0] sm:$0xff]
    %v2834 = vld [vmem:[%s2740 + $0x2e8] sm:$0xff]
    %v2835 = vld [vmem:[%s2740 + $0x2f0] sm:$0xff]
    %v2836 = vld [vmem:[%s2740 + $0x2f8] sm:$0xff]
    %v2837 = vld [vmem:[%s2740 + $0x300] sm:$0xff]
    %v2838 = vld [vmem:[%s2740 + $0x308] sm:$0xff]
    %v2839 = vld [vmem:[%s2740 + $0x310] sm:$0xff]
    %v2840 = vld [vmem:[%s2740 + $0x318] sm:$0xff]
    %v2841 = vld [vmem:[%s2740 + $0x320] sm:$0xff]
    %v2842 = vld [vmem:[%s2740 + $0x328] sm:$0xff]
    %v2843 = vld [vmem:[%s2740 + $0x330] sm:$0xff]
    %v2844 = vld [vmem:[%s2740 + $0x338] sm:$0xff]
    %v2845 = vld [vmem:[%s2740 + $0x340] sm:$0xff]
    %v2846 = vld [vmem:[%s2740 + $0x348] sm:$0xff]
    %v2847 = vld [vmem:[%s2740 + $0x350] sm:$0xff]
    %v2848 = vld [vmem:[%s2740 + $0x358] sm:$0xff]
    %v2849 = vld [vmem:[%s2740 + $0x360] sm:$0xff]
    %v2850 = vld [vmem:[%s2740 + $0x368] sm:$0xff]
    %v2851 = vld [vmem:[%s2740 + $0x370] sm:$0xff]
    %v2852 = vld [vmem:[%s2740 + $0x378] sm:$0xff]
    %v2853 = vld [vmem:[%s2740 + $0x380] sm:$0xff]
    %v2854 = vld [vmem:[%s2740 + $0x388] sm:$0xff]
    %v2855 = vld [vmem:[%s2740 + $0x390] sm:$0xff]
    %v2856 = vld [vmem:[%s2740 + $0x398] sm:$0xff]
    %v2857 = vld [vmem:[%s2740 + $0x3a0] sm:$0xff]
    %v2858 = vld [vmem:[%s2740 + $0x3a8] sm:$0xff]
    %v2859 = vld [vmem:[%s2740 + $0x3b0] sm:$0xff]
    %v2860 = vld [vmem:[%s2740 + $0x3b8] sm:$0xff]
    %v2861 = vld [vmem:[%s2740 + $0x3c0] sm:$0xff]
    %v2862 = vld [vmem:[%s2740 + $0x3c8] sm:$0xff]
    %v2863 = vld [vmem:[%s2740 + $0x3d0] sm:$0xff]
    %v2864 = vld [vmem:[%s2740 + $0x3d8] sm:$0xff]
    %v2865 = vld [vmem:[%s2740 + $0x3e0] sm:$0xff]
    %v2866 = vld [vmem:[%s2740 + $0x3e8] sm:$0xff]
    %v2867 = vld [vmem:[%s2740 + $0x3f0] sm:$0xff]
    %v2868 = vld [vmem:[%s2740 + $0x3f8] sm:$0xff]
    %v2869 = vld [vmem:[%s2740 + $0x400] sm:$0xff]
    %v2870 = vld [vmem:[%s2740 + $0x408] sm:$0xff]
    %v2871 = vld [vmem:[%s2740 + $0x410] sm:$0xff]
    %v2872 = vld [vmem:[%s2740 + $0x418] sm:$0xff]
    %v2873 = vld [vmem:[%s2740 + $0x420] sm:$0xff]
    %v2874 = vld [vmem:[%s2740 + $0x428] sm:$0xff]
    %v2875 = vld [vmem:[%s2740 + $0x430] sm:$0xff]
    %v2876 = vld [vmem:[%s2740 + $0x438] sm:$0xff]
    %v2877 = vld [vmem:[%s2740 + $0x440] sm:$0xff]
    %v2878 = vld [vmem:[%s2740 + $0x448] sm:$0xff]
    %v2879 = vld [vmem:[%s2740 + $0x450] sm:$0xff]
    %v2880 = vld [vmem:[%s2740 + $0x458] sm:$0xff]
    %v2881 = vld [vmem:[%s2740 + $0x460] sm:$0xff]
    %v2882 = vld [vmem:[%s2740 + $0x468] sm:$0xff]
    %v2883 = vld [vmem:[%s2740 + $0x470] sm:$0xff]
    %v2884 = vld [vmem:[%s2740 + $0x478] sm:$0xff]
    %v2885 = vld [vmem:[%s2740 + $0x480] sm:$0xff]
    %v2886 = vld [vmem:[%s2740 + $0x488] sm:$0xff]
    %v2887 = vld [vmem:[%s2740 + $0x490] sm:$0xff]
    %2888 = vst [vmem:[#allocation1] ss:$2 sm:$0xff] %v2306
    %s2889 = scalar_lea.vmem [#allocation1], 16
    %2890 = vst [vmem:[%s2889] ss:$2 sm:$0xff] %v2307
    %v2891 = vld.sshfl [vmem:[#allocation1] sm:$0xff pattern:$0x75316420]
    %v2892 = vld.sshfl [vmem:[#allocation1 + $0x8] sm:$0xff pattern:$0x75316420]
    %v2893 = vld.sshfl [vmem:[#allocation1 + $0x10] sm:$0xff pattern:$0x75316420]
    %v2894 = vld.sshfl [vmem:[#allocation1 + $0x18] sm:$0xff pattern:$0x75316420]
    %v2898 = vsel %vm2469, %v2894, 0
    %2900 = vmatpush.msra.mxu0 %v2786
    %2901 = vmatpush.msra.mxu0 %v2783
    %2902 = vmatpush.msra.mxu0 %v2780
    %2903 = vmatpush.msra.mxu0 %v2777
    %2904 = vmatpush.msra.mxu0 %v2774
    %2905 = vmatpush.msra.mxu0 %v2771
    %2906 = vmatpush.msra.mxu0 %v2768
    %2907 = vmatpush.msra.mxu0 %v2765
    %2908 = vmatpush.msra.mxu0 %v2762
    %2909 = vmatpush.msra.mxu0 %v2759
    %2910 = vmatpush.msra.mxu0 %v2756
    %2911 = vmatpush.msra.mxu0 %v2753
    %2912 = vmatpush.msra.mxu0 %v2750
    %2913 = vmatpush.msra.mxu0 %v2747
    %2914 = vmatpush.msra.mxu0 %v2744
    %2915 = vmatpush.msra.mxu0 %v2741
    %2916 = vmatmul.f32.gmra.mxu0 %v2891
    %v2917 = vpop.f32.mrf.mxu0
    %v2918 = vadd.f32 0.0, %v2917
    %2919 = vdwg.mxu0
    %2920 = vmatpush.msra.mxu0 %v2834
    %2921 = vmatpush.msra.mxu0 %v2831
    %2922 = vmatpush.msra.mxu0 %v2828
    %2923 = vmatpush.msra.mxu0 %v2825
    %2924 = vmatpush.msra.mxu0 %v2822
    %2925 = vmatpush.msra.mxu0 %v2819
    %2926 = vmatpush.msra.mxu0 %v2816
    %2927 = vmatpush.msra.mxu0 %v2813
    %2928 = vmatpush.msra.mxu0 %v2810
    %2929 = vmatpush.msra.mxu0 %v2807
    %2930 = vmatpush.msra.mxu0 %v2804
    %2931 = vmatpush.msra.mxu0 %v2801
    %2932 = vmatpush.msra.mxu0 %v2798
    %2933 = vmatpush.msra.mxu0 %v2795
    %2934 = vmatpush.msra.mxu0 %v2792
    %2935 = vmatpush.msra.mxu0 %v2789
    %2936 = vmatmul.f32.gmra.mxu0 %v2892
    %v2937 = vpop.f32.mrf.mxu0
    %v2938 = vadd.f32 %v2918, %v2937
    %2939 = vdwg.mxu0
    %2940 = vmatpush.msra.mxu0 %v2882
    %2941 = vmatpush.msra.mxu0 %v2879
    %2942 = vmatpush.msra.mxu0 %v2876
    %2943 = vmatpush.msra.mxu0 %v2873
    %2944 = vmatpush.msra.mxu0 %v2870
    %2945 = vmatpush.msra.mxu0 %v2867
    %2946 = vmatpush.msra.mxu0 %v2864
    %2947 = vmatpush.msra.mxu0 %v2861
    %2948 = vmatpush.msra.mxu0 %v2858
    %2949 = vmatpush.msra.mxu0 %v2855
    %2950 = vmatpush.msra.mxu0 %v2852
    %2951 = vmatpush.msra.mxu0 %v2849
    %2952 = vmatpush.msra.mxu0 %v2846
    %2953 = vmatpush.msra.mxu0 %v2843
    %2954 = vmatpush.msra.mxu0 %v2840
    %2955 = vmatpush.msra.mxu0 %v2837
    %2956 = vmatmul.f32.gmra.mxu0 %v2893
    %v2957 = vpop.f32.mrf.mxu0
    %v2958 = vadd.f32 %v2938, %v2957
    %2959 = vdwg.mxu0
    %2960 = vmatpush.msra.mxu0 0.0
    %2961 = vmatpush.msra.mxu0 0.0
    %2962 = vmatpush.msra.mxu0 0.0
    %2963 = vmatpush.msra.mxu0 0.0
    %2964 = vmatpush.msra.mxu0 0.0
    %2965 = vmatpush.msra.mxu0 0.0
    %2966 = vmatpush.msra.mxu0 0.0
    %2967 = vmatpush.msra.mxu0 0.0
    %2968 = vmatpush.msra.mxu0 0.0
    %2969 = vmatpush.msra.mxu0 0.0
    %2970 = vmatpush.msra.mxu0 0.0
    %2971 = vmatpush.msra.mxu0 0.0
    %2972 = vmatpush.msra.mxu0 0.0
    %2973 = vmatpush.msra.mxu0 0.0
    %2974 = vmatpush.msra.mxu0 0.0
    %2975 = vmatpush.msra.mxu0 %v2885
    %2976 = vmatmul.f32.gmra.mxu0 %v2898
    %v2977 = vpop.f32.mrf.mxu0
    %v2978 = vadd.f32 %v2958, %v2977
    %2979 = vdwg.mxu0
    %2980 = vmatpush.msra.mxu0 %v2787
    %2981 = vmatpush.msra.mxu0 %v2784
    %2982 = vmatpush.msra.mxu0 %v2781
    %2983 = vmatpush.msra.mxu0 %v2778
    %2984 = vmatpush.msra.mxu0 %v2775
    %2985 = vmatpush.msra.mxu0 %v2772
    %2986 = vmatpush.msra.mxu0 %v2769
    %2987 = vmatpush.msra.mxu0 %v2766
    %2988 = vmatpush.msra.mxu0 %v2763
    %2989 = vmatpush.msra.mxu0 %v2760
    %2990 = vmatpush.msra.mxu0 %v2757
    %2991 = vmatpush.msra.mxu0 %v2754
    %2992 = vmatpush.msra.mxu0 %v2751
    %2993 = vmatpush.msra.mxu0 %v2748
    %2994 = vmatpush.msra.mxu0 %v2745
    %2995 = vmatpush.msra.mxu0 %v2742
    %2996 = vmatmul.f32.gmra.mxu0 %v2891
    %v2997 = vpop.f32.mrf.mxu0
    %v2998 = vadd.f32 0.0, %v2997
    %2999 = vdwg.mxu0
    %3000 = vmatpush.msra.mxu0 %v2835
    %3001 = vmatpush.msra.mxu0 %v2832
    %3002 = vmatpush.msra.mxu0 %v2829
    %3003 = vmatpush.msra.mxu0 %v2826
    %3004 = vmatpush.msra.mxu0 %v2823
    %3005 = vmatpush.msra.mxu0 %v2820
    %3006 = vmatpush.msra.mxu0 %v2817
    %3007 = vmatpush.msra.mxu0 %v2814
    %3008 = vmatpush.msra.mxu0 %v2811
    %3009 = vmatpush.msra.mxu0 %v2808
    %3010 = vmatpush.msra.mxu0 %v2805
    %3011 = vmatpush.msra.mxu0 %v2802
    %3012 = vmatpush.msra.mxu0 %v2799
    %3013 = vmatpush.msra.mxu0 %v2796
    %3014 = vmatpush.msra.mxu0 %v2793
    %3015 = vmatpush.msra.mxu0 %v2790
    %3016 = vmatmul.f32.gmra.mxu0 %v2892
    %v3017 = vpop.f32.mrf.mxu0
    %v3018 = vadd.f32 %v2998, %v3017
    %3019 = vdwg.mxu0
    %3020 = vmatpush.msra.mxu0 %v2883
    %3021 = vmatpush.msra.mxu0 %v2880
    %3022 = vmatpush.msra.mxu0 %v2877
    %3023 = vmatpush.msra.mxu0 %v2874
    %3024 = vmatpush.msra.mxu0 %v2871
    %3025 = vmatpush.msra.mxu0 %v2868
    %3026 = vmatpush.msra.mxu0 %v2865
    %3027 = vmatpush.msra.mxu0 %v2862
    %3028 = vmatpush.msra.mxu0 %v2859
    %3029 = vmatpush.msra.mxu0 %v2856
    %3030 = vmatpush.msra.mxu0 %v2853
    %3031 = vmatpush.msra.mxu0 %v2850
    %3032 = vmatpush.msra.mxu0 %v2847
    %3033 = vmatpush.msra.mxu0 %v2844
    %3034 = vmatpush.msra.mxu0 %v2841
    %3035 = vmatpush.msra.mxu0 %v2838
    %3036 = vmatmul.f32.gmra.mxu0 %v2893
    %v3037 = vpop.f32.mrf.mxu0
    %v3038 = vadd.f32 %v3018, %v3037
    %3039 = vdwg.mxu0
    %3040 = vmatpush.msra.mxu0 0.0
    %3041 = vmatpush.msra.mxu0 0.0
    %3042 = vmatpush.msra.mxu0 0.0
    %3043 = vmatpush.msra.mxu0 0.0
    %3044 = vmatpush.msra.mxu0 0.0
    %3045 = vmatpush.msra.mxu0 0.0
    %3046 = vmatpush.msra.mxu0 0.0
    %3047 = vmatpush.msra.mxu0 0.0
    %3048 = vmatpush.msra.mxu0 0.0
    %3049 = vmatpush.msra.mxu0 0.0
    %3050 = vmatpush.msra.mxu0 0.0
    %3051 = vmatpush.msra.mxu0 0.0
    %3052 = vmatpush.msra.mxu0 0.0
    %3053 = vmatpush.msra.mxu0 0.0
    %3054 = vmatpush.msra.mxu0 0.0
    %3055 = vmatpush.msra.mxu0 %v2886
    %3056 = vmatmul.f32.gmra.mxu0 %v2898
    %v3057 = vpop.f32.mrf.mxu0
    %v3058 = vadd.f32 %v3038, %v3057
    %3059 = vdwg.mxu0
    %3060 = vmatpush.msra.mxu0 %v2788
    %3061 = vmatpush.msra.mxu0 %v2785
    %3062 = vmatpush.msra.mxu0 %v2782
    %3063 = vmatpush.msra.mxu0 %v2779
    %3064 = vmatpush.msra.mxu0 %v2776
    %3065 = vmatpush.msra.mxu0 %v2773
    %3066 = vmatpush.msra.mxu0 %v2770
    %3067 = vmatpush.msra.mxu0 %v2767
    %3068 = vmatpush.msra.mxu0 %v2764
    %3069 = vmatpush.msra.mxu0 %v2761
    %3070 = vmatpush.msra.mxu0 %v2758
    %3071 = vmatpush.msra.mxu0 %v2755
    %3072 = vmatpush.msra.mxu0 %v2752
    %3073 = vmatpush.msra.mxu0 %v2749
    %3074 = vmatpush.msra.mxu0 %v2746
    %3075 = vmatpush.msra.mxu0 %v2743
    %3076 = vmatmul.f32.gmra.mxu0 %v2891
    %v3077 = vpop.f32.mrf.mxu0
    %v3078 = vadd.f32 0.0, %v3077
    %3079 = vdwg.mxu0
    %3080 = vmatpush.msra.mxu0 %v2836
    %3081 = vmatpush.msra.mxu0 %v2833
    %3082 = vmatpush.msra.mxu0 %v2830
    %3083 = vmatpush.msra.mxu0 %v2827
    %3084 = vmatpush.msra.mxu0 %v2824
    %3085 = vmatpush.msra.mxu0 %v2821
    %3086 = vmatpush.msra.mxu0 %v2818
    %3087 = vmatpush.msra.mxu0 %v2815
    %3088 = vmatpush.msra.mxu0 %v2812
    %3089 = vmatpush.msra.mxu0 %v2809
    %3090 = vmatpush.msra.mxu0 %v2806
    %3091 = vmatpush.msra.mxu0 %v2803
    %3092 = vmatpush.msra.mxu0 %v2800
    %3093 = vmatpush.msra.mxu0 %v2797
    %3094 = vmatpush.msra.mxu0 %v2794
    %3095 = vmatpush.msra.mxu0 %v2791
    %3096 = vmatmul.f32.gmra.mxu0 %v2892
    %v3097 = vpop.f32.mrf.mxu0
    %v3098 = vadd.f32 %v3078, %v3097
    %3099 = vdwg.mxu0
    %3100 = vmatpush.msra.mxu0 %v2884
    %3101 = vmatpush.msra.mxu0 %v2881
    %3102 = vmatpush.msra.mxu0 %v2878
    %3103 = vmatpush.msra.mxu0 %v2875
    %3104 = vmatpush.msra.mxu0 %v2872
    %3105 = vmatpush.msra.mxu0 %v2869
    %3106 = vmatpush.msra.mxu0 %v2866
    %3107 = vmatpush.msra.mxu0 %v2863
    %3108 = vmatpush.msra.mxu0 %v2860
    %3109 = vmatpush.msra.mxu0 %v2857
    %3110 = vmatpush.msra.mxu0 %v2854
    %3111 = vmatpush.msra.mxu0 %v2851
    %3112 = vmatpush.msra.mxu0 %v2848
    %3113 = vmatpush.msra.mxu0 %v2845
    %3114 = vmatpush.msra.mxu0 %v2842
    %3115 = vmatpush.msra.mxu0 %v2839
    %3116 = vmatmul.f32.gmra.mxu0 %v2893
    %v3117 = vpop.f32.mrf.mxu0
    %v3118 = vadd.f32 %v3098, %v3117
    %3119 = vdwg.mxu0
    %3120 = vmatpush.msra.mxu0 0.0
    %3121 = vmatpush.msra.mxu0 0.0
    %3122 = vmatpush.msra.mxu0 0.0
    %3123 = vmatpush.msra.mxu0 0.0
    %3124 = vmatpush.msra.mxu0 0.0
    %3125 = vmatpush.msra.mxu0 0.0
    %3126 = vmatpush.msra.mxu0 0.0
    %3127 = vmatpush.msra.mxu0 0.0
    %3128 = vmatpush.msra.mxu0 0.0
    %3129 = vmatpush.msra.mxu0 0.0
    %3130 = vmatpush.msra.mxu0 0.0
    %3131 = vmatpush.msra.mxu0 0.0
    %3132 = vmatpush.msra.mxu0 0.0
    %3133 = vmatpush.msra.mxu0 0.0
    %3134 = vmatpush.msra.mxu0 0.0
    %3135 = vmatpush.msra.mxu0 %v2887
    %3136 = vmatmul.f32.gmra.mxu0 %v2898
    %v3137 = vpop.f32.mrf.mxu0
    %v3138 = vadd.f32 %v3118, %v3137
    %3139 = vdwg.mxu0
    %v3140 = vmul.f32 %v2978, %v2715
    %v3141 = vmul.f32 %v3058, %v2715
    %v3142 = vmul.f32 %v3138, %v2715
    %v3143 = vadd.f32 %v3140, %v2723
    %v3144 = vadd.f32 %v3141, %v2723
    %v3145 = vadd.f32 %v3142, %v2723
    %v3146 = vmax.f32 %v3143, 0.0
    %v3147 = vmax.f32 %v3144, 0.0
    %v3148 = vmax.f32 %v3145, 0.0
    %v3151 = vrot.slane %v3147, 4
    %v3152 = vsel %vm2734, %v3146, %v3151
    %s3154 = scalar_lea.vmem [#allocation8], 12
    %3155 = vst [vmem:[%s3154] sm:$0xff] %v3152
    %3156 = vst.msk [vmem:[%s3154 + $0x8] sm:$0xf] %vm2738, %v3148
    // Predicated region
    $region26: #{tpu_custom_call.1} parent=1 // pred_check
      _
    $region27: #{tpu_custom_call.1} parent=1 // pred_check_branch
      %3158 = sbr.rel (0) target = $region29
    $region28: #{tpu_custom_call.1} parent=1 // pred_region
      %3160 = vsyncadd [#allocation5], 0
      %s3161 = sshll.u32 [#allocation8], 4
      %s3162 = int_to_ptr.vmem [resolvable:$true] %s3161
      %s3163 = sshll.u32 %s4, 4
      %s3164 = int_to_ptr.hbm [resolvable:$true] %s3163
      %3169 = dma.vmem_to_hbm [thread:$0]  %s3162, 384, %s3164, [#allocation5], 192, 192, 12
    $region29: #{tpu_custom_call.1} parent=1 // pred_fallthru
      _
    // Predicated region
    $region30: #{tpu_custom_call.1} parent=1 // pred_check
      _
    $region31: #{tpu_custom_call.1} parent=1 // pred_check_branch
      %3171 = sbr.rel (0) target = $region33
    $region32: #{tpu_custom_call.1} parent=1 // pred_region
      %3173 = dma.done [#allocation5], 384
    $region33: #{tpu_custom_call.1} parent=1 // pred_fallthru
      _
    %3174 = vsyncpa [#allocation4], 1
    %3175 = vsyncpa [#allocation7], 1
    %3176 = vsyncpa [#allocation5], 1

</llo_original>
